<compile_context>
chip_gen: v5e
topology: v5e:2x2
jax: 0.10.0
libtpu: 0.0.40
codegen_flags: <defaults>
</compile_context>

<pallas_src>
import functools

import jax
import jax.numpy as jnp
import numpy as np
from jax.experimental import pallas as pl
from jax.experimental.pallas import tpu as pltpu


def _moe_kernel(x_ref, mask_ref, wg_ref, w1_ref, b1_ref, w2_ref, b2_ref,
                o_ref, gates_ref, acc_ref, *, num_experts, k):
    e = pl.program_id(1)

    # ---- gating + accumulator init: once per token tile (first expert step) ----
    @pl.when(e == 0)
    def _():
        x = x_ref[...].astype(jnp.float32)                     # [T, D]
        msk = mask_ref[...].astype(jnp.float32)                # [T, 1]
        logits = jnp.dot(x, wg_ref[...],
                         preferred_element_type=jnp.float32)   # [T, E] (f32 gating)

        # k-th-largest threshold via (k-1) masked max extractions.
        work = logits
        for _ in range(k - 1):
            cur = jnp.max(work, axis=-1, keepdims=True)
            work = jnp.where(work >= cur, -jnp.inf, work)
        thresh = jnp.max(work, axis=-1, keepdims=True)
        in_topk = logits >= thresh

        # Masked softmax over the top-k logits == softmax(topk) scattered back.
        m = jnp.max(logits, axis=-1, keepdims=True)
        p = jnp.where(in_topk, jnp.exp(logits - m), 0.0)
        denom = jnp.sum(p, axis=-1, keepdims=True)
        gates_ref[...] = (p / denom) * msk                     # clean(gates, mask)

        # Seed accumulator with the residual (dropout == identity in eval mode):
        # final output = sum_e gate_e * expert_e(x) + x.
        acc_ref[...] = x

    # ---- expert `e` MLP for this token tile: bf16 MXU operands, f32 accumulate ----
    xb = x_ref[...].astype(jnp.bfloat16)                        # [T, D]
    h = jnp.dot(xb, w1_ref[0], preferred_element_type=jnp.float32) + b1_ref[0]
    h = jnp.maximum(h, 0.0)                                     # ReLU
    out_e = jnp.dot(h.astype(jnp.bfloat16), w2_ref[0],
                    preferred_element_type=jnp.float32) + b2_ref[0]

    # Gate column e as [T,1] via one-hot lane reduce (no dynamic lane slicing).
    lane = jax.lax.broadcasted_iota(jnp.int32, gates_ref.shape, 1)
    gate_e = jnp.sum(jnp.where(lane == e, gates_ref[...], 0.0),
                     axis=-1, keepdims=True)
    acc_ref[...] += gate_e * out_e

    # ---- finalize: store (once per token tile, last expert step) ----
    @pl.when(e == num_experts - 1)
    def _():
        o_ref[...] = acc_ref[...].astype(o_ref.dtype)


def moe_forward(x, mask, params, *, num_experts, k, tile_tokens=256):
    """x: [B, S, D] float32, mask: [B, S] (0/1). Returns (y [B, S, O], loss)."""
    B, S, D = x.shape
    H = params["w1"].shape[-1]
    O = params["w2"].shape[-1]
    assert O == D, "residual add (as in the PyTorch module) requires output_size == input_size"
    N = B * S
    n_tiles = pl.cdiv(N, tile_tokens)
    N_pad = n_tiles * tile_tokens

    xf = x.reshape(N, D)
    mf = mask.reshape(N, 1).astype(jnp.float32)
    if N_pad != N:
        # Padded rows: x = 0, mask = 0 -> gates = 0 -> output row = 0 + residual 0;
        # sliced off below.
        xf = jnp.pad(xf, ((0, N_pad - N), (0, 0)))
        mf = jnp.pad(mf, ((0, N_pad - N), (0, 0)))

    # bf16 expert weights for the MXU (halves HBM/VMEM weight traffic); biases + gate stay f32.
    w1 = params["w1"].astype(jnp.bfloat16)
    w2 = params["w2"].astype(jnp.bfloat16)

    kernel = functools.partial(_moe_kernel, num_experts=num_experts, k=k)

    y = pl.pallas_call(
        kernel,
        out_shape=jax.ShapeDtypeStruct((N_pad, O), x.dtype),
        grid_spec=pltpu.PrefetchScalarGridSpec(
            num_scalar_prefetch=0,
            grid=(n_tiles, num_experts),                       # experts = reduction (inner)
            in_specs=[
                pl.BlockSpec((tile_tokens, D), lambda t, e: (t, 0)),        # x
                pl.BlockSpec((tile_tokens, 1), lambda t, e: (t, 0)),        # mask
                pl.BlockSpec((D, num_experts), lambda t, e: (0, 0)),        # w_gate (f32)
                pl.BlockSpec((1, D, H), lambda t, e: (e, 0, 0)),            # w1[e]  (bf16)
                pl.BlockSpec((1, 1, H), lambda t, e: (e, 0, 0)),            # b1[e]  (f32)
                pl.BlockSpec((1, H, O), lambda t, e: (e, 0, 0)),            # w2[e]  (bf16)
                pl.BlockSpec((1, 1, O), lambda t, e: (e, 0, 0)),            # b2[e]  (f32)
            ],
            out_specs=pl.BlockSpec((tile_tokens, O), lambda t, e: (t, 0)),
            scratch_shapes=[
                pltpu.VMEM((tile_tokens, num_experts), jnp.float32),        # gates
                pltpu.VMEM((tile_tokens, O), jnp.float32),                  # accumulator
            ],
        ),
        compiler_params=pltpu.CompilerParams(
            dimension_semantics=("parallel", "arbitrary"),
            vmem_limit_bytes=64 * 1024 * 1024,
        ),
    )(xf, mf, params["w_gate"], w1, params["b1"], w2, params["b2"])

    loss = jnp.float32(0.0)  # noisy_gating=False => loss == 0
    return y[:N].reshape(B, S, O), loss


def moe_reference(x, mask, params, *, num_experts, k):
    """Pure-JAX f32 reference mirroring the PyTorch forward (eval-mode dropout)."""
    logits = x @ params["w_gate"]                              # [B, S, E]
    topv, topi = jax.lax.top_k(logits, k)
    sm = jax.nn.softmax(topv, axis=-1)
    gates = jnp.sum(sm[..., None] * jax.nn.one_hot(topi, num_experts), axis=-2)
    gates = gates * mask[..., None].astype(x.dtype)
    acc = jnp.zeros(x.shape[:-1] + (params["w2"].shape[-1],), x.dtype)
    for e in range(num_experts):
        h = jnp.maximum(x @ params["w1"][e] + params["b1"][e, 0], 0.0)
        oe = h @ params["w2"][e] + params["b2"][e, 0]
        acc = acc + gates[..., e:e + 1] * oe
    return acc + x


def init_params(key, input_size, hidden_size, output_size, num_experts):
    ks = jax.random.split(key, 5)
    # xavier-uniform for the gate (matches nn.init.xavier_uniform_ spirit)
    lim_g = float(np.sqrt(6.0 / (input_size + num_experts)))
    w_gate = jax.random.uniform(ks[0], (input_size, num_experts),
                                jnp.float32, -lim_g, lim_g)
    # nn.Linear-style uniform init (deterministic, stacked per expert)
    lim1 = float(1.0 / np.sqrt(input_size))
    lim2 = float(1.0 / np.sqrt(hidden_size))
    w1 = jax.random.uniform(ks[1], (num_experts, input_size, hidden_size),
                            jnp.float32, -lim1, lim1)
    b1 = jax.random.uniform(ks[2], (num_experts, 1, hidden_size),
                            jnp.float32, -lim1, lim1)
    w2 = jax.random.uniform(ks[3], (num_experts, hidden_size, output_size),
                            jnp.float32, -lim2, lim2)
    b2 = jax.random.uniform(ks[4], (num_experts, 1, output_size),
                            jnp.float32, -lim2, lim2)
    return {"w_gate": w_gate, "w1": w1, "b1": b1, "w2": w2, "b2": b2}


if __name__ == "__main__":
    B, S = 2, 8
    input_size = 32
    hidden_size = 64
    output_size = 32          # residual add requires output_size == input_size
    num_experts = 8
    k = 4

    key = jax.random.PRNGKey(0)
    kx, kp, km = jax.random.split(key, 3)
    x = jax.random.normal(kx, (B, S, input_size), jnp.float32)
    # mask: mostly ones, a couple of padded (masked-out) tokens
    mask = jnp.ones((B, S), jnp.float32).at[0, -1].set(0.0).at[1, -2].set(0.0)
    params = init_params(kp, input_size, hidden_size, output_size, num_experts)

    y, loss = moe_forward(x, mask, params, num_experts=num_experts, k=k)
    y = jax.block_until_ready(y)

    # Tolerance accounts for bf16 expert-matmul operands in the kernel vs f32 reference.
    y_ref = moe_reference(x, mask, params, num_experts=num_experts, k=k)
    np.testing.assert_allclose(np.asarray(y), np.asarray(y_ref), rtol=2e-2, atol=2e-2)

    print("KERNEL_OK")
</pallas_src>

<mosaic_0001>
module attributes {stable_mosaic.version = 11 : i64} {
  func.func @_moe_kernel(%arg0: i32, %arg1: i32, %arg2: memref<256x32xf32, #tpu.memory_space<vmem>>, %arg3: memref<256x1xf32, #tpu.memory_space<vmem>>, %arg4: memref<32x8xf32, #tpu.memory_space<vmem>>, %arg5: memref<1x32x64xbf16, #tpu.memory_space<vmem>>, %arg6: memref<1x1x64xf32, #tpu.memory_space<vmem>>, %arg7: memref<1x64x32xbf16, #tpu.memory_space<vmem>>, %arg8: memref<1x1x32xf32, #tpu.memory_space<vmem>>, %arg9: memref<256x32xf32, #tpu.memory_space<vmem>>, %arg10: memref<256x8xf32, #tpu.memory_space<vmem>>, %arg11: memref<256x32xf32, #tpu.memory_space<vmem>>) attributes {dimension_semantics = [#tpu.dimension_semantics<parallel>, #tpu.dimension_semantics<arbitrary>], iteration_bounds = array<i64: 1, 8>, scalar_prefetch = 0 : i64, scratch_operands = 2 : i64, tpu.core_type = #tpu.core_type<tc>, window_params = [{transform_indices = @transform_0, window_bounds = array<i64: 256, 32>}, {transform_indices = @transform_1, window_bounds = array<i64: 256, 1>}, {pipeline_mode = #tpu.pipeline_mode<synchronous>, transform_indices = @transform_2, window_bounds = array<i64: 32, 8>}, {transform_indices = @transform_3, window_bounds = array<i64: 1, 32, 64>}, {transform_indices = @transform_4, window_bounds = array<i64: 1, 1, 64>}, {transform_indices = @transform_5, window_bounds = array<i64: 1, 64, 32>}, {transform_indices = @transform_6, window_bounds = array<i64: 1, 1, 32>}, {transform_indices = @transform_7, window_bounds = array<i64: 256, 32>}]} {
    %c0_i32 = arith.constant 0 : i32
    %0 = arith.cmpi eq, %arg1, %c0_i32 : i32
    %1 = arith.extui %0 : i1 to i32
    %c0_i32_0 = arith.constant 0 : i32
    %2 = arith.cmpi ne, %1, %c0_i32_0 : i32
    scf.if %2 {
      %c0_25 = arith.constant 0 : index
      %c0_26 = arith.constant 0 : index
      %38 = vector.load %arg2[%c0_25, %c0_26] : memref<256x32xf32, #tpu.memory_space<vmem>>, vector<256x32xf32>
      %c0_27 = arith.constant 0 : index
      %c0_28 = arith.constant 0 : index
      %39 = vector.load %arg3[%c0_27, %c0_28] : memref<256x1xf32, #tpu.memory_space<vmem>>, vector<256x1xf32>
      %c0_29 = arith.constant 0 : index
      %c0_30 = arith.constant 0 : index
      %40 = vector.load %arg4[%c0_29, %c0_30] : memref<32x8xf32, #tpu.memory_space<vmem>>, vector<32x8xf32>
      %cst_31 = arith.constant dense<0.000000e+00> : vector<256x8xf32>
      %41 = tpu.matmul %38, %40, %cst_31 {dimension_numbers = #tpu.dot_dimension_numbers<[1], [0], [0], [1], [0, 0, 1, 1], [], []>} : vector<256x32xf32>, vector<32x8xf32>, vector<256x8xf32> -> vector<256x8xf32>
      %cst_32 = arith.constant dense<0xFF800000> : vector<256xf32>
      %42 = vector.multi_reduction <maximumf>, %41, %cst_32 [1] : vector<256x8xf32> to vector<256xf32>
      %43 = vector.shape_cast %42 : vector<256xf32> to vector<256x1xf32>
      %44 = vector.broadcast %43 : vector<256x1xf32> to vector<256x8xf32>
      %45 = arith.cmpf oge, %41, %44 : vector<256x8xf32>
      %cst_33 = arith.constant 0xFF800000 : f32
      %46 = vector.broadcast %cst_33 : f32 to vector<256x8xf32>
      %47 = arith.select %45, %46, %41 : vector<256x8xi1>, vector<256x8xf32>
      %cst_34 = arith.constant dense<0xFF800000> : vector<256xf32>
      %48 = vector.multi_reduction <maximumf>, %47, %cst_34 [1] : vector<256x8xf32> to vector<256xf32>
      %49 = vector.shape_cast %48 : vector<256xf32> to vector<256x1xf32>
      %50 = vector.broadcast %49 : vector<256x1xf32> to vector<256x8xf32>
      %51 = arith.cmpf oge, %47, %50 : vector<256x8xf32>
      %cst_35 = arith.constant 0xFF800000 : f32
      %52 = vector.broadcast %cst_35 : f32 to vector<256x8xf32>
      %53 = arith.select %51, %52, %47 : vector<256x8xi1>, vector<256x8xf32>
      %cst_36 = arith.constant dense<0xFF800000> : vector<256xf32>
      %54 = vector.multi_reduction <maximumf>, %53, %cst_36 [1] : vector<256x8xf32> to vector<256xf32>
      %55 = vector.shape_cast %54 : vector<256xf32> to vector<256x1xf32>
      %56 = vector.broadcast %55 : vector<256x1xf32> to vector<256x8xf32>
      %57 = arith.cmpf oge, %53, %56 : vector<256x8xf32>
      %cst_37 = arith.constant 0xFF800000 : f32
      %58 = vector.broadcast %cst_37 : f32 to vector<256x8xf32>
      %59 = arith.select %57, %58, %53 : vector<256x8xi1>, vector<256x8xf32>
      %cst_38 = arith.constant dense<0xFF800000> : vector<256xf32>
      %60 = vector.multi_reduction <maximumf>, %59, %cst_38 [1] : vector<256x8xf32> to vector<256xf32>
      %61 = vector.shape_cast %60 : vector<256xf32> to vector<256x1xf32>
      %62 = vector.broadcast %61 : vector<256x1xf32> to vector<256x8xf32>
      %63 = arith.cmpf oge, %41, %62 : vector<256x8xf32>
      %cst_39 = arith.constant dense<0xFF800000> : vector<256xf32>
      %64 = vector.multi_reduction <maximumf>, %41, %cst_39 [1] : vector<256x8xf32> to vector<256xf32>
      %65 = vector.shape_cast %64 : vector<256xf32> to vector<256x1xf32>
      %66 = vector.broadcast %65 : vector<256x1xf32> to vector<256x8xf32>
      %67 = arith.subf %41, %66 : vector<256x8xf32>
      %68 = math.exp %67 : vector<256x8xf32>
      %cst_40 = arith.constant 0.000000e+00 : f32
      %69 = vector.broadcast %cst_40 : f32 to vector<256x8xf32>
      %70 = arith.select %63, %68, %69 : vector<256x8xi1>, vector<256x8xf32>
      %cst_41 = arith.constant dense<0.000000e+00> : vector<256xf32>
      %71 = vector.multi_reduction <add>, %70, %cst_41 [1] : vector<256x8xf32> to vector<256xf32>
      %72 = vector.shape_cast %71 : vector<256xf32> to vector<256x1xf32>
      %73 = vector.broadcast %72 : vector<256x1xf32> to vector<256x8xf32>
      %74 = arith.divf %70, %73 : vector<256x8xf32>
      %75 = vector.broadcast %39 : vector<256x1xf32> to vector<256x8xf32>
      %76 = arith.mulf %74, %75 : vector<256x8xf32>
      %c0_42 = arith.constant 0 : index
      %c0_43 = arith.constant 0 : index
      %77 = vector.load %arg10[%c0_42, %c0_43] : memref<256x8xf32, #tpu.memory_space<vmem>>, vector<256x8xf32>
      tpu.vector_store %arg10[%c0_42, %c0_43], %76 {strides = array<i32>} : memref<256x8xf32, #tpu.memory_space<vmem>>, vector<256x8xf32>,
      %c0_44 = arith.constant 0 : index
      %c0_45 = arith.constant 0 : index
      %78 = vector.load %arg11[%c0_44, %c0_45] : memref<256x32xf32, #tpu.memory_space<vmem>>, vector<256x32xf32>
      tpu.vector_store %arg11[%c0_44, %c0_45], %38 {strides = array<i32>} : memref<256x32xf32, #tpu.memory_space<vmem>>, vector<256x32xf32>,
    } else {
    }
    %c0 = arith.constant 0 : index
    %c0_1 = arith.constant 0 : index
    %3 = vector.load %arg2[%c0, %c0_1] : memref<256x32xf32, #tpu.memory_space<vmem>>, vector<256x32xf32>
    %4 = arith.truncf %3 : vector<256x32xf32> to vector<256x32xbf16>
    %c0_2 = arith.constant 0 : index
    %c0_3 = arith.constant 0 : index
    %c0_4 = arith.constant 0 : index
    %5 = vector.load %arg5[%c0_2, %c0_3, %c0_4] : memref<1x32x64xbf16, #tpu.memory_space<vmem>>, vector<1x32x64xbf16>
    %6 = vector.shape_cast %5 : vector<1x32x64xbf16> to vector<32x64xbf16>
    %cst = arith.constant dense<0.000000e+00> : vector<256x64xf32>
    %7 = tpu.matmul %4, %6, %cst {dimension_numbers = #tpu.dot_dimension_numbers<[1], [0], [0], [1], [0, 0, 1, 1], [], []>} : vector<256x32xbf16>, vector<32x64xbf16>, vector<256x64xf32> -> vector<256x64xf32>
    %c0_5 = arith.constant 0 : index
    %c0_6 = arith.constant 0 : index
    %c0_7 = arith.constant 0 : index
    %8 = vector.load %arg6[%c0_5, %c0_6, %c0_7] : memref<1x1x64xf32, #tpu.memory_space<vmem>>, vector<1x1x64xf32>
    %9 = vector.shape_cast %8 : vector<1x1x64xf32> to vector<1x64xf32>
    %10 = vector.broadcast %9 : vector<1x64xf32> to vector<256x64xf32>
    %11 = arith.addf %7, %10 : vector<256x64xf32>
    %cst_8 = arith.constant 0.000000e+00 : f32
    %12 = vector.broadcast %cst_8 : f32 to vector<256x64xf32>
    %13 = arith.maximumf %11, %12 : vector<256x64xf32>
    %14 = arith.truncf %13 : vector<256x64xf32> to vector<256x64xbf16>
    %c0_9 = arith.constant 0 : index
    %c0_10 = arith.constant 0 : index
    %c0_11 = arith.constant 0 : index
    %15 = vector.load %arg7[%c0_9, %c0_10, %c0_11] : memref<1x64x32xbf16, #tpu.memory_space<vmem>>, vector<1x64x32xbf16>
    %16 = vector.shape_cast %15 : vector<1x64x32xbf16> to vector<64x32xbf16>
    %cst_12 = arith.constant dense<0.000000e+00> : vector<256x32xf32>
    %17 = tpu.matmul %14, %16, %cst_12 {dimension_numbers = #tpu.dot_dimension_numbers<[1], [0], [0], [1], [0, 0, 1, 1], [], []>} : vector<256x64xbf16>, vector<64x32xbf16>, vector<256x32xf32> -> vector<256x32xf32>
    %c0_13 = arith.constant 0 : index
    %c0_14 = arith.constant 0 : index
    %c0_15 = arith.constant 0 : index
    %18 = vector.load %arg8[%c0_13, %c0_14, %c0_15] : memref<1x1x32xf32, #tpu.memory_space<vmem>>, vector<1x1x32xf32>
    %19 = vector.shape_cast %18 : vector<1x1x32xf32> to vector<1x32xf32>
    %20 = vector.broadcast %19 : vector<1x32xf32> to vector<256x32xf32>
    %21 = arith.addf %17, %20 : vector<256x32xf32>
    %22 = tpu.iota {dimensions = array<i32: 1>} : vector<256x8xi32>
    %23 = vector.broadcast %arg1 : i32 to vector<256x8xi32>
    %24 = arith.cmpi eq, %22, %23 : vector<256x8xi32>
    %c0_16 = arith.constant 0 : index
    %c0_17 = arith.constant 0 : index
    %25 = vector.load %arg10[%c0_16, %c0_17] : memref<256x8xf32, #tpu.memory_space<vmem>>, vector<256x8xf32>
    %cst_18 = arith.constant 0.000000e+00 : f32
    %26 = vector.broadcast %cst_18 : f32 to vector<256x8xf32>
    %27 = arith.select %24, %25, %26 : vector<256x8xi1>, vector<256x8xf32>
    %cst_19 = arith.constant dense<0.000000e+00> : vector<256xf32>
    %28 = vector.multi_reduction <add>, %27, %cst_19 [1] : vector<256x8xf32> to vector<256xf32>
    %29 = vector.shape_cast %28 : vector<256xf32> to vector<256x1xf32>
    %c0_20 = arith.constant 0 : index
    %c0_21 = arith.constant 0 : index
    %30 = vector.load %arg11[%c0_20, %c0_21] : memref<256x32xf32, #tpu.memory_space<vmem>>, vector<256x32xf32>
    %31 = vector.broadcast %29 : vector<256x1xf32> to vector<256x32xf32>
    %32 = arith.mulf %31, %21 : vector<256x32xf32>
    %33 = arith.addf %30, %32 : vector<256x32xf32>
    %c0_22 = arith.constant 0 : index
    %c0_23 = arith.constant 0 : index
    %34 = vector.load %arg11[%c0_22, %c0_23] : memref<256x32xf32, #tpu.memory_space<vmem>>, vector<256x32xf32>
    tpu.vector_store %arg11[%c0_22, %c0_23], %33 {strides = array<i32>} : memref<256x32xf32, #tpu.memory_space<vmem>>, vector<256x32xf32>,
    %c7_i32 = arith.constant 7 : i32
    %35 = arith.cmpi eq, %arg1, %c7_i32 : i32
    %36 = arith.extui %35 : i1 to i32
    %c0_i32_24 = arith.constant 0 : i32
    %37 = arith.cmpi ne, %36, %c0_i32_24 : i32
    scf.if %37 {
      %c0_25 = arith.constant 0 : index
      %c0_26 = arith.constant 0 : index
      %38 = vector.load %arg11[%c0_25, %c0_26] : memref<256x32xf32, #tpu.memory_space<vmem>>, vector<256x32xf32>
      %c0_27 = arith.constant 0 : index
      %c0_28 = arith.constant 0 : index
      %39 = vector.load %arg9[%c0_27, %c0_28] : memref<256x32xf32, #tpu.memory_space<vmem>>, vector<256x32xf32>
      tpu.vector_store %arg9[%c0_27, %c0_28], %38 {strides = array<i32>} : memref<256x32xf32, #tpu.memory_space<vmem>>, vector<256x32xf32>,
    } else {
    }
    return
  }
  func.func @transform_0(%arg0: i32, %arg1: i32) -> (i32, i32) {
    %c0_i32 = arith.constant 0 : i32
    %c0_i32_0 = arith.constant 0 : i32
    return %arg0, %c0_i32 : i32, i32
  }
  func.func @transform_1(%arg0: i32, %arg1: i32) -> (i32, i32) {
    %c0_i32 = arith.constant 0 : i32
    %c0_i32_0 = arith.constant 0 : i32
    return %arg0, %c0_i32 : i32, i32
  }
  func.func @transform_2(%arg0: i32, %arg1: i32) -> (i32, i32) {
    %c0_i32 = arith.constant 0 : i32
    %c0_i32_0 = arith.constant 0 : i32
    %c0_i32_1 = arith.constant 0 : i32
    return %c0_i32, %c0_i32_0 : i32, i32
  }
  func.func @transform_3(%arg0: i32, %arg1: i32) -> (i32, i32, i32) {
    %c0_i32 = arith.constant 0 : i32
    %c0_i32_0 = arith.constant 0 : i32
    %c0_i32_1 = arith.constant 0 : i32
    return %arg1, %c0_i32, %c0_i32_0 : i32, i32, i32
  }
  func.func @transform_4(%arg0: i32, %arg1: i32) -> (i32, i32, i32) {
    %c0_i32 = arith.constant 0 : i32
    %c0_i32_0 = arith.constant 0 : i32
    %c0_i32_1 = arith.constant 0 : i32
    return %arg1, %c0_i32, %c0_i32_0 : i32, i32, i32
  }
  func.func @transform_5(%arg0: i32, %arg1: i32) -> (i32, i32, i32) {
    %c0_i32 = arith.constant 0 : i32
    %c0_i32_0 = arith.constant 0 : i32
    %c0_i32_1 = arith.constant 0 : i32
    return %arg1, %c0_i32, %c0_i32_0 : i32, i32, i32
  }
  func.func @transform_6(%arg0: i32, %arg1: i32) -> (i32, i32, i32) {
    %c0_i32 = arith.constant 0 : i32
    %c0_i32_0 = arith.constant 0 : i32
    %c0_i32_1 = arith.constant 0 : i32
    return %arg1, %c0_i32, %c0_i32_0 : i32, i32, i32
  }
  func.func @transform_7(%arg0: i32, %arg1: i32) -> (i32, i32) {
    %c0_i32 = arith.constant 0 : i32
    %c0_i32_0 = arith.constant 0 : i32
    return %arg0, %c0_i32 : i32, i32
  }
}

</mosaic_0001>

<llo_original>
// kernel: tpu_custom_call.1
$region0: #{tpu_custom_call.1}
  #allocation0 [shape = 'u32[]', space=smem, size = 0x4, offset = 0x4, fixed_abs, tag = 'smem constant byte address 0x4 - core index']
  #allocation1 [shape = 'u32[72,128]{1,0:T(1,128)}', space=vmem, size = 0x9000, scoped, tag = 'internal scratch']
  #allocation2 [shape = 'f32[256,8]{1,0:T(8,128)}', space=vmem, size = 0x20000, scoped, tag = 'scratch operand']
  #allocation3 [shape = 'f32[256,32]{1,0:T(8,128)}', space=vmem, size = 0x20000, scoped, tag = 'scratch operand']
  %s0 = inlined_call_operand.vmem [shape: f32[256,32], index: 0, kind: input, shape index: {}]
  %s1 = inlined_call_operand.vmem [shape: f32[256,1], index: 1, kind: input, shape index: {}]
  %s2 = inlined_call_operand.vmem [shape: f32[32,8], index: 2, kind: input, shape index: {}]
  %s3 = inlined_call_operand.vmem [shape: bf16[8,32,64], index: 3, kind: input, shape index: {}]
  %s4 = inlined_call_operand.vmem [shape: f32[8,1,64], index: 4, kind: input, shape index: {}]
  %s5 = inlined_call_operand.vmem [shape: bf16[8,64,32], index: 5, kind: input, shape index: {}]
  %s6 = inlined_call_operand.vmem [shape: f32[8,1,32], index: 6, kind: input, shape index: {}]
  %s7 = inlined_call_operand.vmem [shape: f32[256,32], index: 7, kind: output, shape index: {}]
  %s8 = sld [smem:[#allocation0]]
  $region69: #{tpu_custom_call.1} parent=0
    _
  %s10 = ssub.s32 1, %s8
  %s11 = scalar_select 0, %s10, %s8
  loop: start=0, step=1, limit=10
  $region2: #{tpu_custom_call.1} parent=0 // loop_pre_header
    _
  $region3: #{tpu_custom_call.1} parent=0 // loop_header
    %s13 = sphi 0, %s17
    %p14 = scmp.ge.s32.totalorder %s13, 10
    %s20 = sphi 0, %s32
    %s21 = sphi 0, %s28
    %s22 = sphi 0, %s20
    %s23 = sphi 0, %s21
    %s24 = sphi 0, %s22
    %s25 = sphi 0, %s23
    %s35 = sphi 0, %s37
    %s38 = sphi 0, %s35
    %s39 = sphi 0, %s38
    %s55 = sphi 0, %s39
    %s61 = sphi 0, %s63
    %s64 = sphi 0, %s61
    %s65 = sphi 0, %s64
    %s81 = sphi 0, %s65
    %s85 = sphi 0, %s85
    %s87 = sphi 0, %s85
    %s88 = sphi 0, %s87
    %s102 = sphi 0, %s88
    %s108 = sphi 0, %s110
    %s111 = sphi 0, %s108
    %s112 = sphi 0, %s111
    %s128 = sphi 0, %s112
    %s134 = sphi 0, %s136
    %s137 = sphi 0, %s134
    %s138 = sphi 0, %s137
    %s154 = sphi 0, %s138
    %s160 = sphi 0, %s162
    %s163 = sphi 0, %s160
    %s164 = sphi 0, %s163
    %s180 = sphi 0, %s164
    %s186 = sphi 0, %s188
    %s189 = sphi 0, %s186
    %s190 = sphi 0, %s189
    %s206 = sphi 0, %s190
    %s212 = sphi 0, %s214
    %s215 = sphi 0, %s212
    %s216 = sphi 0, %s215
    %s232 = sphi 0, %s216
  $region4: #{tpu_custom_call.1} parent=0 // loop_header_branch
    %16 = sbr.rel (%p14) target = $region8
  $region5: #{tpu_custom_call.1} parent=0 // loop_body
    %s18 = ssub.s32 %s13, 1
    %s19 = ssub.s32 %s13, 2
    %s26 = sadd.s32 1, %s21
    %p27 = scmp.ge.s32.totalorder %s26, 8
    %s28 = scalar_select %p27, 0, %s26
    %s29 = sadd.s32 1, %s20
    %s30 = scalar_select %p27, %s29, %s20
    %p31 = scmp.ge.s32.totalorder %s30, 1
    %s32 = scalar_select %p31, 0, %s30
    %s33 = ssub.s32 %s20, %s32
    %p34 = scmp.eq.s32.totalorder %s33, 0
    %s36 = sadd.s32 %s35, 1
    %s37 = scalar_select %p34, %s35, %s36
    %p40 = pneg %p34
    %p41 = scmp.eq.s32.totalorder %s13, 7
    %p42 = por %p40, %p41
    %p43 = scmp.ne.s32.totalorder %s35, %s38
    %p44 = scmp.eq.s32.totalorder %s13, 0
    %p45 = por %p43, %p44
    %p46 = scmp.ne.s32.totalorder %s35, %s38
    %p47 = scmp.eq.s32.totalorder %s18, 7
    %p48 = por %p46, %p47
    %p49 = scmp.ne.s32.totalorder %s38, %s39
    %p50 = scmp.eq.s32.totalorder %s18, 0
    %p51 = por %p49, %p50
    %p52 = scmp.ne.s32.totalorder %s38, %s39
    %p53 = scmp.eq.s32.totalorder %s19, 7
    %p54 = por %p52, %p53
    %p56 = scmp.ne.s32.totalorder %s39, %s55
    %p57 = scmp.eq.s32.totalorder %s19, 0
    %p58 = por %p56, %p57
    %s59 = ssub.s32 %s20, %s32
    %p60 = scmp.eq.s32.totalorder %s59, 0
    %s62 = sadd.s32 %s61, 1
    %s63 = scalar_select %p60, %s61, %s62
    %p66 = pneg %p60
    %p67 = scmp.eq.s32.totalorder %s13, 7
    %p68 = por %p66, %p67
    %p69 = scmp.ne.s32.totalorder %s61, %s64
    %p70 = scmp.eq.s32.totalorder %s13, 0
    %p71 = por %p69, %p70
    %p72 = scmp.ne.s32.totalorder %s61, %s64
    %p73 = scmp.eq.s32.totalorder %s18, 7
    %p74 = por %p72, %p73
    %p75 = scmp.ne.s32.totalorder %s64, %s65
    %p76 = scmp.eq.s32.totalorder %s18, 0
    %p77 = por %p75, %p76
    %p78 = scmp.ne.s32.totalorder %s64, %s65
    %p79 = scmp.eq.s32.totalorder %s19, 7
    %p80 = por %p78, %p79
    %p82 = scmp.ne.s32.totalorder %s65, %s81
    %p83 = scmp.eq.s32.totalorder %s19, 0
    %p84 = por %p82, %p83
    %s86 = sadd.s32 %s85, 1
    %p89 = scmp.eq.s32.totalorder %s13, 7
    %p90 = scmp.ne.s32.totalorder %s85, %s87
    %p91 = scmp.eq.s32.totalorder %s13, 0
    %p92 = por %p90, %p91
    %p93 = scmp.ne.s32.totalorder %s85, %s87
    %p94 = scmp.eq.s32.totalorder %s18, 7
    %p95 = por %p93, %p94
    %p96 = scmp.ne.s32.totalorder %s87, %s88
    %p97 = scmp.eq.s32.totalorder %s18, 0
    %p98 = por %p96, %p97
    %p99 = scmp.ne.s32.totalorder %s87, %s88
    %p100 = scmp.eq.s32.totalorder %s19, 7
    %p101 = por %p99, %p100
    %p103 = scmp.ne.s32.totalorder %s88, %s102
    %p104 = scmp.eq.s32.totalorder %s19, 0
    %p105 = por %p103, %p104
    %s106 = ssub.s32 %s21, %s28
    %p107 = scmp.eq.s32.totalorder %s106, 0
    %s109 = sadd.s32 %s108, 1
    %s110 = scalar_select %p107, %s108, %s109
    %p113 = pneg %p107
    %p114 = scmp.eq.s32.totalorder %s13, 7
    %p115 = por %p113, %p114
    %p116 = scmp.ne.s32.totalorder %s108, %s111
    %p117 = scmp.eq.s32.totalorder %s13, 0
    %p118 = por %p116, %p117
    %p119 = scmp.ne.s32.totalorder %s108, %s111
    %p120 = scmp.eq.s32.totalorder %s18, 7
    %p121 = por %p119, %p120
    %p122 = scmp.ne.s32.totalorder %s111, %s112
    %p123 = scmp.eq.s32.totalorder %s18, 0
    %p124 = por %p122, %p123
    %p125 = scmp.ne.s32.totalorder %s111, %s112
    %p126 = scmp.eq.s32.totalorder %s19, 7
    %p127 = por %p125, %p126
    %p129 = scmp.ne.s32.totalorder %s112, %s128
    %p130 = scmp.eq.s32.totalorder %s19, 0
    %p131 = por %p129, %p130
    %s132 = ssub.s32 %s21, %s28
    %p133 = scmp.eq.s32.totalorder %s132, 0
    %s135 = sadd.s32 %s134, 1
    %s136 = scalar_select %p133, %s134, %s135
    %p139 = pneg %p133
    %p140 = scmp.eq.s32.totalorder %s13, 7
    %p141 = por %p139, %p140
    %p142 = scmp.ne.s32.totalorder %s134, %s137
    %p143 = scmp.eq.s32.totalorder %s13, 0
    %p144 = por %p142, %p143
    %p145 = scmp.ne.s32.totalorder %s134, %s137
    %p146 = scmp.eq.s32.totalorder %s18, 7
    %p147 = por %p145, %p146
    %p148 = scmp.ne.s32.totalorder %s137, %s138
    %p149 = scmp.eq.s32.totalorder %s18, 0
    %p150 = por %p148, %p149
    %p151 = scmp.ne.s32.totalorder %s137, %s138
    %p152 = scmp.eq.s32.totalorder %s19, 7
    %p153 = por %p151, %p152
    %p155 = scmp.ne.s32.totalorder %s138, %s154
    %p156 = scmp.eq.s32.totalorder %s19, 0
    %p157 = por %p155, %p156
    %s158 = ssub.s32 %s21, %s28
    %p159 = scmp.eq.s32.totalorder %s158, 0
    %s161 = sadd.s32 %s160, 1
    %s162 = scalar_select %p159, %s160, %s161
    %p165 = pneg %p159
    %p166 = scmp.eq.s32.totalorder %s13, 7
    %p167 = por %p165, %p166
    %p168 = scmp.ne.s32.totalorder %s160, %s163
    %p169 = scmp.eq.s32.totalorder %s13, 0
    %p170 = por %p168, %p169
    %p171 = scmp.ne.s32.totalorder %s160, %s163
    %p172 = scmp.eq.s32.totalorder %s18, 7
    %p173 = por %p171, %p172
    %p174 = scmp.ne.s32.totalorder %s163, %s164
    %p175 = scmp.eq.s32.totalorder %s18, 0
    %p176 = por %p174, %p175
    %p177 = scmp.ne.s32.totalorder %s163, %s164
    %p178 = scmp.eq.s32.totalorder %s19, 7
    %p179 = por %p177, %p178
    %p181 = scmp.ne.s32.totalorder %s164, %s180
    %p182 = scmp.eq.s32.totalorder %s19, 0
    %p183 = por %p181, %p182
    %s184 = ssub.s32 %s21, %s28
    %p185 = scmp.eq.s32.totalorder %s184, 0
    %s187 = sadd.s32 %s186, 1
    %s188 = scalar_select %p185, %s186, %s187
    %p191 = pneg %p185
    %p192 = scmp.eq.s32.totalorder %s13, 7
    %p193 = por %p191, %p192
    %p194 = scmp.ne.s32.totalorder %s186, %s189
    %p195 = scmp.eq.s32.totalorder %s13, 0
    %p196 = por %p194, %p195
    %p197 = scmp.ne.s32.totalorder %s186, %s189
    %p198 = scmp.eq.s32.totalorder %s18, 7
    %p199 = por %p197, %p198
    %p200 = scmp.ne.s32.totalorder %s189, %s190
    %p201 = scmp.eq.s32.totalorder %s18, 0
    %p202 = por %p200, %p201
    %p203 = scmp.ne.s32.totalorder %s189, %s190
    %p204 = scmp.eq.s32.totalorder %s19, 7
    %p205 = por %p203, %p204
    %p207 = scmp.ne.s32.totalorder %s190, %s206
    %p208 = scmp.eq.s32.totalorder %s19, 0
    %p209 = por %p207, %p208
    %s210 = ssub.s32 %s20, %s32
    %p211 = scmp.eq.s32.totalorder %s210, 0
    %s213 = sadd.s32 %s212, 1
    %s214 = scalar_select %p211, %s212, %s213
    %p217 = pneg %p211
    %p218 = scmp.eq.s32.totalorder %s13, 7
    %p219 = por %p217, %p218
    %p220 = scmp.ne.s32.totalorder %s212, %s215
    %p221 = scmp.eq.s32.totalorder %s13, 0
    %p222 = por %p220, %p221
    %p223 = scmp.ne.s32.totalorder %s212, %s215
    %p224 = scmp.eq.s32.totalorder %s18, 7
    %p225 = por %p223, %p224
    %p226 = scmp.ne.s32.totalorder %s215, %s216
    %p227 = scmp.eq.s32.totalorder %s18, 0
    %p228 = por %p226, %p227
    %p229 = scmp.ne.s32.totalorder %s215, %s216
    %p230 = scmp.eq.s32.totalorder %s19, 7
    %p231 = por %p229, %p230
    %p233 = scmp.ne.s32.totalorder %s216, %s232
    %p234 = scmp.eq.s32.totalorder %s19, 0
    %p235 = por %p233, %p234
    %p236 = scmp.le.s32.totalorder 1, %s13
    %p237 = scmp.lt.s32.totalorder %s13, 9
    %p238 = pnand %p236, %p237
    %p239 = pneg %p238
    // Predicated region
    $region9: #{tpu_custom_call.1} parent=5 // pred_check
      _
    $region10: #{tpu_custom_call.1} parent=5 // pred_check_branch
      %241 = sbr.rel (%p238) target = $region12
    $region11: #{tpu_custom_call.1} parent=5 // pred_region
      %s242 = ssub.s32 %s13, 1
      // Predicated region
      $region13: #{tpu_custom_call.1} parent=11 // pred_check
        %p243 = pneg %p51
      $region14: #{tpu_custom_call.1} parent=11 // pred_check_branch
        %245 = sbr.rel (%p243) target = $region16
      $region15: #{tpu_custom_call.1} parent=11 // pred_region
        %s246 = smul.u32 32, %s22
        %p247 = scmp.lt.s32.totalorder %s246, 31
        %s248 = scalar_select %p247, %s246, 31
        %s249 = smul.addr %s248, 8
        %s250 = scalar_lea.vmem %s0, %s249
        %s251 = smul.u32 32, %s22
      $region16: #{tpu_custom_call.1} parent=11 // pred_fallthru
        _
      // Predicated region
      $region17: #{tpu_custom_call.1} parent=11 // pred_check
        %p252 = pneg %p77
      $region18: #{tpu_custom_call.1} parent=11 // pred_check_branch
        %254 = sbr.rel (%p252) target = $region20
      $region19: #{tpu_custom_call.1} parent=11 // pred_region
        %s255 = smul.u32 32, %s22
        %p256 = scmp.lt.s32.totalorder %s255, 31
        %s257 = scalar_select %p256, %s255, 31
        %s258 = smul.addr %s257, 8
        %s259 = scalar_lea.vmem %s1, %s258
        %s260 = smul.u32 32, %s22
      $region20: #{tpu_custom_call.1} parent=11 // pred_fallthru
        _
      // Predicated region
      $region21: #{tpu_custom_call.1} parent=11 // pred_check
        %p261 = pneg %p98
      $region22: #{tpu_custom_call.1} parent=11 // pred_check_branch
        %263 = sbr.rel (%p261) target = $region24
      $region23: #{tpu_custom_call.1} parent=11 // pred_region
        _
      $region24: #{tpu_custom_call.1} parent=11 // pred_fallthru
        _
    $region12: #{tpu_custom_call.1} parent=5 // pred_fallthru
      _
    %p264 = scmp.lt.s32.totalorder %s13, 8
    // Predicated region
    $region25: #{tpu_custom_call.1} parent=5 // pred_check
      %p265 = pneg %p264
    $region26: #{tpu_custom_call.1} parent=5 // pred_check_branch
      %267 = sbr.rel (%p265) target = $region28
    $region27: #{tpu_custom_call.1} parent=5 // pred_region
      // Predicated region
      $region29: #{tpu_custom_call.1} parent=27 // pred_check
        %p268 = pneg %p118
      $region30: #{tpu_custom_call.1} parent=27 // pred_check_branch
        %270 = sbr.rel (%p268) target = $region32
      $region31: #{tpu_custom_call.1} parent=27 // pred_region
        %p271 = scmp.lt.s32.totalorder %s21, 7
        %s272 = scalar_select %p271, %s21, 7
        %s273 = smul.addr %s272, 4
        %s274 = smul.addr %s273, 4
        %s275 = scalar_lea.vmem %s3, %s274
      $region32: #{tpu_custom_call.1} parent=27 // pred_fallthru
        _
      // Predicated region
      $region33: #{tpu_custom_call.1} parent=27 // pred_check
        %p276 = pneg %p144
      $region34: #{tpu_custom_call.1} parent=27 // pred_check_branch
        %278 = sbr.rel (%p276) target = $region36
      $region35: #{tpu_custom_call.1} parent=27 // pred_region
        %p279 = scmp.lt.s32.totalorder %s21, 7
        %s280 = scalar_select %p279, %s21, 7
        %s281 = scalar_lea.vmem %s4, %s280
      $region36: #{tpu_custom_call.1} parent=27 // pred_fallthru
        _
      // Predicated region
      $region37: #{tpu_custom_call.1} parent=27 // pred_check
        %p282 = pneg %p170
      $region38: #{tpu_custom_call.1} parent=27 // pred_check_branch
        %284 = sbr.rel (%p282) target = $region40
      $region39: #{tpu_custom_call.1} parent=27 // pred_region
        %p285 = scmp.lt.s32.totalorder %s21, 7
        %s286 = scalar_select %p285, %s21, 7
        %s287 = smul.addr %s286, 8
        %s288 = smul.addr %s287, 4
        %s289 = scalar_lea.vmem %s5, %s288
      $region40: #{tpu_custom_call.1} parent=27 // pred_fallthru
        _
      // Predicated region
      $region41: #{tpu_custom_call.1} parent=27 // pred_check
        %p290 = pneg %p196
      $region42: #{tpu_custom_call.1} parent=27 // pred_check_branch
        %292 = sbr.rel (%p290) target = $region44
      $region43: #{tpu_custom_call.1} parent=27 // pred_region
        %p293 = scmp.lt.s32.totalorder %s21, 7
        %s294 = scalar_select %p293, %s21, 7
        %s295 = scalar_lea.vmem %s6, %s294
      $region44: #{tpu_custom_call.1} parent=27 // pred_fallthru
        _
    $region28: #{tpu_custom_call.1} parent=5 // pred_fallthru
      _
    %p296 = scmp.le.s32.totalorder 1, %s13
    %p297 = scmp.lt.s32.totalorder %s13, 9
    %p298 = pnand %p296, %p297
    %p299 = pneg %p298
    // Predicated region
    $region45: #{tpu_custom_call.1} parent=5 // pred_check
      _
    $region46: #{tpu_custom_call.1} parent=5 // pred_check_branch
      %301 = sbr.rel (%p298) target = $region48
    $region47: #{tpu_custom_call.1} parent=5 // pred_region
      %s302 = ssub.s32 %s13, 1
      %s303 = smul.u32 32, %s22
      %p304 = scmp.lt.s32.totalorder %s303, 31
      %s305 = scalar_select %p304, %s303, 31
      %s306 = smul.addr %s305, 8
      %s307 = scalar_lea.vmem %s0, %s306
      %p308 = pneg %p51
      %p309 = pneg %p48
      %s310 = smul.u32 32, %s22
      %p311 = scmp.lt.s32.totalorder %s310, 31
      %s312 = scalar_select %p311, %s310, 31
      %s313 = smul.addr %s312, 8
      %s314 = scalar_lea.vmem %s1, %s313
      %p315 = pneg %p77
      %p316 = pneg %p74
      %p317 = pneg %p98
      %p318 = pneg %p95
      %p319 = scmp.lt.s32.totalorder %s23, 7
      %s320 = scalar_select %p319, %s23, 7
      %s321 = smul.addr %s320, 4
      %s322 = smul.addr %s321, 4
      %s323 = scalar_lea.vmem %s3, %s322
      %p324 = pneg %p124
      %p325 = pneg %p121
      %p326 = scmp.lt.s32.totalorder %s23, 7
      %s327 = scalar_select %p326, %s23, 7
      %s328 = scalar_lea.vmem %s4, %s327
      %p329 = pneg %p150
      %p330 = pneg %p147
      %p331 = scmp.lt.s32.totalorder %s23, 7
      %s332 = scalar_select %p331, %s23, 7
      %s333 = smul.addr %s332, 8
      %s334 = smul.addr %s333, 4
      %s335 = scalar_lea.vmem %s5, %s334
      %p336 = pneg %p176
      %p337 = pneg %p173
      %p338 = scmp.lt.s32.totalorder %s23, 7
      %s339 = scalar_select %p338, %s23, 7
      %s340 = scalar_lea.vmem %s6, %s339
      %p341 = pneg %p202
      %p342 = pneg %p199
      %p343 = pneg %p228
      %p344 = pneg %p225
      %s345 = smul.u32 32, %s22
      %p346 = scmp.lt.s32.totalorder %s345, 31
      %s347 = scalar_select %p346, %s345, 31
      %s348 = smul.addr %s347, 8
      %s349 = scalar_lea.vmem %s7, %s348
      %s350 = smul.u32 32, %s22
      %p351 = scmp.lt.s32.totalorder %s350, 31
      %s352 = scalar_select %p351, %s350, 31
      %s353 = smul.addr %s352, 8
      %s354 = scalar_lea.vmem %s0, %s353
      %s355 = smul.u32 32, %s22
      %s356 = smul.u32 32, %s22
      %p357 = scmp.lt.s32.totalorder %s356, 31
      %s358 = scalar_select %p357, %s356, 31
      %s359 = smul.addr %s358, 8
      %s360 = scalar_lea.vmem %s1, %s359
      %s361 = smul.u32 32, %s22
      %p362 = scmp.lt.s32.totalorder %s23, 7
      %s363 = scalar_select %p362, %s23, 7
      %s364 = smul.addr %s363, 4
      %s365 = smul.addr %s364, 4
      %s366 = scalar_lea.vmem %s3, %s365
      %p367 = scmp.lt.s32.totalorder %s23, 7
      %s368 = scalar_select %p367, %s23, 7
      %s369 = scalar_lea.vmem %s4, %s368
      %p370 = scmp.lt.s32.totalorder %s23, 7
      %s371 = scalar_select %p370, %s23, 7
      %s372 = smul.addr %s371, 8
      %s373 = smul.addr %s372, 4
      %s374 = scalar_lea.vmem %s5, %s373
      %p375 = scmp.lt.s32.totalorder %s23, 7
      %s376 = scalar_select %p375, %s23, 7
      %s377 = scalar_lea.vmem %s6, %s376
      %s378 = smul.u32 32, %s22
      %p379 = scmp.lt.s32.totalorder %s378, 31
      %s380 = scalar_select %p379, %s378, 31
      %s381 = smul.addr %s380, 8
      %s382 = scalar_lea.vmem %s7, %s381
      %s383 = smul.u32 32, %s22
      %p385 = scmp.eq.s32.totalorder %s23, 0
      // Predicated region
      $region49: #{tpu_custom_call.1} parent=47 // pred_check
        %p386 = pneg %p385
      $region50: #{tpu_custom_call.1} parent=47 // pred_check_branch
        %388 = sbr.rel (%p386) target = $region52
      $region51: #{tpu_custom_call.1} parent=47 // pred_region
        %v389 = vld [vmem:[%s354] sm:$0xff]
        %v390 = vld [vmem:[%s354 + $0x8] sm:$0xff]
        %v391 = vld [vmem:[%s354 + $0x10] sm:$0xff]
        %v392 = vld [vmem:[%s354 + $0x18] sm:$0xff]
        %v393 = vld [vmem:[%s354 + $0x20] sm:$0xff]
        %v394 = vld [vmem:[%s354 + $0x28] sm:$0xff]
        %v395 = vld [vmem:[%s354 + $0x30] sm:$0xff]
        %v396 = vld [vmem:[%s354 + $0x38] sm:$0xff]
        %v397 = vld [vmem:[%s354 + $0x40] sm:$0xff]
        %v398 = vld [vmem:[%s354 + $0x48] sm:$0xff]
        %v399 = vld [vmem:[%s354 + $0x50] sm:$0xff]
        %v400 = vld [vmem:[%s354 + $0x58] sm:$0xff]
        %v401 = vld [vmem:[%s354 + $0x60] sm:$0xff]
        %v402 = vld [vmem:[%s354 + $0x68] sm:$0xff]
        %v403 = vld [vmem:[%s354 + $0x70] sm:$0xff]
        %v404 = vld [vmem:[%s354 + $0x78] sm:$0xff]
        %v405 = vld [vmem:[%s354 + $0x80] sm:$0xff]
        %v406 = vld [vmem:[%s354 + $0x88] sm:$0xff]
        %v407 = vld [vmem:[%s354 + $0x90] sm:$0xff]
        %v408 = vld [vmem:[%s354 + $0x98] sm:$0xff]
        %v409 = vld [vmem:[%s354 + $0xa0] sm:$0xff]
        %v410 = vld [vmem:[%s354 + $0xa8] sm:$0xff]
        %v411 = vld [vmem:[%s354 + $0xb0] sm:$0xff]
        %v412 = vld [vmem:[%s354 + $0xb8] sm:$0xff]
        %v413 = vld [vmem:[%s354 + $0xc0] sm:$0xff]
        %v414 = vld [vmem:[%s354 + $0xc8] sm:$0xff]
        %v415 = vld [vmem:[%s354 + $0xd0] sm:$0xff]
        %v416 = vld [vmem:[%s354 + $0xd8] sm:$0xff]
        %v417 = vld [vmem:[%s354 + $0xe0] sm:$0xff]
        %v418 = vld [vmem:[%s354 + $0xe8] sm:$0xff]
        %v419 = vld [vmem:[%s354 + $0xf0] sm:$0xff]
        %v420 = vld [vmem:[%s354 + $0xf8] sm:$0xff]
        %v421 = vld [vmem:[%s360] sm:$0xff]
        %v422 = vld [vmem:[%s360 + $0x8] sm:$0xff]
        %v423 = vld [vmem:[%s360 + $0x10] sm:$0xff]
        %v424 = vld [vmem:[%s360 + $0x18] sm:$0xff]
        %v425 = vld [vmem:[%s360 + $0x20] sm:$0xff]
        %v426 = vld [vmem:[%s360 + $0x28] sm:$0xff]
        %v427 = vld [vmem:[%s360 + $0x30] sm:$0xff]
        %v428 = vld [vmem:[%s360 + $0x38] sm:$0xff]
        %v429 = vld [vmem:[%s360 + $0x40] sm:$0xff]
        %v430 = vld [vmem:[%s360 + $0x48] sm:$0xff]
        %v431 = vld [vmem:[%s360 + $0x50] sm:$0xff]
        %v432 = vld [vmem:[%s360 + $0x58] sm:$0xff]
        %v433 = vld [vmem:[%s360 + $0x60] sm:$0xff]
        %v434 = vld [vmem:[%s360 + $0x68] sm:$0xff]
        %v435 = vld [vmem:[%s360 + $0x70] sm:$0xff]
        %v436 = vld [vmem:[%s360 + $0x78] sm:$0xff]
        %v437 = vld [vmem:[%s360 + $0x80] sm:$0xff]
        %v438 = vld [vmem:[%s360 + $0x88] sm:$0xff]
        %v439 = vld [vmem:[%s360 + $0x90] sm:$0xff]
        %v440 = vld [vmem:[%s360 + $0x98] sm:$0xff]
        %v441 = vld [vmem:[%s360 + $0xa0] sm:$0xff]
        %v442 = vld [vmem:[%s360 + $0xa8] sm:$0xff]
        %v443 = vld [vmem:[%s360 + $0xb0] sm:$0xff]
        %v444 = vld [vmem:[%s360 + $0xb8] sm:$0xff]
        %v445 = vld [vmem:[%s360 + $0xc0] sm:$0xff]
        %v446 = vld [vmem:[%s360 + $0xc8] sm:$0xff]
        %v447 = vld [vmem:[%s360 + $0xd0] sm:$0xff]
        %v448 = vld [vmem:[%s360 + $0xd8] sm:$0xff]
        %v449 = vld [vmem:[%s360 + $0xe0] sm:$0xff]
        %v450 = vld [vmem:[%s360 + $0xe8] sm:$0xff]
        %v451 = vld [vmem:[%s360 + $0xf0] sm:$0xff]
        %v452 = vld [vmem:[%s360 + $0xf8] sm:$0xff]
        %v453 = vld [vmem:[%s2] sm:$0xff]
        %v454 = vld [vmem:[%s2 + $0x8] sm:$0xff]
        %v455 = vld [vmem:[%s2 + $0x10] sm:$0xff]
        %v456 = vld [vmem:[%s2 + $0x18] sm:$0xff]
        %vm457 = vcmask 261120
        %v459 = vsel %vm457, %v389, 0
        %v462 = vsel %vm457, %v390, 0
        %v465 = vsel %vm457, %v391, 0
        %v468 = vsel %vm457, %v392, 0
        %v471 = vsel %vm457, %v393, 0
        %v474 = vsel %vm457, %v394, 0
        %v477 = vsel %vm457, %v395, 0
        %v480 = vsel %vm457, %v396, 0
        %v483 = vsel %vm457, %v397, 0
        %v486 = vsel %vm457, %v398, 0
        %v489 = vsel %vm457, %v399, 0
        %v492 = vsel %vm457, %v400, 0
        %v495 = vsel %vm457, %v401, 0
        %v498 = vsel %vm457, %v402, 0
        %v501 = vsel %vm457, %v403, 0
        %v504 = vsel %vm457, %v404, 0
        %v507 = vsel %vm457, %v405, 0
        %v510 = vsel %vm457, %v406, 0
        %v513 = vsel %vm457, %v407, 0
        %v516 = vsel %vm457, %v408, 0
        %v519 = vsel %vm457, %v409, 0
        %v522 = vsel %vm457, %v410, 0
        %v525 = vsel %vm457, %v411, 0
        %v528 = vsel %vm457, %v412, 0
        %v531 = vsel %vm457, %v413, 0
        %v534 = vsel %vm457, %v414, 0
        %v537 = vsel %vm457, %v415, 0
        %v540 = vsel %vm457, %v416, 0
        %v543 = vsel %vm457, %v417, 0
        %v546 = vsel %vm457, %v418, 0
        %v549 = vsel %vm457, %v419, 0
        %v552 = vsel %vm457, %v420, 0
        %554 = vmatpush.msra.mxu0 0.0
        %555 = vmatpush.msra.mxu0 0.0
        %556 = vmatpush.msra.mxu0 0.0
        %557 = vmatpush.msra.mxu0 0.0
        %558 = vmatpush.msra.mxu0 0.0
        %559 = vmatpush.msra.mxu0 0.0
        %560 = vmatpush.msra.mxu0 0.0
        %561 = vmatpush.msra.mxu0 0.0
        %562 = vmatpush.msra.mxu0 0.0
        %563 = vmatpush.msra.mxu0 0.0
        %564 = vmatpush.msra.mxu0 0.0
        %565 = vmatpush.msra.mxu0 0.0
        %566 = vmatpush.msra.mxu0 %v456
        %567 = vmatpush.msra.mxu0 %v455
        %568 = vmatpush.msra.mxu0 %v454
        %569 = vmatpush.msra.mxu0 %v453
        %570 = vmatmul.f32.gmra.mxu0 %v459
        %v571 = vpop.f32.mrf.mxu0
        %v572 = vadd.f32 0.0, %v571
        %573 = vmatmul.f32.gmra.mxu0 %v462
        %v574 = vpop.f32.mrf.mxu0
        %v575 = vadd.f32 0.0, %v574
        %576 = vmatmul.f32.gmra.mxu0 %v465
        %v577 = vpop.f32.mrf.mxu0
        %v578 = vadd.f32 0.0, %v577
        %579 = vmatmul.f32.gmra.mxu0 %v468
        %v580 = vpop.f32.mrf.mxu0
        %v581 = vadd.f32 0.0, %v580
        %582 = vmatmul.f32.gmra.mxu0 %v471
        %v583 = vpop.f32.mrf.mxu0
        %v584 = vadd.f32 0.0, %v583
        %585 = vmatmul.f32.gmra.mxu0 %v474
        %v586 = vpop.f32.mrf.mxu0
        %v587 = vadd.f32 0.0, %v586
        %588 = vmatmul.f32.gmra.mxu0 %v477
        %v589 = vpop.f32.mrf.mxu0
        %v590 = vadd.f32 0.0, %v589
        %591 = vmatmul.f32.gmra.mxu0 %v480
        %v592 = vpop.f32.mrf.mxu0
        %v593 = vadd.f32 0.0, %v592
        %594 = vmatmul.f32.gmra.mxu0 %v483
        %v595 = vpop.f32.mrf.mxu0
        %v596 = vadd.f32 0.0, %v595
        %597 = vmatmul.f32.gmra.mxu0 %v486
        %v598 = vpop.f32.mrf.mxu0
        %v599 = vadd.f32 0.0, %v598
        %600 = vmatmul.f32.gmra.mxu0 %v489
        %v601 = vpop.f32.mrf.mxu0
        %v602 = vadd.f32 0.0, %v601
        %603 = vmatmul.f32.gmra.mxu0 %v492
        %v604 = vpop.f32.mrf.mxu0
        %v605 = vadd.f32 0.0, %v604
        %606 = vmatmul.f32.gmra.mxu0 %v495
        %v607 = vpop.f32.mrf.mxu0
        %v608 = vadd.f32 0.0, %v607
        %609 = vmatmul.f32.gmra.mxu0 %v498
        %v610 = vpop.f32.mrf.mxu0
        %v611 = vadd.f32 0.0, %v610
        %612 = vmatmul.f32.gmra.mxu0 %v501
        %v613 = vpop.f32.mrf.mxu0
        %v614 = vadd.f32 0.0, %v613
        %615 = vmatmul.f32.gmra.mxu0 %v504
        %v616 = vpop.f32.mrf.mxu0
        %v617 = vadd.f32 0.0, %v616
        %618 = vmatmul.f32.gmra.mxu0 %v507
        %v619 = vpop.f32.mrf.mxu0
        %v620 = vadd.f32 0.0, %v619
        %621 = vmatmul.f32.gmra.mxu0 %v510
        %v622 = vpop.f32.mrf.mxu0
        %v623 = vadd.f32 0.0, %v622
        %624 = vmatmul.f32.gmra.mxu0 %v513
        %v625 = vpop.f32.mrf.mxu0
        %v626 = vadd.f32 0.0, %v625
        %627 = vmatmul.f32.gmra.mxu0 %v516
        %v628 = vpop.f32.mrf.mxu0
        %v629 = vadd.f32 0.0, %v628
        %630 = vmatmul.f32.gmra.mxu0 %v519
        %v631 = vpop.f32.mrf.mxu0
        %v632 = vadd.f32 0.0, %v631
        %633 = vmatmul.f32.gmra.mxu0 %v522
        %v634 = vpop.f32.mrf.mxu0
        %v635 = vadd.f32 0.0, %v634
        %636 = vmatmul.f32.gmra.mxu0 %v525
        %v637 = vpop.f32.mrf.mxu0
        %v638 = vadd.f32 0.0, %v637
        %639 = vmatmul.f32.gmra.mxu0 %v528
        %v640 = vpop.f32.mrf.mxu0
        %v641 = vadd.f32 0.0, %v640
        %642 = vmatmul.f32.gmra.mxu0 %v531
        %v643 = vpop.f32.mrf.mxu0
        %v644 = vadd.f32 0.0, %v643
        %645 = vmatmul.f32.gmra.mxu0 %v534
        %v646 = vpop.f32.mrf.mxu0
        %v647 = vadd.f32 0.0, %v646
        %648 = vmatmul.f32.gmra.mxu0 %v537
        %v649 = vpop.f32.mrf.mxu0
        %v650 = vadd.f32 0.0, %v649
        %651 = vmatmul.f32.gmra.mxu0 %v540
        %v652 = vpop.f32.mrf.mxu0
        %v653 = vadd.f32 0.0, %v652
        %654 = vmatmul.f32.gmra.mxu0 %v543
        %v655 = vpop.f32.mrf.mxu0
        %v656 = vadd.f32 0.0, %v655
        %657 = vmatmul.f32.gmra.mxu0 %v546
        %v658 = vpop.f32.mrf.mxu0
        %v659 = vadd.f32 0.0, %v658
        %660 = vmatmul.f32.gmra.mxu0 %v549
        %v661 = vpop.f32.mrf.mxu0
        %v662 = vadd.f32 0.0, %v661
        %663 = vmatmul.f32.gmra.mxu0 %v552
        %v664 = vpop.f32.mrf.mxu0
        %v665 = vadd.f32 0.0, %v664
        %666 = vdwg.mxu0
        %vm667 = vcmask 64512
        %v668 = vsel %vm667, %v572, -inf
        %669 = vmax.xlane.f32.xlu0 %v668
        %v670 = vpop.xlane.xlu0 %669
        %v671 = vsel %vm667, %v575, -inf
        %672 = vmax.xlane.f32.xlu0 %v671
        %v673 = vpop.xlane.xlu0 %672
        %v674 = vsel %vm667, %v578, -inf
        %675 = vmax.xlane.f32.xlu0 %v674
        %v676 = vpop.xlane.xlu0 %675
        %v677 = vsel %vm667, %v581, -inf
        %678 = vmax.xlane.f32.xlu0 %v677
        %v679 = vpop.xlane.xlu0 %678
        %v680 = vsel %vm667, %v584, -inf
        %681 = vmax.xlane.f32.xlu0 %v680
        %v682 = vpop.xlane.xlu0 %681
        %v683 = vsel %vm667, %v587, -inf
        %684 = vmax.xlane.f32.xlu0 %v683
        %v685 = vpop.xlane.xlu0 %684
        %v686 = vsel %vm667, %v590, -inf
        %687 = vmax.xlane.f32.xlu0 %v686
        %v688 = vpop.xlane.xlu0 %687
        %v689 = vsel %vm667, %v593, -inf
        %690 = vmax.xlane.f32.xlu0 %v689
        %v691 = vpop.xlane.xlu0 %690
        %v692 = vsel %vm667, %v596, -inf
        %693 = vmax.xlane.f32.xlu0 %v692
        %v694 = vpop.xlane.xlu0 %693
        %v695 = vsel %vm667, %v599, -inf
        %696 = vmax.xlane.f32.xlu0 %v695
        %v697 = vpop.xlane.xlu0 %696
        %v698 = vsel %vm667, %v602, -inf
        %699 = vmax.xlane.f32.xlu0 %v698
        %v700 = vpop.xlane.xlu0 %699
        %v701 = vsel %vm667, %v605, -inf
        %702 = vmax.xlane.f32.xlu0 %v701
        %v703 = vpop.xlane.xlu0 %702
        %v704 = vsel %vm667, %v608, -inf
        %705 = vmax.xlane.f32.xlu0 %v704
        %v706 = vpop.xlane.xlu0 %705
        %v707 = vsel %vm667, %v611, -inf
        %708 = vmax.xlane.f32.xlu0 %v707
        %v709 = vpop.xlane.xlu0 %708
        %v710 = vsel %vm667, %v614, -inf
        %711 = vmax.xlane.f32.xlu0 %v710
        %v712 = vpop.xlane.xlu0 %711
        %v713 = vsel %vm667, %v617, -inf
        %714 = vmax.xlane.f32.xlu0 %v713
        %v715 = vpop.xlane.xlu0 %714
        %v716 = vsel %vm667, %v620, -inf
        %717 = vmax.xlane.f32.xlu0 %v716
        %v718 = vpop.xlane.xlu0 %717
        %v719 = vsel %vm667, %v623, -inf
        %720 = vmax.xlane.f32.xlu0 %v719
        %v721 = vpop.xlane.xlu0 %720
        %v722 = vsel %vm667, %v626, -inf
        %723 = vmax.xlane.f32.xlu0 %v722
        %v724 = vpop.xlane.xlu0 %723
        %v725 = vsel %vm667, %v629, -inf
        %726 = vmax.xlane.f32.xlu0 %v725
        %v727 = vpop.xlane.xlu0 %726
        %v728 = vsel %vm667, %v632, -inf
        %729 = vmax.xlane.f32.xlu0 %v728
        %v730 = vpop.xlane.xlu0 %729
        %v731 = vsel %vm667, %v635, -inf
        %732 = vmax.xlane.f32.xlu0 %v731
        %v733 = vpop.xlane.xlu0 %732
        %v734 = vsel %vm667, %v638, -inf
        %735 = vmax.xlane.f32.xlu0 %v734
        %v736 = vpop.xlane.xlu0 %735
        %v737 = vsel %vm667, %v641, -inf
        %738 = vmax.xlane.f32.xlu0 %v737
        %v739 = vpop.xlane.xlu0 %738
        %v740 = vsel %vm667, %v644, -inf
        %741 = vmax.xlane.f32.xlu0 %v740
        %v742 = vpop.xlane.xlu0 %741
        %v743 = vsel %vm667, %v647, -inf
        %744 = vmax.xlane.f32.xlu0 %v743
        %v745 = vpop.xlane.xlu0 %744
        %v746 = vsel %vm667, %v650, -inf
        %747 = vmax.xlane.f32.xlu0 %v746
        %v748 = vpop.xlane.xlu0 %747
        %v749 = vsel %vm667, %v653, -inf
        %750 = vmax.xlane.f32.xlu0 %v749
        %v751 = vpop.xlane.xlu0 %750
        %v752 = vsel %vm667, %v656, -inf
        %753 = vmax.xlane.f32.xlu0 %v752
        %v754 = vpop.xlane.xlu0 %753
        %v755 = vsel %vm667, %v659, -inf
        %756 = vmax.xlane.f32.xlu0 %v755
        %v757 = vpop.xlane.xlu0 %756
        %v758 = vsel %vm667, %v662, -inf
        %759 = vmax.xlane.f32.xlu0 %v758
        %v760 = vpop.xlane.xlu0 %759
        %v761 = vsel %vm667, %v665, -inf
        %762 = vmax.xlane.f32.xlu0 %v761
        %v763 = vpop.xlane.xlu0 %762
        %vm764 = vcmp.ge.f32.partialorder %v572, %v670
        %vm765 = vcmp.ge.f32.partialorder %v575, %v673
        %vm766 = vcmp.ge.f32.partialorder %v578, %v676
        %vm767 = vcmp.ge.f32.partialorder %v581, %v679
        %vm768 = vcmp.ge.f32.partialorder %v584, %v682
        %vm769 = vcmp.ge.f32.partialorder %v587, %v685
        %vm770 = vcmp.ge.f32.partialorder %v590, %v688
        %vm771 = vcmp.ge.f32.partialorder %v593, %v691
        %vm772 = vcmp.ge.f32.partialorder %v596, %v694
        %vm773 = vcmp.ge.f32.partialorder %v599, %v697
        %vm774 = vcmp.ge.f32.partialorder %v602, %v700
        %vm775 = vcmp.ge.f32.partialorder %v605, %v703
        %vm776 = vcmp.ge.f32.partialorder %v608, %v706
        %vm777 = vcmp.ge.f32.partialorder %v611, %v709
        %vm778 = vcmp.ge.f32.partialorder %v614, %v712
        %vm779 = vcmp.ge.f32.partialorder %v617, %v715
        %vm780 = vcmp.ge.f32.partialorder %v620, %v718
        %vm781 = vcmp.ge.f32.partialorder %v623, %v721
        %vm782 = vcmp.ge.f32.partialorder %v626, %v724
        %vm783 = vcmp.ge.f32.partialorder %v629, %v727
        %vm784 = vcmp.ge.f32.partialorder %v632, %v730
        %vm785 = vcmp.ge.f32.partialorder %v635, %v733
        %vm786 = vcmp.ge.f32.partialorder %v638, %v736
        %vm787 = vcmp.ge.f32.partialorder %v641, %v739
        %vm788 = vcmp.ge.f32.partialorder %v644, %v742
        %vm789 = vcmp.ge.f32.partialorder %v647, %v745
        %vm790 = vcmp.ge.f32.partialorder %v650, %v748
        %vm791 = vcmp.ge.f32.partialorder %v653, %v751
        %vm792 = vcmp.ge.f32.partialorder %v656, %v754
        %vm793 = vcmp.ge.f32.partialorder %v659, %v757
        %vm794 = vcmp.ge.f32.partialorder %v662, %v760
        %vm795 = vcmp.ge.f32.partialorder %v665, %v763
        %v796 = vsel %vm764, -inf, %v572
        %v797 = vsel %vm765, -inf, %v575
        %v798 = vsel %vm766, -inf, %v578
        %v799 = vsel %vm767, -inf, %v581
        %v800 = vsel %vm768, -inf, %v584
        %v801 = vsel %vm769, -inf, %v587
        %v802 = vsel %vm770, -inf, %v590
        %v803 = vsel %vm771, -inf, %v593
        %v804 = vsel %vm772, -inf, %v596
        %v805 = vsel %vm773, -inf, %v599
        %v806 = vsel %vm774, -inf, %v602
        %v807 = vsel %vm775, -inf, %v605
        %v808 = vsel %vm776, -inf, %v608
        %v809 = vsel %vm777, -inf, %v611
        %v810 = vsel %vm778, -inf, %v614
        %v811 = vsel %vm779, -inf, %v617
        %v812 = vsel %vm780, -inf, %v620
        %v813 = vsel %vm781, -inf, %v623
        %v814 = vsel %vm782, -inf, %v626
        %v815 = vsel %vm783, -inf, %v629
        %v816 = vsel %vm784, -inf, %v632
        %v817 = vsel %vm785, -inf, %v635
        %v818 = vsel %vm786, -inf, %v638
        %v819 = vsel %vm787, -inf, %v641
        %v820 = vsel %vm788, -inf, %v644
        %v821 = vsel %vm789, -inf, %v647
        %v822 = vsel %vm790, -inf, %v650
        %v823 = vsel %vm791, -inf, %v653
        %v824 = vsel %vm792, -inf, %v656
        %v825 = vsel %vm793, -inf, %v659
        %v826 = vsel %vm794, -inf, %v662
        %v827 = vsel %vm795, -inf, %v665
        %v828 = vsel %vm667, %v796, -inf
        %829 = vmax.xlane.f32.xlu0 %v828
        %v830 = vpop.xlane.xlu0 %829
        %v831 = vsel %vm667, %v797, -inf
        %832 = vmax.xlane.f32.xlu0 %v831
        %v833 = vpop.xlane.xlu0 %832
        %v834 = vsel %vm667, %v798, -inf
        %835 = vmax.xlane.f32.xlu0 %v834
        %v836 = vpop.xlane.xlu0 %835
        %v837 = vsel %vm667, %v799, -inf
        %838 = vmax.xlane.f32.xlu0 %v837
        %v839 = vpop.xlane.xlu0 %838
        %v840 = vsel %vm667, %v800, -inf
        %841 = vmax.xlane.f32.xlu0 %v840
        %v842 = vpop.xlane.xlu0 %841
        %v843 = vsel %vm667, %v801, -inf
        %844 = vmax.xlane.f32.xlu0 %v843
        %v845 = vpop.xlane.xlu0 %844
        %v846 = vsel %vm667, %v802, -inf
        %847 = vmax.xlane.f32.xlu0 %v846
        %v848 = vpop.xlane.xlu0 %847
        %v849 = vsel %vm667, %v803, -inf
        %850 = vmax.xlane.f32.xlu0 %v849
        %v851 = vpop.xlane.xlu0 %850
        %v852 = vsel %vm667, %v804, -inf
        %853 = vmax.xlane.f32.xlu0 %v852
        %v854 = vpop.xlane.xlu0 %853
        %v855 = vsel %vm667, %v805, -inf
        %856 = vmax.xlane.f32.xlu0 %v855
        %v857 = vpop.xlane.xlu0 %856
        %v858 = vsel %vm667, %v806, -inf
        %859 = vmax.xlane.f32.xlu0 %v858
        %v860 = vpop.xlane.xlu0 %859
        %v861 = vsel %vm667, %v807, -inf
        %862 = vmax.xlane.f32.xlu0 %v861
        %v863 = vpop.xlane.xlu0 %862
        %v864 = vsel %vm667, %v808, -inf
        %865 = vmax.xlane.f32.xlu0 %v864
        %v866 = vpop.xlane.xlu0 %865
        %v867 = vsel %vm667, %v809, -inf
        %868 = vmax.xlane.f32.xlu0 %v867
        %v869 = vpop.xlane.xlu0 %868
        %v870 = vsel %vm667, %v810, -inf
        %871 = vmax.xlane.f32.xlu0 %v870
        %v872 = vpop.xlane.xlu0 %871
        %v873 = vsel %vm667, %v811, -inf
        %874 = vmax.xlane.f32.xlu0 %v873
        %v875 = vpop.xlane.xlu0 %874
        %v876 = vsel %vm667, %v812, -inf
        %877 = vmax.xlane.f32.xlu0 %v876
        %v878 = vpop.xlane.xlu0 %877
        %v879 = vsel %vm667, %v813, -inf
        %880 = vmax.xlane.f32.xlu0 %v879
        %v881 = vpop.xlane.xlu0 %880
        %v882 = vsel %vm667, %v814, -inf
        %883 = vmax.xlane.f32.xlu0 %v882
        %v884 = vpop.xlane.xlu0 %883
        %v885 = vsel %vm667, %v815, -inf
        %886 = vmax.xlane.f32.xlu0 %v885
        %v887 = vpop.xlane.xlu0 %886
        %v888 = vsel %vm667, %v816, -inf
        %889 = vmax.xlane.f32.xlu0 %v888
        %v890 = vpop.xlane.xlu0 %889
        %v891 = vsel %vm667, %v817, -inf
        %892 = vmax.xlane.f32.xlu0 %v891
        %v893 = vpop.xlane.xlu0 %892
        %v894 = vsel %vm667, %v818, -inf
        %895 = vmax.xlane.f32.xlu0 %v894
        %v896 = vpop.xlane.xlu0 %895
        %v897 = vsel %vm667, %v819, -inf
        %898 = vmax.xlane.f32.xlu0 %v897
        %v899 = vpop.xlane.xlu0 %898
        %v900 = vsel %vm667, %v820, -inf
        %901 = vmax.xlane.f32.xlu0 %v900
        %v902 = vpop.xlane.xlu0 %901
        %v903 = vsel %vm667, %v821, -inf
        %904 = vmax.xlane.f32.xlu0 %v903
        %v905 = vpop.xlane.xlu0 %904
        %v906 = vsel %vm667, %v822, -inf
        %907 = vmax.xlane.f32.xlu0 %v906
        %v908 = vpop.xlane.xlu0 %907
        %v909 = vsel %vm667, %v823, -inf
        %910 = vmax.xlane.f32.xlu0 %v909
        %v911 = vpop.xlane.xlu0 %910
        %v912 = vsel %vm667, %v824, -inf
        %913 = vmax.xlane.f32.xlu0 %v912
        %v914 = vpop.xlane.xlu0 %913
        %v915 = vsel %vm667, %v825, -inf
        %916 = vmax.xlane.f32.xlu0 %v915
        %v917 = vpop.xlane.xlu0 %916
        %v918 = vsel %vm667, %v826, -inf
        %919 = vmax.xlane.f32.xlu0 %v918
        %v920 = vpop.xlane.xlu0 %919
        %v921 = vsel %vm667, %v827, -inf
        %922 = vmax.xlane.f32.xlu0 %v921
        %v923 = vpop.xlane.xlu0 %922
        %vm924 = vcmp.ge.f32.partialorder %v796, %v830
        %vm925 = vcmp.ge.f32.partialorder %v797, %v833
        %vm926 = vcmp.ge.f32.partialorder %v798, %v836
        %vm927 = vcmp.ge.f32.partialorder %v799, %v839
        %vm928 = vcmp.ge.f32.partialorder %v800, %v842
        %vm929 = vcmp.ge.f32.partialorder %v801, %v845
        %vm930 = vcmp.ge.f32.partialorder %v802, %v848
        %vm931 = vcmp.ge.f32.partialorder %v803, %v851
        %vm932 = vcmp.ge.f32.partialorder %v804, %v854
        %vm933 = vcmp.ge.f32.partialorder %v805, %v857
        %vm934 = vcmp.ge.f32.partialorder %v806, %v860
        %vm935 = vcmp.ge.f32.partialorder %v807, %v863
        %vm936 = vcmp.ge.f32.partialorder %v808, %v866
        %vm937 = vcmp.ge.f32.partialorder %v809, %v869
        %vm938 = vcmp.ge.f32.partialorder %v810, %v872
        %vm939 = vcmp.ge.f32.partialorder %v811, %v875
        %vm940 = vcmp.ge.f32.partialorder %v812, %v878
        %vm941 = vcmp.ge.f32.partialorder %v813, %v881
        %vm942 = vcmp.ge.f32.partialorder %v814, %v884
        %vm943 = vcmp.ge.f32.partialorder %v815, %v887
        %vm944 = vcmp.ge.f32.partialorder %v816, %v890
        %vm945 = vcmp.ge.f32.partialorder %v817, %v893
        %vm946 = vcmp.ge.f32.partialorder %v818, %v896
        %vm947 = vcmp.ge.f32.partialorder %v819, %v899
        %vm948 = vcmp.ge.f32.partialorder %v820, %v902
        %vm949 = vcmp.ge.f32.partialorder %v821, %v905
        %vm950 = vcmp.ge.f32.partialorder %v822, %v908
        %vm951 = vcmp.ge.f32.partialorder %v823, %v911
        %vm952 = vcmp.ge.f32.partialorder %v824, %v914
        %vm953 = vcmp.ge.f32.partialorder %v825, %v917
        %vm954 = vcmp.ge.f32.partialorder %v826, %v920
        %vm955 = vcmp.ge.f32.partialorder %v827, %v923
        %v956 = vsel %vm924, -inf, %v796
        %v957 = vsel %vm925, -inf, %v797
        %v958 = vsel %vm926, -inf, %v798
        %v959 = vsel %vm927, -inf, %v799
        %v960 = vsel %vm928, -inf, %v800
        %v961 = vsel %vm929, -inf, %v801
        %v962 = vsel %vm930, -inf, %v802
        %v963 = vsel %vm931, -inf, %v803
        %v964 = vsel %vm932, -inf, %v804
        %v965 = vsel %vm933, -inf, %v805
        %v966 = vsel %vm934, -inf, %v806
        %v967 = vsel %vm935, -inf, %v807
        %v968 = vsel %vm936, -inf, %v808
        %v969 = vsel %vm937, -inf, %v809
        %v970 = vsel %vm938, -inf, %v810
        %v971 = vsel %vm939, -inf, %v811
        %v972 = vsel %vm940, -inf, %v812
        %v973 = vsel %vm941, -inf, %v813
        %v974 = vsel %vm942, -inf, %v814
        %v975 = vsel %vm943, -inf, %v815
        %v976 = vsel %vm944, -inf, %v816
        %v977 = vsel %vm945, -inf, %v817
        %v978 = vsel %vm946, -inf, %v818
        %v979 = vsel %vm947, -inf, %v819
        %v980 = vsel %vm948, -inf, %v820
        %v981 = vsel %vm949, -inf, %v821
        %v982 = vsel %vm950, -inf, %v822
        %v983 = vsel %vm951, -inf, %v823
        %v984 = vsel %vm952, -inf, %v824
        %v985 = vsel %vm953, -inf, %v825
        %v986 = vsel %vm954, -inf, %v826
        %v987 = vsel %vm955, -inf, %v827
        %v988 = vsel %vm667, %v956, -inf
        %989 = vmax.xlane.f32.xlu0 %v988
        %v990 = vpop.xlane.xlu0 %989
        %v991 = vsel %vm667, %v957, -inf
        %992 = vmax.xlane.f32.xlu0 %v991
        %v993 = vpop.xlane.xlu0 %992
        %v994 = vsel %vm667, %v958, -inf
        %995 = vmax.xlane.f32.xlu0 %v994
        %v996 = vpop.xlane.xlu0 %995
        %v997 = vsel %vm667, %v959, -inf
        %998 = vmax.xlane.f32.xlu0 %v997
        %v999 = vpop.xlane.xlu0 %998
        %v1000 = vsel %vm667, %v960, -inf
        %1001 = vmax.xlane.f32.xlu0 %v1000
        %v1002 = vpop.xlane.xlu0 %1001
        %v1003 = vsel %vm667, %v961, -inf
        %1004 = vmax.xlane.f32.xlu0 %v1003
        %v1005 = vpop.xlane.xlu0 %1004
        %v1006 = vsel %vm667, %v962, -inf
        %1007 = vmax.xlane.f32.xlu0 %v1006
        %v1008 = vpop.xlane.xlu0 %1007
        %v1009 = vsel %vm667, %v963, -inf
        %1010 = vmax.xlane.f32.xlu0 %v1009
        %v1011 = vpop.xlane.xlu0 %1010
        %v1012 = vsel %vm667, %v964, -inf
        %1013 = vmax.xlane.f32.xlu0 %v1012
        %v1014 = vpop.xlane.xlu0 %1013
        %v1015 = vsel %vm667, %v965, -inf
        %1016 = vmax.xlane.f32.xlu0 %v1015
        %v1017 = vpop.xlane.xlu0 %1016
        %v1018 = vsel %vm667, %v966, -inf
        %1019 = vmax.xlane.f32.xlu0 %v1018
        %v1020 = vpop.xlane.xlu0 %1019
        %v1021 = vsel %vm667, %v967, -inf
        %1022 = vmax.xlane.f32.xlu0 %v1021
        %v1023 = vpop.xlane.xlu0 %1022
        %v1024 = vsel %vm667, %v968, -inf
        %1025 = vmax.xlane.f32.xlu0 %v1024
        %v1026 = vpop.xlane.xlu0 %1025
        %v1027 = vsel %vm667, %v969, -inf
        %1028 = vmax.xlane.f32.xlu0 %v1027
        %v1029 = vpop.xlane.xlu0 %1028
        %v1030 = vsel %vm667, %v970, -inf
        %1031 = vmax.xlane.f32.xlu0 %v1030
        %v1032 = vpop.xlane.xlu0 %1031
        %v1033 = vsel %vm667, %v971, -inf
        %1034 = vmax.xlane.f32.xlu0 %v1033
        %v1035 = vpop.xlane.xlu0 %1034
        %v1036 = vsel %vm667, %v972, -inf
        %1037 = vmax.xlane.f32.xlu0 %v1036
        %v1038 = vpop.xlane.xlu0 %1037
        %v1039 = vsel %vm667, %v973, -inf
        %1040 = vmax.xlane.f32.xlu0 %v1039
        %v1041 = vpop.xlane.xlu0 %1040
        %v1042 = vsel %vm667, %v974, -inf
        %1043 = vmax.xlane.f32.xlu0 %v1042
        %v1044 = vpop.xlane.xlu0 %1043
        %v1045 = vsel %vm667, %v975, -inf
        %1046 = vmax.xlane.f32.xlu0 %v1045
        %v1047 = vpop.xlane.xlu0 %1046
        %v1048 = vsel %vm667, %v976, -inf
        %1049 = vmax.xlane.f32.xlu0 %v1048
        %v1050 = vpop.xlane.xlu0 %1049
        %v1051 = vsel %vm667, %v977, -inf
        %1052 = vmax.xlane.f32.xlu0 %v1051
        %v1053 = vpop.xlane.xlu0 %1052
        %v1054 = vsel %vm667, %v978, -inf
        %1055 = vmax.xlane.f32.xlu0 %v1054
        %v1056 = vpop.xlane.xlu0 %1055
        %v1057 = vsel %vm667, %v979, -inf
        %1058 = vmax.xlane.f32.xlu0 %v1057
        %v1059 = vpop.xlane.xlu0 %1058
        %v1060 = vsel %vm667, %v980, -inf
        %1061 = vmax.xlane.f32.xlu0 %v1060
        %v1062 = vpop.xlane.xlu0 %1061
        %v1063 = vsel %vm667, %v981, -inf
        %1064 = vmax.xlane.f32.xlu0 %v1063
        %v1065 = vpop.xlane.xlu0 %1064
        %v1066 = vsel %vm667, %v982, -inf
        %1067 = vmax.xlane.f32.xlu0 %v1066
        %v1068 = vpop.xlane.xlu0 %1067
        %v1069 = vsel %vm667, %v983, -inf
        %1070 = vmax.xlane.f32.xlu0 %v1069
        %v1071 = vpop.xlane.xlu0 %1070
        %v1072 = vsel %vm667, %v984, -inf
        %1073 = vmax.xlane.f32.xlu0 %v1072
        %v1074 = vpop.xlane.xlu0 %1073
        %v1075 = vsel %vm667, %v985, -inf
        %1076 = vmax.xlane.f32.xlu0 %v1075
        %v1077 = vpop.xlane.xlu0 %1076
        %v1078 = vsel %vm667, %v986, -inf
        %1079 = vmax.xlane.f32.xlu0 %v1078
        %v1080 = vpop.xlane.xlu0 %1079
        %v1081 = vsel %vm667, %v987, -inf
        %1082 = vmax.xlane.f32.xlu0 %v1081
        %v1083 = vpop.xlane.xlu0 %1082
        %vm1084 = vcmp.ge.f32.partialorder %v956, %v990
        %vm1085 = vcmp.ge.f32.partialorder %v957, %v993
        %vm1086 = vcmp.ge.f32.partialorder %v958, %v996
        %vm1087 = vcmp.ge.f32.partialorder %v959, %v999
        %vm1088 = vcmp.ge.f32.partialorder %v960, %v1002
        %vm1089 = vcmp.ge.f32.partialorder %v961, %v1005
        %vm1090 = vcmp.ge.f32.partialorder %v962, %v1008
        %vm1091 = vcmp.ge.f32.partialorder %v963, %v1011
        %vm1092 = vcmp.ge.f32.partialorder %v964, %v1014
        %vm1093 = vcmp.ge.f32.partialorder %v965, %v1017
        %vm1094 = vcmp.ge.f32.partialorder %v966, %v1020
        %vm1095 = vcmp.ge.f32.partialorder %v967, %v1023
        %vm1096 = vcmp.ge.f32.partialorder %v968, %v1026
        %vm1097 = vcmp.ge.f32.partialorder %v969, %v1029
        %vm1098 = vcmp.ge.f32.partialorder %v970, %v1032
        %vm1099 = vcmp.ge.f32.partialorder %v971, %v1035
        %vm1100 = vcmp.ge.f32.partialorder %v972, %v1038
        %vm1101 = vcmp.ge.f32.partialorder %v973, %v1041
        %vm1102 = vcmp.ge.f32.partialorder %v974, %v1044
        %vm1103 = vcmp.ge.f32.partialorder %v975, %v1047
        %vm1104 = vcmp.ge.f32.partialorder %v976, %v1050
        %vm1105 = vcmp.ge.f32.partialorder %v977, %v1053
        %vm1106 = vcmp.ge.f32.partialorder %v978, %v1056
        %vm1107 = vcmp.ge.f32.partialorder %v979, %v1059
        %vm1108 = vcmp.ge.f32.partialorder %v980, %v1062
        %vm1109 = vcmp.ge.f32.partialorder %v981, %v1065
        %vm1110 = vcmp.ge.f32.partialorder %v982, %v1068
        %vm1111 = vcmp.ge.f32.partialorder %v983, %v1071
        %vm1112 = vcmp.ge.f32.partialorder %v984, %v1074
        %vm1113 = vcmp.ge.f32.partialorder %v985, %v1077
        %vm1114 = vcmp.ge.f32.partialorder %v986, %v1080
        %vm1115 = vcmp.ge.f32.partialorder %v987, %v1083
        %v1116 = vsel %vm1084, -inf, %v956
        %v1117 = vsel %vm1085, -inf, %v957
        %v1118 = vsel %vm1086, -inf, %v958
        %v1119 = vsel %vm1087, -inf, %v959
        %v1120 = vsel %vm1088, -inf, %v960
        %v1121 = vsel %vm1089, -inf, %v961
        %v1122 = vsel %vm1090, -inf, %v962
        %v1123 = vsel %vm1091, -inf, %v963
        %v1124 = vsel %vm1092, -inf, %v964
        %v1125 = vsel %vm1093, -inf, %v965
        %v1126 = vsel %vm1094, -inf, %v966
        %v1127 = vsel %vm1095, -inf, %v967
        %v1128 = vsel %vm1096, -inf, %v968
        %v1129 = vsel %vm1097, -inf, %v969
        %v1130 = vsel %vm1098, -inf, %v970
        %v1131 = vsel %vm1099, -inf, %v971
        %v1132 = vsel %vm1100, -inf, %v972
        %v1133 = vsel %vm1101, -inf, %v973
        %v1134 = vsel %vm1102, -inf, %v974
        %v1135 = vsel %vm1103, -inf, %v975
        %v1136 = vsel %vm1104, -inf, %v976
        %v1137 = vsel %vm1105, -inf, %v977
        %v1138 = vsel %vm1106, -inf, %v978
        %v1139 = vsel %vm1107, -inf, %v979
        %v1140 = vsel %vm1108, -inf, %v980
        %v1141 = vsel %vm1109, -inf, %v981
        %v1142 = vsel %vm1110, -inf, %v982
        %v1143 = vsel %vm1111, -inf, %v983
        %v1144 = vsel %vm1112, -inf, %v984
        %v1145 = vsel %vm1113, -inf, %v985
        %v1146 = vsel %vm1114, -inf, %v986
        %v1147 = vsel %vm1115, -inf, %v987
        %v1148 = vsel %vm667, %v1116, -inf
        %1149 = vmax.xlane.f32.xlu0 %v1148
        %v1150 = vpop.xlane.xlu0 %1149
        %v1151 = vsel %vm667, %v1117, -inf
        %1152 = vmax.xlane.f32.xlu0 %v1151
        %v1153 = vpop.xlane.xlu0 %1152
        %v1154 = vsel %vm667, %v1118, -inf
        %1155 = vmax.xlane.f32.xlu0 %v1154
        %v1156 = vpop.xlane.xlu0 %1155
        %v1157 = vsel %vm667, %v1119, -inf
        %1158 = vmax.xlane.f32.xlu0 %v1157
        %v1159 = vpop.xlane.xlu0 %1158
        %v1160 = vsel %vm667, %v1120, -inf
        %1161 = vmax.xlane.f32.xlu0 %v1160
        %v1162 = vpop.xlane.xlu0 %1161
        %v1163 = vsel %vm667, %v1121, -inf
        %1164 = vmax.xlane.f32.xlu0 %v1163
        %v1165 = vpop.xlane.xlu0 %1164
        %v1166 = vsel %vm667, %v1122, -inf
        %1167 = vmax.xlane.f32.xlu0 %v1166
        %v1168 = vpop.xlane.xlu0 %1167
        %v1169 = vsel %vm667, %v1123, -inf
        %1170 = vmax.xlane.f32.xlu0 %v1169
        %v1171 = vpop.xlane.xlu0 %1170
        %v1172 = vsel %vm667, %v1124, -inf
        %1173 = vmax.xlane.f32.xlu0 %v1172
        %v1174 = vpop.xlane.xlu0 %1173
        %v1175 = vsel %vm667, %v1125, -inf
        %1176 = vmax.xlane.f32.xlu0 %v1175
        %v1177 = vpop.xlane.xlu0 %1176
        %v1178 = vsel %vm667, %v1126, -inf
        %1179 = vmax.xlane.f32.xlu0 %v1178
        %v1180 = vpop.xlane.xlu0 %1179
        %v1181 = vsel %vm667, %v1127, -inf
        %1182 = vmax.xlane.f32.xlu0 %v1181
        %v1183 = vpop.xlane.xlu0 %1182
        %v1184 = vsel %vm667, %v1128, -inf
        %1185 = vmax.xlane.f32.xlu0 %v1184
        %v1186 = vpop.xlane.xlu0 %1185
        %v1187 = vsel %vm667, %v1129, -inf
        %1188 = vmax.xlane.f32.xlu0 %v1187
        %v1189 = vpop.xlane.xlu0 %1188
        %v1190 = vsel %vm667, %v1130, -inf
        %1191 = vmax.xlane.f32.xlu0 %v1190
        %v1192 = vpop.xlane.xlu0 %1191
        %v1193 = vsel %vm667, %v1131, -inf
        %1194 = vmax.xlane.f32.xlu0 %v1193
        %v1195 = vpop.xlane.xlu0 %1194
        %v1196 = vsel %vm667, %v1132, -inf
        %1197 = vmax.xlane.f32.xlu0 %v1196
        %v1198 = vpop.xlane.xlu0 %1197
        %v1199 = vsel %vm667, %v1133, -inf
        %1200 = vmax.xlane.f32.xlu0 %v1199
        %v1201 = vpop.xlane.xlu0 %1200
        %v1202 = vsel %vm667, %v1134, -inf
        %1203 = vmax.xlane.f32.xlu0 %v1202
        %v1204 = vpop.xlane.xlu0 %1203
        %v1205 = vsel %vm667, %v1135, -inf
        %1206 = vmax.xlane.f32.xlu0 %v1205
        %v1207 = vpop.xlane.xlu0 %1206
        %v1208 = vsel %vm667, %v1136, -inf
        %1209 = vmax.xlane.f32.xlu0 %v1208
        %v1210 = vpop.xlane.xlu0 %1209
        %v1211 = vsel %vm667, %v1137, -inf
        %1212 = vmax.xlane.f32.xlu0 %v1211
        %v1213 = vpop.xlane.xlu0 %1212
        %v1214 = vsel %vm667, %v1138, -inf
        %1215 = vmax.xlane.f32.xlu0 %v1214
        %v1216 = vpop.xlane.xlu0 %1215
        %v1217 = vsel %vm667, %v1139, -inf
        %1218 = vmax.xlane.f32.xlu0 %v1217
        %v1219 = vpop.xlane.xlu0 %1218
        %v1220 = vsel %vm667, %v1140, -inf
        %1221 = vmax.xlane.f32.xlu0 %v1220
        %v1222 = vpop.xlane.xlu0 %1221
        %v1223 = vsel %vm667, %v1141, -inf
        %1224 = vmax.xlane.f32.xlu0 %v1223
        %v1225 = vpop.xlane.xlu0 %1224
        %v1226 = vsel %vm667, %v1142, -inf
        %1227 = vmax.xlane.f32.xlu0 %v1226
        %v1228 = vpop.xlane.xlu0 %1227
        %v1229 = vsel %vm667, %v1143, -inf
        %1230 = vmax.xlane.f32.xlu0 %v1229
        %v1231 = vpop.xlane.xlu0 %1230
        %v1232 = vsel %vm667, %v1144, -inf
        %1233 = vmax.xlane.f32.xlu0 %v1232
        %v1234 = vpop.xlane.xlu0 %1233
        %v1235 = vsel %vm667, %v1145, -inf
        %1236 = vmax.xlane.f32.xlu0 %v1235
        %v1237 = vpop.xlane.xlu0 %1236
        %v1238 = vsel %vm667, %v1146, -inf
        %1239 = vmax.xlane.f32.xlu0 %v1238
        %v1240 = vpop.xlane.xlu0 %1239
        %v1241 = vsel %vm667, %v1147, -inf
        %1242 = vmax.xlane.f32.xlu0 %v1241
        %v1243 = vpop.xlane.xlu0 %1242
        %vm1244 = vcmp.ge.f32.partialorder %v572, %v1150
        %vm1245 = vcmp.ge.f32.partialorder %v575, %v1153
        %vm1246 = vcmp.ge.f32.partialorder %v578, %v1156
        %vm1247 = vcmp.ge.f32.partialorder %v581, %v1159
        %vm1248 = vcmp.ge.f32.partialorder %v584, %v1162
        %vm1249 = vcmp.ge.f32.partialorder %v587, %v1165
        %vm1250 = vcmp.ge.f32.partialorder %v590, %v1168
        %vm1251 = vcmp.ge.f32.partialorder %v593, %v1171
        %vm1252 = vcmp.ge.f32.partialorder %v596, %v1174
        %vm1253 = vcmp.ge.f32.partialorder %v599, %v1177
        %vm1254 = vcmp.ge.f32.partialorder %v602, %v1180
        %vm1255 = vcmp.ge.f32.partialorder %v605, %v1183
        %vm1256 = vcmp.ge.f32.partialorder %v608, %v1186
        %vm1257 = vcmp.ge.f32.partialorder %v611, %v1189
        %vm1258 = vcmp.ge.f32.partialorder %v614, %v1192
        %vm1259 = vcmp.ge.f32.partialorder %v617, %v1195
        %vm1260 = vcmp.ge.f32.partialorder %v620, %v1198
        %vm1261 = vcmp.ge.f32.partialorder %v623, %v1201
        %vm1262 = vcmp.ge.f32.partialorder %v626, %v1204
        %vm1263 = vcmp.ge.f32.partialorder %v629, %v1207
        %vm1264 = vcmp.ge.f32.partialorder %v632, %v1210
        %vm1265 = vcmp.ge.f32.partialorder %v635, %v1213
        %vm1266 = vcmp.ge.f32.partialorder %v638, %v1216
        %vm1267 = vcmp.ge.f32.partialorder %v641, %v1219
        %vm1268 = vcmp.ge.f32.partialorder %v644, %v1222
        %vm1269 = vcmp.ge.f32.partialorder %v647, %v1225
        %vm1270 = vcmp.ge.f32.partialorder %v650, %v1228
        %vm1271 = vcmp.ge.f32.partialorder %v653, %v1231
        %vm1272 = vcmp.ge.f32.partialorder %v656, %v1234
        %vm1273 = vcmp.ge.f32.partialorder %v659, %v1237
        %vm1274 = vcmp.ge.f32.partialorder %v662, %v1240
        %vm1275 = vcmp.ge.f32.partialorder %v665, %v1243
        %v1276 = vsub.f32 %v572, %v670
        %v1277 = vsub.f32 %v575, %v673
        %v1278 = vsub.f32 %v578, %v676
        %v1279 = vsub.f32 %v581, %v679
        %v1280 = vsub.f32 %v584, %v682
        %v1281 = vsub.f32 %v587, %v685
        %v1282 = vsub.f32 %v590, %v688
        %v1283 = vsub.f32 %v593, %v691
        %v1284 = vsub.f32 %v596, %v694
        %v1285 = vsub.f32 %v599, %v697
        %v1286 = vsub.f32 %v602, %v700
        %v1287 = vsub.f32 %v605, %v703
        %v1288 = vsub.f32 %v608, %v706
        %v1289 = vsub.f32 %v611, %v709
        %v1290 = vsub.f32 %v614, %v712
        %v1291 = vsub.f32 %v617, %v715
        %v1292 = vsub.f32 %v620, %v718
        %v1293 = vsub.f32 %v623, %v721
        %v1294 = vsub.f32 %v626, %v724
        %v1295 = vsub.f32 %v629, %v727
        %v1296 = vsub.f32 %v632, %v730
        %v1297 = vsub.f32 %v635, %v733
        %v1298 = vsub.f32 %v638, %v736
        %v1299 = vsub.f32 %v641, %v739
        %v1300 = vsub.f32 %v644, %v742
        %v1301 = vsub.f32 %v647, %v745
        %v1302 = vsub.f32 %v650, %v748
        %v1303 = vsub.f32 %v653, %v751
        %v1304 = vsub.f32 %v656, %v754
        %v1305 = vsub.f32 %v659, %v757
        %v1306 = vsub.f32 %v662, %v760
        %v1307 = vsub.f32 %v665, %v763
        %v1308 = vmul.f32 %v1276, 1.442695
        %v1309 = vpow.pop %v1308
        %v1310 = vmul.f32 %v1277, 1.442695
        %v1311 = vpow.pop %v1310
        %v1312 = vmul.f32 %v1278, 1.442695
        %v1313 = vpow.pop %v1312
        %v1314 = vmul.f32 %v1279, 1.442695
        %v1315 = vpow.pop %v1314
        %v1316 = vmul.f32 %v1280, 1.442695
        %v1317 = vpow.pop %v1316
        %v1318 = vmul.f32 %v1281, 1.442695
        %v1319 = vpow.pop %v1318
        %v1320 = vmul.f32 %v1282, 1.442695
        %v1321 = vpow.pop %v1320
        %v1322 = vmul.f32 %v1283, 1.442695
        %v1323 = vpow.pop %v1322
        %v1324 = vmul.f32 %v1284, 1.442695
        %v1325 = vpow.pop %v1324
        %v1326 = vmul.f32 %v1285, 1.442695
        %v1327 = vpow.pop %v1326
        %v1328 = vmul.f32 %v1286, 1.442695
        %v1329 = vpow.pop %v1328
        %v1330 = vmul.f32 %v1287, 1.442695
        %v1331 = vpow.pop %v1330
        %v1332 = vmul.f32 %v1288, 1.442695
        %v1333 = vpow.pop %v1332
        %v1334 = vmul.f32 %v1289, 1.442695
        %v1335 = vpow.pop %v1334
        %v1336 = vmul.f32 %v1290, 1.442695
        %v1337 = vpow.pop %v1336
        %v1338 = vmul.f32 %v1291, 1.442695
        %v1339 = vpow.pop %v1338
        %v1340 = vmul.f32 %v1292, 1.442695
        %v1341 = vpow.pop %v1340
        %v1342 = vmul.f32 %v1293, 1.442695
        %v1343 = vpow.pop %v1342
        %v1344 = vmul.f32 %v1294, 1.442695
        %v1345 = vpow.pop %v1344
        %v1346 = vmul.f32 %v1295, 1.442695
        %v1347 = vpow.pop %v1346
        %v1348 = vmul.f32 %v1296, 1.442695
        %v1349 = vpow.pop %v1348
        %v1350 = vmul.f32 %v1297, 1.442695
        %v1351 = vpow.pop %v1350
        %v1352 = vmul.f32 %v1298, 1.442695
        %v1353 = vpow.pop %v1352
        %v1354 = vmul.f32 %v1299, 1.442695
        %v1355 = vpow.pop %v1354
        %v1356 = vmul.f32 %v1300, 1.442695
        %v1357 = vpow.pop %v1356
        %v1358 = vmul.f32 %v1301, 1.442695
        %v1359 = vpow.pop %v1358
        %v1360 = vmul.f32 %v1302, 1.442695
        %v1361 = vpow.pop %v1360
        %v1362 = vmul.f32 %v1303, 1.442695
        %v1363 = vpow.pop %v1362
        %v1364 = vmul.f32 %v1304, 1.442695
        %v1365 = vpow.pop %v1364
        %v1366 = vmul.f32 %v1305, 1.442695
        %v1367 = vpow.pop %v1366
        %v1368 = vmul.f32 %v1306, 1.442695
        %v1369 = vpow.pop %v1368
        %v1370 = vmul.f32 %v1307, 1.442695
        %v1371 = vpow.pop %v1370
        %v1372 = vsel %vm1244, %v1309, 0.0
        %v1373 = vsel %vm1245, %v1311, 0.0
        %v1374 = vsel %vm1246, %v1313, 0.0
        %v1375 = vsel %vm1247, %v1315, 0.0
        %v1376 = vsel %vm1248, %v1317, 0.0
        %v1377 = vsel %vm1249, %v1319, 0.0
        %v1378 = vsel %vm1250, %v1321, 0.0
        %v1379 = vsel %vm1251, %v1323, 0.0
        %v1380 = vsel %vm1252, %v1325, 0.0
        %v1381 = vsel %vm1253, %v1327, 0.0
        %v1382 = vsel %vm1254, %v1329, 0.0
        %v1383 = vsel %vm1255, %v1331, 0.0
        %v1384 = vsel %vm1256, %v1333, 0.0
        %v1385 = vsel %vm1257, %v1335, 0.0
        %v1386 = vsel %vm1258, %v1337, 0.0
        %v1387 = vsel %vm1259, %v1339, 0.0
        %v1388 = vsel %vm1260, %v1341, 0.0
        %v1389 = vsel %vm1261, %v1343, 0.0
        %v1390 = vsel %vm1262, %v1345, 0.0
        %v1391 = vsel %vm1263, %v1347, 0.0
        %v1392 = vsel %vm1264, %v1349, 0.0
        %v1393 = vsel %vm1265, %v1351, 0.0
        %v1394 = vsel %vm1266, %v1353, 0.0
        %v1395 = vsel %vm1267, %v1355, 0.0
        %v1396 = vsel %vm1268, %v1357, 0.0
        %v1397 = vsel %vm1269, %v1359, 0.0
        %v1398 = vsel %vm1270, %v1361, 0.0
        %v1399 = vsel %vm1271, %v1363, 0.0
        %v1400 = vsel %vm1272, %v1365, 0.0
        %v1401 = vsel %vm1273, %v1367, 0.0
        %v1402 = vsel %vm1274, %v1369, 0.0
        %v1403 = vsel %vm1275, %v1371, 0.0
        %v1404 = vsel %vm667, %v1372, 0.0
        %1405 = vadd.xlane.f32.xlu0 %v1404
        %v1406 = vpop.xlane.xlu0 %1405
        %v1407 = vsel %vm667, %v1373, 0.0
        %1408 = vadd.xlane.f32.xlu0 %v1407
        %v1409 = vpop.xlane.xlu0 %1408
        %v1410 = vsel %vm667, %v1374, 0.0
        %1411 = vadd.xlane.f32.xlu0 %v1410
        %v1412 = vpop.xlane.xlu0 %1411
        %v1413 = vsel %vm667, %v1375, 0.0
        %1414 = vadd.xlane.f32.xlu0 %v1413
        %v1415 = vpop.xlane.xlu0 %1414
        %v1416 = vsel %vm667, %v1376, 0.0
        %1417 = vadd.xlane.f32.xlu0 %v1416
        %v1418 = vpop.xlane.xlu0 %1417
        %v1419 = vsel %vm667, %v1377, 0.0
        %1420 = vadd.xlane.f32.xlu0 %v1419
        %v1421 = vpop.xlane.xlu0 %1420
        %v1422 = vsel %vm667, %v1378, 0.0
        %1423 = vadd.xlane.f32.xlu0 %v1422
        %v1424 = vpop.xlane.xlu0 %1423
        %v1425 = vsel %vm667, %v1379, 0.0
        %1426 = vadd.xlane.f32.xlu0 %v1425
        %v1427 = vpop.xlane.xlu0 %1426
        %v1428 = vsel %vm667, %v1380, 0.0
        %1429 = vadd.xlane.f32.xlu0 %v1428
        %v1430 = vpop.xlane.xlu0 %1429
        %v1431 = vsel %vm667, %v1381, 0.0
        %1432 = vadd.xlane.f32.xlu0 %v1431
        %v1433 = vpop.xlane.xlu0 %1432
        %v1434 = vsel %vm667, %v1382, 0.0
        %1435 = vadd.xlane.f32.xlu0 %v1434
        %v1436 = vpop.xlane.xlu0 %1435
        %v1437 = vsel %vm667, %v1383, 0.0
        %1438 = vadd.xlane.f32.xlu0 %v1437
        %v1439 = vpop.xlane.xlu0 %1438
        %v1440 = vsel %vm667, %v1384, 0.0
        %1441 = vadd.xlane.f32.xlu0 %v1440
        %v1442 = vpop.xlane.xlu0 %1441
        %v1443 = vsel %vm667, %v1385, 0.0
        %1444 = vadd.xlane.f32.xlu0 %v1443
        %v1445 = vpop.xlane.xlu0 %1444
        %v1446 = vsel %vm667, %v1386, 0.0
        %1447 = vadd.xlane.f32.xlu0 %v1446
        %v1448 = vpop.xlane.xlu0 %1447
        %v1449 = vsel %vm667, %v1387, 0.0
        %1450 = vadd.xlane.f32.xlu0 %v1449
        %v1451 = vpop.xlane.xlu0 %1450
        %v1452 = vsel %vm667, %v1388, 0.0
        %1453 = vadd.xlane.f32.xlu0 %v1452
        %v1454 = vpop.xlane.xlu0 %1453
        %v1455 = vsel %vm667, %v1389, 0.0
        %1456 = vadd.xlane.f32.xlu0 %v1455
        %v1457 = vpop.xlane.xlu0 %1456
        %v1458 = vsel %vm667, %v1390, 0.0
        %1459 = vadd.xlane.f32.xlu0 %v1458
        %v1460 = vpop.xlane.xlu0 %1459
        %v1461 = vsel %vm667, %v1391, 0.0
        %1462 = vadd.xlane.f32.xlu0 %v1461
        %v1463 = vpop.xlane.xlu0 %1462
        %v1464 = vsel %vm667, %v1392, 0.0
        %1465 = vadd.xlane.f32.xlu0 %v1464
        %v1466 = vpop.xlane.xlu0 %1465
        %v1467 = vsel %vm667, %v1393, 0.0
        %1468 = vadd.xlane.f32.xlu0 %v1467
        %v1469 = vpop.xlane.xlu0 %1468
        %v1470 = vsel %vm667, %v1394, 0.0
        %1471 = vadd.xlane.f32.xlu0 %v1470
        %v1472 = vpop.xlane.xlu0 %1471
        %v1473 = vsel %vm667, %v1395, 0.0
        %1474 = vadd.xlane.f32.xlu0 %v1473
        %v1475 = vpop.xlane.xlu0 %1474
        %v1476 = vsel %vm667, %v1396, 0.0
        %1477 = vadd.xlane.f32.xlu0 %v1476
        %v1478 = vpop.xlane.xlu0 %1477
        %v1479 = vsel %vm667, %v1397, 0.0
        %1480 = vadd.xlane.f32.xlu0 %v1479
        %v1481 = vpop.xlane.xlu0 %1480
        %v1482 = vsel %vm667, %v1398, 0.0
        %1483 = vadd.xlane.f32.xlu0 %v1482
        %v1484 = vpop.xlane.xlu0 %1483
        %v1485 = vsel %vm667, %v1399, 0.0
        %1486 = vadd.xlane.f32.xlu0 %v1485
        %v1487 = vpop.xlane.xlu0 %1486
        %v1488 = vsel %vm667, %v1400, 0.0
        %1489 = vadd.xlane.f32.xlu0 %v1488
        %v1490 = vpop.xlane.xlu0 %1489
        %v1491 = vsel %vm667, %v1401, 0.0
        %1492 = vadd.xlane.f32.xlu0 %v1491
        %v1493 = vpop.xlane.xlu0 %1492
        %v1494 = vsel %vm667, %v1402, 0.0
        %1495 = vadd.xlane.f32.xlu0 %v1494
        %v1496 = vpop.xlane.xlu0 %1495
        %v1497 = vsel %vm667, %v1403, 0.0
        %1498 = vadd.xlane.f32.xlu0 %v1497
        %v1499 = vpop.xlane.xlu0 %1498
        %v1500 = vrcp.pop %v1406
        %v1501 = vmul.f32 %v1406, %v1500
        %v1502 = vsub.f32 1.0, %v1501
        %v1503 = vmul.f32 %v1500, %v1502
        %v1504 = vadd.f32 %v1500, %v1503
        %vm1505 = vweird.f32 %v1406
        %vm1506 = vweird.f32 %v1500
        %vm1507 = vmor %vm1505, %vm1506
        %v1508 = vsel %vm1507, %v1500, %v1504
        %v1509 = vand.u32 2147483647, %v1406
        %vm1510 = vcmp.eq.f32.partialorder %v1509, 8.507059e+37
        %v1511 = vand.u32 %v1406, 2147483648
        %v1512 = vor.u32 1.1754944e-38, %v1511
        %v1513 = vsel %vm1510, %v1512, %v1508
        %v1514 = vmul.f32 %v1372, %v1513
        %v1515 = vrcp.pop %v1409
        %v1516 = vmul.f32 %v1409, %v1515
        %v1517 = vsub.f32 1.0, %v1516
        %v1518 = vmul.f32 %v1515, %v1517
        %v1519 = vadd.f32 %v1515, %v1518
        %vm1520 = vweird.f32 %v1409
        %vm1521 = vweird.f32 %v1515
        %vm1522 = vmor %vm1520, %vm1521
        %v1523 = vsel %vm1522, %v1515, %v1519
        %v1524 = vand.u32 2147483647, %v1409
        %vm1525 = vcmp.eq.f32.partialorder %v1524, 8.507059e+37
        %v1526 = vand.u32 %v1409, 2147483648
        %v1527 = vor.u32 1.1754944e-38, %v1526
        %v1528 = vsel %vm1525, %v1527, %v1523
        %v1529 = vmul.f32 %v1373, %v1528
        %v1530 = vrcp.pop %v1412
        %v1531 = vmul.f32 %v1412, %v1530
        %v1532 = vsub.f32 1.0, %v1531
        %v1533 = vmul.f32 %v1530, %v1532
        %v1534 = vadd.f32 %v1530, %v1533
        %vm1535 = vweird.f32 %v1412
        %vm1536 = vweird.f32 %v1530
        %vm1537 = vmor %vm1535, %vm1536
        %v1538 = vsel %vm1537, %v1530, %v1534
        %v1539 = vand.u32 2147483647, %v1412
        %vm1540 = vcmp.eq.f32.partialorder %v1539, 8.507059e+37
        %v1541 = vand.u32 %v1412, 2147483648
        %v1542 = vor.u32 1.1754944e-38, %v1541
        %v1543 = vsel %vm1540, %v1542, %v1538
        %v1544 = vmul.f32 %v1374, %v1543
        %v1545 = vrcp.pop %v1415
        %v1546 = vmul.f32 %v1415, %v1545
        %v1547 = vsub.f32 1.0, %v1546
        %v1548 = vmul.f32 %v1545, %v1547
        %v1549 = vadd.f32 %v1545, %v1548
        %vm1550 = vweird.f32 %v1415
        %vm1551 = vweird.f32 %v1545
        %vm1552 = vmor %vm1550, %vm1551
        %v1553 = vsel %vm1552, %v1545, %v1549
        %v1554 = vand.u32 2147483647, %v1415
        %vm1555 = vcmp.eq.f32.partialorder %v1554, 8.507059e+37
        %v1556 = vand.u32 %v1415, 2147483648
        %v1557 = vor.u32 1.1754944e-38, %v1556
        %v1558 = vsel %vm1555, %v1557, %v1553
        %v1559 = vmul.f32 %v1375, %v1558
        %v1560 = vrcp.pop %v1418
        %v1561 = vmul.f32 %v1418, %v1560
        %v1562 = vsub.f32 1.0, %v1561
        %v1563 = vmul.f32 %v1560, %v1562
        %v1564 = vadd.f32 %v1560, %v1563
        %vm1565 = vweird.f32 %v1418
        %vm1566 = vweird.f32 %v1560
        %vm1567 = vmor %vm1565, %vm1566
        %v1568 = vsel %vm1567, %v1560, %v1564
        %v1569 = vand.u32 2147483647, %v1418
        %vm1570 = vcmp.eq.f32.partialorder %v1569, 8.507059e+37
        %v1571 = vand.u32 %v1418, 2147483648
        %v1572 = vor.u32 1.1754944e-38, %v1571
        %v1573 = vsel %vm1570, %v1572, %v1568
        %v1574 = vmul.f32 %v1376, %v1573
        %v1575 = vrcp.pop %v1421
        %v1576 = vmul.f32 %v1421, %v1575
        %v1577 = vsub.f32 1.0, %v1576
        %v1578 = vmul.f32 %v1575, %v1577
        %v1579 = vadd.f32 %v1575, %v1578
        %vm1580 = vweird.f32 %v1421
        %vm1581 = vweird.f32 %v1575
        %vm1582 = vmor %vm1580, %vm1581
        %v1583 = vsel %vm1582, %v1575, %v1579
        %v1584 = vand.u32 2147483647, %v1421
        %vm1585 = vcmp.eq.f32.partialorder %v1584, 8.507059e+37
        %v1586 = vand.u32 %v1421, 2147483648
        %v1587 = vor.u32 1.1754944e-38, %v1586
        %v1588 = vsel %vm1585, %v1587, %v1583
        %v1589 = vmul.f32 %v1377, %v1588
        %v1590 = vrcp.pop %v1424
        %v1591 = vmul.f32 %v1424, %v1590
        %v1592 = vsub.f32 1.0, %v1591
        %v1593 = vmul.f32 %v1590, %v1592
        %v1594 = vadd.f32 %v1590, %v1593
        %vm1595 = vweird.f32 %v1424
        %vm1596 = vweird.f32 %v1590
        %vm1597 = vmor %vm1595, %vm1596
        %v1598 = vsel %vm1597, %v1590, %v1594
        %v1599 = vand.u32 2147483647, %v1424
        %vm1600 = vcmp.eq.f32.partialorder %v1599, 8.507059e+37
        %v1601 = vand.u32 %v1424, 2147483648
        %v1602 = vor.u32 1.1754944e-38, %v1601
        %v1603 = vsel %vm1600, %v1602, %v1598
        %v1604 = vmul.f32 %v1378, %v1603
        %v1605 = vrcp.pop %v1427
        %v1606 = vmul.f32 %v1427, %v1605
        %v1607 = vsub.f32 1.0, %v1606
        %v1608 = vmul.f32 %v1605, %v1607
        %v1609 = vadd.f32 %v1605, %v1608
        %vm1610 = vweird.f32 %v1427
        %vm1611 = vweird.f32 %v1605
        %vm1612 = vmor %vm1610, %vm1611
        %v1613 = vsel %vm1612, %v1605, %v1609
        %v1614 = vand.u32 2147483647, %v1427
        %vm1615 = vcmp.eq.f32.partialorder %v1614, 8.507059e+37
        %v1616 = vand.u32 %v1427, 2147483648
        %v1617 = vor.u32 1.1754944e-38, %v1616
        %v1618 = vsel %vm1615, %v1617, %v1613
        %v1619 = vmul.f32 %v1379, %v1618
        %v1620 = vrcp.pop %v1430
        %v1621 = vmul.f32 %v1430, %v1620
        %v1622 = vsub.f32 1.0, %v1621
        %v1623 = vmul.f32 %v1620, %v1622
        %v1624 = vadd.f32 %v1620, %v1623
        %vm1625 = vweird.f32 %v1430
        %vm1626 = vweird.f32 %v1620
        %vm1627 = vmor %vm1625, %vm1626
        %v1628 = vsel %vm1627, %v1620, %v1624
        %v1629 = vand.u32 2147483647, %v1430
        %vm1630 = vcmp.eq.f32.partialorder %v1629, 8.507059e+37
        %v1631 = vand.u32 %v1430, 2147483648
        %v1632 = vor.u32 1.1754944e-38, %v1631
        %v1633 = vsel %vm1630, %v1632, %v1628
        %v1634 = vmul.f32 %v1380, %v1633
        %v1635 = vrcp.pop %v1433
        %v1636 = vmul.f32 %v1433, %v1635
        %v1637 = vsub.f32 1.0, %v1636
        %v1638 = vmul.f32 %v1635, %v1637
        %v1639 = vadd.f32 %v1635, %v1638
        %vm1640 = vweird.f32 %v1433
        %vm1641 = vweird.f32 %v1635
        %vm1642 = vmor %vm1640, %vm1641
        %v1643 = vsel %vm1642, %v1635, %v1639
        %v1644 = vand.u32 2147483647, %v1433
        %vm1645 = vcmp.eq.f32.partialorder %v1644, 8.507059e+37
        %v1646 = vand.u32 %v1433, 2147483648
        %v1647 = vor.u32 1.1754944e-38, %v1646
        %v1648 = vsel %vm1645, %v1647, %v1643
        %v1649 = vmul.f32 %v1381, %v1648
        %v1650 = vrcp.pop %v1436
        %v1651 = vmul.f32 %v1436, %v1650
        %v1652 = vsub.f32 1.0, %v1651
        %v1653 = vmul.f32 %v1650, %v1652
        %v1654 = vadd.f32 %v1650, %v1653
        %vm1655 = vweird.f32 %v1436
        %vm1656 = vweird.f32 %v1650
        %vm1657 = vmor %vm1655, %vm1656
        %v1658 = vsel %vm1657, %v1650, %v1654
        %v1659 = vand.u32 2147483647, %v1436
        %vm1660 = vcmp.eq.f32.partialorder %v1659, 8.507059e+37
        %v1661 = vand.u32 %v1436, 2147483648
        %v1662 = vor.u32 1.1754944e-38, %v1661
        %v1663 = vsel %vm1660, %v1662, %v1658
        %v1664 = vmul.f32 %v1382, %v1663
        %v1665 = vrcp.pop %v1439
        %v1666 = vmul.f32 %v1439, %v1665
        %v1667 = vsub.f32 1.0, %v1666
        %v1668 = vmul.f32 %v1665, %v1667
        %v1669 = vadd.f32 %v1665, %v1668
        %vm1670 = vweird.f32 %v1439
        %vm1671 = vweird.f32 %v1665
        %vm1672 = vmor %vm1670, %vm1671
        %v1673 = vsel %vm1672, %v1665, %v1669
        %v1674 = vand.u32 2147483647, %v1439
        %vm1675 = vcmp.eq.f32.partialorder %v1674, 8.507059e+37
        %v1676 = vand.u32 %v1439, 2147483648
        %v1677 = vor.u32 1.1754944e-38, %v1676
        %v1678 = vsel %vm1675, %v1677, %v1673
        %v1679 = vmul.f32 %v1383, %v1678
        %v1680 = vrcp.pop %v1442
        %v1681 = vmul.f32 %v1442, %v1680
        %v1682 = vsub.f32 1.0, %v1681
        %v1683 = vmul.f32 %v1680, %v1682
        %v1684 = vadd.f32 %v1680, %v1683
        %vm1685 = vweird.f32 %v1442
        %vm1686 = vweird.f32 %v1680
        %vm1687 = vmor %vm1685, %vm1686
        %v1688 = vsel %vm1687, %v1680, %v1684
        %v1689 = vand.u32 2147483647, %v1442
        %vm1690 = vcmp.eq.f32.partialorder %v1689, 8.507059e+37
        %v1691 = vand.u32 %v1442, 2147483648
        %v1692 = vor.u32 1.1754944e-38, %v1691
        %v1693 = vsel %vm1690, %v1692, %v1688
        %v1694 = vmul.f32 %v1384, %v1693
        %v1695 = vrcp.pop %v1445
        %v1696 = vmul.f32 %v1445, %v1695
        %v1697 = vsub.f32 1.0, %v1696
        %v1698 = vmul.f32 %v1695, %v1697
        %v1699 = vadd.f32 %v1695, %v1698
        %vm1700 = vweird.f32 %v1445
        %vm1701 = vweird.f32 %v1695
        %vm1702 = vmor %vm1700, %vm1701
        %v1703 = vsel %vm1702, %v1695, %v1699
        %v1704 = vand.u32 2147483647, %v1445
        %vm1705 = vcmp.eq.f32.partialorder %v1704, 8.507059e+37
        %v1706 = vand.u32 %v1445, 2147483648
        %v1707 = vor.u32 1.1754944e-38, %v1706
        %v1708 = vsel %vm1705, %v1707, %v1703
        %v1709 = vmul.f32 %v1385, %v1708
        %v1710 = vrcp.pop %v1448
        %v1711 = vmul.f32 %v1448, %v1710
        %v1712 = vsub.f32 1.0, %v1711
        %v1713 = vmul.f32 %v1710, %v1712
        %v1714 = vadd.f32 %v1710, %v1713
        %vm1715 = vweird.f32 %v1448
        %vm1716 = vweird.f32 %v1710
        %vm1717 = vmor %vm1715, %vm1716
        %v1718 = vsel %vm1717, %v1710, %v1714
        %v1719 = vand.u32 2147483647, %v1448
        %vm1720 = vcmp.eq.f32.partialorder %v1719, 8.507059e+37
        %v1721 = vand.u32 %v1448, 2147483648
        %v1722 = vor.u32 1.1754944e-38, %v1721
        %v1723 = vsel %vm1720, %v1722, %v1718
        %v1724 = vmul.f32 %v1386, %v1723
        %v1725 = vrcp.pop %v1451
        %v1726 = vmul.f32 %v1451, %v1725
        %v1727 = vsub.f32 1.0, %v1726
        %v1728 = vmul.f32 %v1725, %v1727
        %v1729 = vadd.f32 %v1725, %v1728
        %vm1730 = vweird.f32 %v1451
        %vm1731 = vweird.f32 %v1725
        %vm1732 = vmor %vm1730, %vm1731
        %v1733 = vsel %vm1732, %v1725, %v1729
        %v1734 = vand.u32 2147483647, %v1451
        %vm1735 = vcmp.eq.f32.partialorder %v1734, 8.507059e+37
        %v1736 = vand.u32 %v1451, 2147483648
        %v1737 = vor.u32 1.1754944e-38, %v1736
        %v1738 = vsel %vm1735, %v1737, %v1733
        %v1739 = vmul.f32 %v1387, %v1738
        %v1740 = vrcp.pop %v1454
        %v1741 = vmul.f32 %v1454, %v1740
        %v1742 = vsub.f32 1.0, %v1741
        %v1743 = vmul.f32 %v1740, %v1742
        %v1744 = vadd.f32 %v1740, %v1743
        %vm1745 = vweird.f32 %v1454
        %vm1746 = vweird.f32 %v1740
        %vm1747 = vmor %vm1745, %vm1746
        %v1748 = vsel %vm1747, %v1740, %v1744
        %v1749 = vand.u32 2147483647, %v1454
        %vm1750 = vcmp.eq.f32.partialorder %v1749, 8.507059e+37
        %v1751 = vand.u32 %v1454, 2147483648
        %v1752 = vor.u32 1.1754944e-38, %v1751
        %v1753 = vsel %vm1750, %v1752, %v1748
        %v1754 = vmul.f32 %v1388, %v1753
        %v1755 = vrcp.pop %v1457
        %v1756 = vmul.f32 %v1457, %v1755
        %v1757 = vsub.f32 1.0, %v1756
        %v1758 = vmul.f32 %v1755, %v1757
        %v1759 = vadd.f32 %v1755, %v1758
        %vm1760 = vweird.f32 %v1457
        %vm1761 = vweird.f32 %v1755
        %vm1762 = vmor %vm1760, %vm1761
        %v1763 = vsel %vm1762, %v1755, %v1759
        %v1764 = vand.u32 2147483647, %v1457
        %vm1765 = vcmp.eq.f32.partialorder %v1764, 8.507059e+37
        %v1766 = vand.u32 %v1457, 2147483648
        %v1767 = vor.u32 1.1754944e-38, %v1766
        %v1768 = vsel %vm1765, %v1767, %v1763
        %v1769 = vmul.f32 %v1389, %v1768
        %v1770 = vrcp.pop %v1460
        %v1771 = vmul.f32 %v1460, %v1770
        %v1772 = vsub.f32 1.0, %v1771
        %v1773 = vmul.f32 %v1770, %v1772
        %v1774 = vadd.f32 %v1770, %v1773
        %vm1775 = vweird.f32 %v1460
        %vm1776 = vweird.f32 %v1770
        %vm1777 = vmor %vm1775, %vm1776
        %v1778 = vsel %vm1777, %v1770, %v1774
        %v1779 = vand.u32 2147483647, %v1460
        %vm1780 = vcmp.eq.f32.partialorder %v1779, 8.507059e+37
        %v1781 = vand.u32 %v1460, 2147483648
        %v1782 = vor.u32 1.1754944e-38, %v1781
        %v1783 = vsel %vm1780, %v1782, %v1778
        %v1784 = vmul.f32 %v1390, %v1783
        %v1785 = vrcp.pop %v1463
        %v1786 = vmul.f32 %v1463, %v1785
        %v1787 = vsub.f32 1.0, %v1786
        %v1788 = vmul.f32 %v1785, %v1787
        %v1789 = vadd.f32 %v1785, %v1788
        %vm1790 = vweird.f32 %v1463
        %vm1791 = vweird.f32 %v1785
        %vm1792 = vmor %vm1790, %vm1791
        %v1793 = vsel %vm1792, %v1785, %v1789
        %v1794 = vand.u32 2147483647, %v1463
        %vm1795 = vcmp.eq.f32.partialorder %v1794, 8.507059e+37
        %v1796 = vand.u32 %v1463, 2147483648
        %v1797 = vor.u32 1.1754944e-38, %v1796
        %v1798 = vsel %vm1795, %v1797, %v1793
        %v1799 = vmul.f32 %v1391, %v1798
        %v1800 = vrcp.pop %v1466
        %v1801 = vmul.f32 %v1466, %v1800
        %v1802 = vsub.f32 1.0, %v1801
        %v1803 = vmul.f32 %v1800, %v1802
        %v1804 = vadd.f32 %v1800, %v1803
        %vm1805 = vweird.f32 %v1466
        %vm1806 = vweird.f32 %v1800
        %vm1807 = vmor %vm1805, %vm1806
        %v1808 = vsel %vm1807, %v1800, %v1804
        %v1809 = vand.u32 2147483647, %v1466
        %vm1810 = vcmp.eq.f32.partialorder %v1809, 8.507059e+37
        %v1811 = vand.u32 %v1466, 2147483648
        %v1812 = vor.u32 1.1754944e-38, %v1811
        %v1813 = vsel %vm1810, %v1812, %v1808
        %v1814 = vmul.f32 %v1392, %v1813
        %v1815 = vrcp.pop %v1469
        %v1816 = vmul.f32 %v1469, %v1815
        %v1817 = vsub.f32 1.0, %v1816
        %v1818 = vmul.f32 %v1815, %v1817
        %v1819 = vadd.f32 %v1815, %v1818
        %vm1820 = vweird.f32 %v1469
        %vm1821 = vweird.f32 %v1815
        %vm1822 = vmor %vm1820, %vm1821
        %v1823 = vsel %vm1822, %v1815, %v1819
        %v1824 = vand.u32 2147483647, %v1469
        %vm1825 = vcmp.eq.f32.partialorder %v1824, 8.507059e+37
        %v1826 = vand.u32 %v1469, 2147483648
        %v1827 = vor.u32 1.1754944e-38, %v1826
        %v1828 = vsel %vm1825, %v1827, %v1823
        %v1829 = vmul.f32 %v1393, %v1828
        %v1830 = vrcp.pop %v1472
        %v1831 = vmul.f32 %v1472, %v1830
        %v1832 = vsub.f32 1.0, %v1831
        %v1833 = vmul.f32 %v1830, %v1832
        %v1834 = vadd.f32 %v1830, %v1833
        %vm1835 = vweird.f32 %v1472
        %vm1836 = vweird.f32 %v1830
        %vm1837 = vmor %vm1835, %vm1836
        %v1838 = vsel %vm1837, %v1830, %v1834
        %v1839 = vand.u32 2147483647, %v1472
        %vm1840 = vcmp.eq.f32.partialorder %v1839, 8.507059e+37
        %v1841 = vand.u32 %v1472, 2147483648
        %v1842 = vor.u32 1.1754944e-38, %v1841
        %v1843 = vsel %vm1840, %v1842, %v1838
        %v1844 = vmul.f32 %v1394, %v1843
        %v1845 = vrcp.pop %v1475
        %v1846 = vmul.f32 %v1475, %v1845
        %v1847 = vsub.f32 1.0, %v1846
        %v1848 = vmul.f32 %v1845, %v1847
        %v1849 = vadd.f32 %v1845, %v1848
        %vm1850 = vweird.f32 %v1475
        %vm1851 = vweird.f32 %v1845
        %vm1852 = vmor %vm1850, %vm1851
        %v1853 = vsel %vm1852, %v1845, %v1849
        %v1854 = vand.u32 2147483647, %v1475
        %vm1855 = vcmp.eq.f32.partialorder %v1854, 8.507059e+37
        %v1856 = vand.u32 %v1475, 2147483648
        %v1857 = vor.u32 1.1754944e-38, %v1856
        %v1858 = vsel %vm1855, %v1857, %v1853
        %v1859 = vmul.f32 %v1395, %v1858
        %v1860 = vrcp.pop %v1478
        %v1861 = vmul.f32 %v1478, %v1860
        %v1862 = vsub.f32 1.0, %v1861
        %v1863 = vmul.f32 %v1860, %v1862
        %v1864 = vadd.f32 %v1860, %v1863
        %vm1865 = vweird.f32 %v1478
        %vm1866 = vweird.f32 %v1860
        %vm1867 = vmor %vm1865, %vm1866
        %v1868 = vsel %vm1867, %v1860, %v1864
        %v1869 = vand.u32 2147483647, %v1478
        %vm1870 = vcmp.eq.f32.partialorder %v1869, 8.507059e+37
        %v1871 = vand.u32 %v1478, 2147483648
        %v1872 = vor.u32 1.1754944e-38, %v1871
        %v1873 = vsel %vm1870, %v1872, %v1868
        %v1874 = vmul.f32 %v1396, %v1873
        %v1875 = vrcp.pop %v1481
        %v1876 = vmul.f32 %v1481, %v1875
        %v1877 = vsub.f32 1.0, %v1876
        %v1878 = vmul.f32 %v1875, %v1877
        %v1879 = vadd.f32 %v1875, %v1878
        %vm1880 = vweird.f32 %v1481
        %vm1881 = vweird.f32 %v1875
        %vm1882 = vmor %vm1880, %vm1881
        %v1883 = vsel %vm1882, %v1875, %v1879
        %v1884 = vand.u32 2147483647, %v1481
        %vm1885 = vcmp.eq.f32.partialorder %v1884, 8.507059e+37
        %v1886 = vand.u32 %v1481, 2147483648
        %v1887 = vor.u32 1.1754944e-38, %v1886
        %v1888 = vsel %vm1885, %v1887, %v1883
        %v1889 = vmul.f32 %v1397, %v1888
        %v1890 = vrcp.pop %v1484
        %v1891 = vmul.f32 %v1484, %v1890
        %v1892 = vsub.f32 1.0, %v1891
        %v1893 = vmul.f32 %v1890, %v1892
        %v1894 = vadd.f32 %v1890, %v1893
        %vm1895 = vweird.f32 %v1484
        %vm1896 = vweird.f32 %v1890
        %vm1897 = vmor %vm1895, %vm1896
        %v1898 = vsel %vm1897, %v1890, %v1894
        %v1899 = vand.u32 2147483647, %v1484
        %vm1900 = vcmp.eq.f32.partialorder %v1899, 8.507059e+37
        %v1901 = vand.u32 %v1484, 2147483648
        %v1902 = vor.u32 1.1754944e-38, %v1901
        %v1903 = vsel %vm1900, %v1902, %v1898
        %v1904 = vmul.f32 %v1398, %v1903
        %v1905 = vrcp.pop %v1487
        %v1906 = vmul.f32 %v1487, %v1905
        %v1907 = vsub.f32 1.0, %v1906
        %v1908 = vmul.f32 %v1905, %v1907
        %v1909 = vadd.f32 %v1905, %v1908
        %vm1910 = vweird.f32 %v1487
        %vm1911 = vweird.f32 %v1905
        %vm1912 = vmor %vm1910, %vm1911
        %v1913 = vsel %vm1912, %v1905, %v1909
        %v1914 = vand.u32 2147483647, %v1487
        %vm1915 = vcmp.eq.f32.partialorder %v1914, 8.507059e+37
        %v1916 = vand.u32 %v1487, 2147483648
        %v1917 = vor.u32 1.1754944e-38, %v1916
        %v1918 = vsel %vm1915, %v1917, %v1913
        %v1919 = vmul.f32 %v1399, %v1918
        %v1920 = vrcp.pop %v1490
        %v1921 = vmul.f32 %v1490, %v1920
        %v1922 = vsub.f32 1.0, %v1921
        %v1923 = vmul.f32 %v1920, %v1922
        %v1924 = vadd.f32 %v1920, %v1923
        %vm1925 = vweird.f32 %v1490
        %vm1926 = vweird.f32 %v1920
        %vm1927 = vmor %vm1925, %vm1926
        %v1928 = vsel %vm1927, %v1920, %v1924
        %v1929 = vand.u32 2147483647, %v1490
        %vm1930 = vcmp.eq.f32.partialorder %v1929, 8.507059e+37
        %v1931 = vand.u32 %v1490, 2147483648
        %v1932 = vor.u32 1.1754944e-38, %v1931
        %v1933 = vsel %vm1930, %v1932, %v1928
        %v1934 = vmul.f32 %v1400, %v1933
        %v1935 = vrcp.pop %v1493
        %v1936 = vmul.f32 %v1493, %v1935
        %v1937 = vsub.f32 1.0, %v1936
        %v1938 = vmul.f32 %v1935, %v1937
        %v1939 = vadd.f32 %v1935, %v1938
        %vm1940 = vweird.f32 %v1493
        %vm1941 = vweird.f32 %v1935
        %vm1942 = vmor %vm1940, %vm1941
        %v1943 = vsel %vm1942, %v1935, %v1939
        %v1944 = vand.u32 2147483647, %v1493
        %vm1945 = vcmp.eq.f32.partialorder %v1944, 8.507059e+37
        %v1946 = vand.u32 %v1493, 2147483648
        %v1947 = vor.u32 1.1754944e-38, %v1946
        %v1948 = vsel %vm1945, %v1947, %v1943
        %v1949 = vmul.f32 %v1401, %v1948
        %v1950 = vrcp.pop %v1496
        %v1951 = vmul.f32 %v1496, %v1950
        %v1952 = vsub.f32 1.0, %v1951
        %v1953 = vmul.f32 %v1950, %v1952
        %v1954 = vadd.f32 %v1950, %v1953
        %vm1955 = vweird.f32 %v1496
        %vm1956 = vweird.f32 %v1950
        %vm1957 = vmor %vm1955, %vm1956
        %v1958 = vsel %vm1957, %v1950, %v1954
        %v1959 = vand.u32 2147483647, %v1496
        %vm1960 = vcmp.eq.f32.partialorder %v1959, 8.507059e+37
        %v1961 = vand.u32 %v1496, 2147483648
        %v1962 = vor.u32 1.1754944e-38, %v1961
        %v1963 = vsel %vm1960, %v1962, %v1958
        %v1964 = vmul.f32 %v1402, %v1963
        %v1965 = vrcp.pop %v1499
        %v1966 = vmul.f32 %v1499, %v1965
        %v1967 = vsub.f32 1.0, %v1966
        %v1968 = vmul.f32 %v1965, %v1967
        %v1969 = vadd.f32 %v1965, %v1968
        %vm1970 = vweird.f32 %v1499
        %vm1971 = vweird.f32 %v1965
        %vm1972 = vmor %vm1970, %vm1971
        %v1973 = vsel %vm1972, %v1965, %v1969
        %v1974 = vand.u32 2147483647, %v1499
        %vm1975 = vcmp.eq.f32.partialorder %v1974, 8.507059e+37
        %v1976 = vand.u32 %v1499, 2147483648
        %v1977 = vor.u32 1.1754944e-38, %v1976
        %v1978 = vsel %vm1975, %v1977, %v1973
        %v1979 = vmul.f32 %v1403, %v1978
        %1981 = vset.pattern.permute.xlu0 0
        %1982 = vperm.xlu0 %1981, %v421
        %v1983 = vpop.permute.xlu0 %1982
        %1986 = vset.pattern.permute.xlu0 0
        %1987 = vperm.xlu0 %1986, %v422
        %v1988 = vpop.permute.xlu0 %1987
        %1991 = vset.pattern.permute.xlu0 0
        %1992 = vperm.xlu0 %1991, %v423
        %v1993 = vpop.permute.xlu0 %1992
        %1996 = vset.pattern.permute.xlu0 0
        %1997 = vperm.xlu0 %1996, %v424
        %v1998 = vpop.permute.xlu0 %1997
        %2001 = vset.pattern.permute.xlu0 0
        %2002 = vperm.xlu0 %2001, %v425
        %v2003 = vpop.permute.xlu0 %2002
        %2006 = vset.pattern.permute.xlu0 0
        %2007 = vperm.xlu0 %2006, %v426
        %v2008 = vpop.permute.xlu0 %2007
        %2011 = vset.pattern.permute.xlu0 0
        %2012 = vperm.xlu0 %2011, %v427
        %v2013 = vpop.permute.xlu0 %2012
        %2016 = vset.pattern.permute.xlu0 0
        %2017 = vperm.xlu0 %2016, %v428
        %v2018 = vpop.permute.xlu0 %2017
        %2021 = vset.pattern.permute.xlu0 0
        %2022 = vperm.xlu0 %2021, %v429
        %v2023 = vpop.permute.xlu0 %2022
        %2026 = vset.pattern.permute.xlu0 0
        %2027 = vperm.xlu0 %2026, %v430
        %v2028 = vpop.permute.xlu0 %2027
        %2031 = vset.pattern.permute.xlu0 0
        %2032 = vperm.xlu0 %2031, %v431
        %v2033 = vpop.permute.xlu0 %2032
        %2036 = vset.pattern.permute.xlu0 0
        %2037 = vperm.xlu0 %2036, %v432
        %v2038 = vpop.permute.xlu0 %2037
        %2041 = vset.pattern.permute.xlu0 0
        %2042 = vperm.xlu0 %2041, %v433
        %v2043 = vpop.permute.xlu0 %2042
        %2046 = vset.pattern.permute.xlu0 0
        %2047 = vperm.xlu0 %2046, %v434
        %v2048 = vpop.permute.xlu0 %2047
        %2051 = vset.pattern.permute.xlu0 0
        %2052 = vperm.xlu0 %2051, %v435
        %v2053 = vpop.permute.xlu0 %2052
        %2056 = vset.pattern.permute.xlu0 0
        %2057 = vperm.xlu0 %2056, %v436
        %v2058 = vpop.permute.xlu0 %2057
        %2061 = vset.pattern.permute.xlu0 0
        %2062 = vperm.xlu0 %2061, %v437
        %v2063 = vpop.permute.xlu0 %2062
        %2066 = vset.pattern.permute.xlu0 0
        %2067 = vperm.xlu0 %2066, %v438
        %v2068 = vpop.permute.xlu0 %2067
        %2071 = vset.pattern.permute.xlu0 0
        %2072 = vperm.xlu0 %2071, %v439
        %v2073 = vpop.permute.xlu0 %2072
        %2076 = vset.pattern.permute.xlu0 0
        %2077 = vperm.xlu0 %2076, %v440
        %v2078 = vpop.permute.xlu0 %2077
        %2081 = vset.pattern.permute.xlu0 0
        %2082 = vperm.xlu0 %2081, %v441
        %v2083 = vpop.permute.xlu0 %2082
        %2086 = vset.pattern.permute.xlu0 0
        %2087 = vperm.xlu0 %2086, %v442
        %v2088 = vpop.permute.xlu0 %2087
        %2091 = vset.pattern.permute.xlu0 0
        %2092 = vperm.xlu0 %2091, %v443
        %v2093 = vpop.permute.xlu0 %2092
        %2096 = vset.pattern.permute.xlu0 0
        %2097 = vperm.xlu0 %2096, %v444
        %v2098 = vpop.permute.xlu0 %2097
        %2101 = vset.pattern.permute.xlu0 0
        %2102 = vperm.xlu0 %2101, %v445
        %v2103 = vpop.permute.xlu0 %2102
        %2106 = vset.pattern.permute.xlu0 0
        %2107 = vperm.xlu0 %2106, %v446
        %v2108 = vpop.permute.xlu0 %2107
        %2111 = vset.pattern.permute.xlu0 0
        %2112 = vperm.xlu0 %2111, %v447
        %v2113 = vpop.permute.xlu0 %2112
        %2116 = vset.pattern.permute.xlu0 0
        %2117 = vperm.xlu0 %2116, %v448
        %v2118 = vpop.permute.xlu0 %2117
        %2121 = vset.pattern.permute.xlu0 0
        %2122 = vperm.xlu0 %2121, %v449
        %v2123 = vpop.permute.xlu0 %2122
        %2126 = vset.pattern.permute.xlu0 0
        %2127 = vperm.xlu0 %2126, %v450
        %v2128 = vpop.permute.xlu0 %2127
        %2131 = vset.pattern.permute.xlu0 0
        %2132 = vperm.xlu0 %2131, %v451
        %v2133 = vpop.permute.xlu0 %2132
        %2136 = vset.pattern.permute.xlu0 0
        %2137 = vperm.xlu0 %2136, %v452
        %v2138 = vpop.permute.xlu0 %2137
        %v2140 = vmul.f32 %v1514, %v1983
        %v2141 = vmul.f32 %v1529, %v1988
        %v2142 = vmul.f32 %v1544, %v1993
        %v2143 = vmul.f32 %v1559, %v1998
        %v2144 = vmul.f32 %v1574, %v2003
        %v2145 = vmul.f32 %v1589, %v2008
        %v2146 = vmul.f32 %v1604, %v2013
        %v2147 = vmul.f32 %v1619, %v2018
        %v2148 = vmul.f32 %v1634, %v2023
        %v2149 = vmul.f32 %v1649, %v2028
        %v2150 = vmul.f32 %v1664, %v2033
        %v2151 = vmul.f32 %v1679, %v2038
        %v2152 = vmul.f32 %v1694, %v2043
        %v2153 = vmul.f32 %v1709, %v2048
        %v2154 = vmul.f32 %v1724, %v2053
        %v2155 = vmul.f32 %v1739, %v2058
        %v2156 = vmul.f32 %v1754, %v2063
        %v2157 = vmul.f32 %v1769, %v2068
        %v2158 = vmul.f32 %v1784, %v2073
        %v2159 = vmul.f32 %v1799, %v2078
        %v2160 = vmul.f32 %v1814, %v2083
        %v2161 = vmul.f32 %v1829, %v2088
        %v2162 = vmul.f32 %v1844, %v2093
        %v2163 = vmul.f32 %v1859, %v2098
        %v2164 = vmul.f32 %v1874, %v2103
        %v2165 = vmul.f32 %v1889, %v2108
        %v2166 = vmul.f32 %v1904, %v2113
        %v2167 = vmul.f32 %v1919, %v2118
        %v2168 = vmul.f32 %v1934, %v2123
        %v2169 = vmul.f32 %v1949, %v2128
        %v2170 = vmul.f32 %v1964, %v2133
        %v2171 = vmul.f32 %v1979, %v2138
        %2172 = vst.msk [vmem:[#allocation2] sm:$0xff] %vm667, %v2140
        %2173 = vst.msk [vmem:[#allocation2 + $0x8] sm:$0xff] %vm667, %v2141
        %2174 = vst.msk [vmem:[#allocation2 + $0x10] sm:$0xff] %vm667, %v2142
        %2175 = vst.msk [vmem:[#allocation2 + $0x18] sm:$0xff] %vm667, %v2143
        %2176 = vst.msk [vmem:[#allocation2 + $0x20] sm:$0xff] %vm667, %v2144
        %2177 = vst.msk [vmem:[#allocation2 + $0x28] sm:$0xff] %vm667, %v2145
        %2178 = vst.msk [vmem:[#allocation2 + $0x30] sm:$0xff] %vm667, %v2146
        %2179 = vst.msk [vmem:[#allocation2 + $0x38] sm:$0xff] %vm667, %v2147
        %2180 = vst.msk [vmem:[#allocation2 + $0x40] sm:$0xff] %vm667, %v2148
        %2181 = vst.msk [vmem:[#allocation2 + $0x48] sm:$0xff] %vm667, %v2149
        %2182 = vst.msk [vmem:[#allocation2 + $0x50] sm:$0xff] %vm667, %v2150
        %2183 = vst.msk [vmem:[#allocation2 + $0x58] sm:$0xff] %vm667, %v2151
        %2184 = vst.msk [vmem:[#allocation2 + $0x60] sm:$0xff] %vm667, %v2152
        %2185 = vst.msk [vmem:[#allocation2 + $0x68] sm:$0xff] %vm667, %v2153
        %2186 = vst.msk [vmem:[#allocation2 + $0x70] sm:$0xff] %vm667, %v2154
        %2187 = vst.msk [vmem:[#allocation2 + $0x78] sm:$0xff] %vm667, %v2155
        %2188 = vst.msk [vmem:[#allocation2 + $0x80] sm:$0xff] %vm667, %v2156
        %2189 = vst.msk [vmem:[#allocation2 + $0x88] sm:$0xff] %vm667, %v2157
        %2190 = vst.msk [vmem:[#allocation2 + $0x90] sm:$0xff] %vm667, %v2158
        %2191 = vst.msk [vmem:[#allocation2 + $0x98] sm:$0xff] %vm667, %v2159
        %2192 = vst.msk [vmem:[#allocation2 + $0xa0] sm:$0xff] %vm667, %v2160
        %2193 = vst.msk [vmem:[#allocation2 + $0xa8] sm:$0xff] %vm667, %v2161
        %2194 = vst.msk [vmem:[#allocation2 + $0xb0] sm:$0xff] %vm667, %v2162
        %2195 = vst.msk [vmem:[#allocation2 + $0xb8] sm:$0xff] %vm667, %v2163
        %2196 = vst.msk [vmem:[#allocation2 + $0xc0] sm:$0xff] %vm667, %v2164
        %2197 = vst.msk [vmem:[#allocation2 + $0xc8] sm:$0xff] %vm667, %v2165
        %2198 = vst.msk [vmem:[#allocation2 + $0xd0] sm:$0xff] %vm667, %v2166
        %2199 = vst.msk [vmem:[#allocation2 + $0xd8] sm:$0xff] %vm667, %v2167
        %2200 = vst.msk [vmem:[#allocation2 + $0xe0] sm:$0xff] %vm667, %v2168
        %2201 = vst.msk [vmem:[#allocation2 + $0xe8] sm:$0xff] %vm667, %v2169
        %2202 = vst.msk [vmem:[#allocation2 + $0xf0] sm:$0xff] %vm667, %v2170
        %2203 = vst.msk [vmem:[#allocation2 + $0xf8] sm:$0xff] %vm667, %v2171
        %2204 = vst.msk [vmem:[#allocation3] sm:$0xff] %vm457, %v389
        %2205 = vst.msk [vmem:[#allocation3 + $0x8] sm:$0xff] %vm457, %v390
        %2206 = vst.msk [vmem:[#allocation3 + $0x10] sm:$0xff] %vm457, %v391
        %2207 = vst.msk [vmem:[#allocation3 + $0x18] sm:$0xff] %vm457, %v392
        %2208 = vst.msk [vmem:[#allocation3 + $0x20] sm:$0xff] %vm457, %v393
        %2209 = vst.msk [vmem:[#allocation3 + $0x28] sm:$0xff] %vm457, %v394
        %2210 = vst.msk [vmem:[#allocation3 + $0x30] sm:$0xff] %vm457, %v395
        %2211 = vst.msk [vmem:[#allocation3 + $0x38] sm:$0xff] %vm457, %v396
        %2212 = vst.msk [vmem:[#allocation3 + $0x40] sm:$0xff] %vm457, %v397
        %2213 = vst.msk [vmem:[#allocation3 + $0x48] sm:$0xff] %vm457, %v398
        %2214 = vst.msk [vmem:[#allocation3 + $0x50] sm:$0xff] %vm457, %v399
        %2215 = vst.msk [vmem:[#allocation3 + $0x58] sm:$0xff] %vm457, %v400
        %2216 = vst.msk [vmem:[#allocation3 + $0x60] sm:$0xff] %vm457, %v401
        %2217 = vst.msk [vmem:[#allocation3 + $0x68] sm:$0xff] %vm457, %v402
        %2218 = vst.msk [vmem:[#allocation3 + $0x70] sm:$0xff] %vm457, %v403
        %2219 = vst.msk [vmem:[#allocation3 + $0x78] sm:$0xff] %vm457, %v404
        %2220 = vst.msk [vmem:[#allocation3 + $0x80] sm:$0xff] %vm457, %v405
        %2221 = vst.msk [vmem:[#allocation3 + $0x88] sm:$0xff] %vm457, %v406
        %2222 = vst.msk [vmem:[#allocation3 + $0x90] sm:$0xff] %vm457, %v407
        %2223 = vst.msk [vmem:[#allocation3 + $0x98] sm:$0xff] %vm457, %v408
        %2224 = vst.msk [vmem:[#allocation3 + $0xa0] sm:$0xff] %vm457, %v409
        %2225 = vst.msk [vmem:[#allocation3 + $0xa8] sm:$0xff] %vm457, %v410
        %2226 = vst.msk [vmem:[#allocation3 + $0xb0] sm:$0xff] %vm457, %v411
        %2227 = vst.msk [vmem:[#allocation3 + $0xb8] sm:$0xff] %vm457, %v412
        %2228 = vst.msk [vmem:[#allocation3 + $0xc0] sm:$0xff] %vm457, %v413
        %2229 = vst.msk [vmem:[#allocation3 + $0xc8] sm:$0xff] %vm457, %v414
        %2230 = vst.msk [vmem:[#allocation3 + $0xd0] sm:$0xff] %vm457, %v415
        %2231 = vst.msk [vmem:[#allocation3 + $0xd8] sm:$0xff] %vm457, %v416
        %2232 = vst.msk [vmem:[#allocation3 + $0xe0] sm:$0xff] %vm457, %v417
        %2233 = vst.msk [vmem:[#allocation3 + $0xe8] sm:$0xff] %vm457, %v418
        %2234 = vst.msk [vmem:[#allocation3 + $0xf0] sm:$0xff] %vm457, %v419
        %2235 = vst.msk [vmem:[#allocation3 + $0xf8] sm:$0xff] %vm457, %v420
      $region52: #{tpu_custom_call.1} parent=47 // pred_fallthru
        _
      %v2236 = vld [vmem:[%s354] sm:$0xff]
      %v2237 = vld [vmem:[%s354 + $0x8] sm:$0xff]
      %v2238 = vld [vmem:[%s354 + $0x10] sm:$0xff]
      %v2239 = vld [vmem:[%s354 + $0x18] sm:$0xff]
      %v2240 = vld [vmem:[%s354 + $0x20] sm:$0xff]
      %v2241 = vld [vmem:[%s354 + $0x28] sm:$0xff]
      %v2242 = vld [vmem:[%s354 + $0x30] sm:$0xff]
      %v2243 = vld [vmem:[%s354 + $0x38] sm:$0xff]
      %v2244 = vld [vmem:[%s354 + $0x40] sm:$0xff]
      %v2245 = vld [vmem:[%s354 + $0x48] sm:$0xff]
      %v2246 = vld [vmem:[%s354 + $0x50] sm:$0xff]
      %v2247 = vld [vmem:[%s354 + $0x58] sm:$0xff]
      %v2248 = vld [vmem:[%s354 + $0x60] sm:$0xff]
      %v2249 = vld [vmem:[%s354 + $0x68] sm:$0xff]
      %v2250 = vld [vmem:[%s354 + $0x70] sm:$0xff]
      %v2251 = vld [vmem:[%s354 + $0x78] sm:$0xff]
      %v2252 = vld [vmem:[%s354 + $0x80] sm:$0xff]
      %v2253 = vld [vmem:[%s354 + $0x88] sm:$0xff]
      %v2254 = vld [vmem:[%s354 + $0x90] sm:$0xff]
      %v2255 = vld [vmem:[%s354 + $0x98] sm:$0xff]
      %v2256 = vld [vmem:[%s354 + $0xa0] sm:$0xff]
      %v2257 = vld [vmem:[%s354 + $0xa8] sm:$0xff]
      %v2258 = vld [vmem:[%s354 + $0xb0] sm:$0xff]
      %v2259 = vld [vmem:[%s354 + $0xb8] sm:$0xff]
      %v2260 = vld [vmem:[%s354 + $0xc0] sm:$0xff]
      %v2261 = vld [vmem:[%s354 + $0xc8] sm:$0xff]
      %v2262 = vld [vmem:[%s354 + $0xd0] sm:$0xff]
      %v2263 = vld [vmem:[%s354 + $0xd8] sm:$0xff]
      %v2264 = vld [vmem:[%s354 + $0xe0] sm:$0xff]
      %v2265 = vld [vmem:[%s354 + $0xe8] sm:$0xff]
      %v2266 = vld [vmem:[%s354 + $0xf0] sm:$0xff]
      %v2267 = vld [vmem:[%s354 + $0xf8] sm:$0xff]
      %v2268 = vpack.c.bf16 %v2237, %v2236
      %v2269 = vpack.c.bf16 %v2239, %v2238
      %v2270 = vpack.c.bf16 %v2241, %v2240
      %v2271 = vpack.c.bf16 %v2243, %v2242
      %v2272 = vpack.c.bf16 %v2245, %v2244
      %v2273 = vpack.c.bf16 %v2247, %v2246
      %v2274 = vpack.c.bf16 %v2249, %v2248
      %v2275 = vpack.c.bf16 %v2251, %v2250
      %v2276 = vpack.c.bf16 %v2253, %v2252
      %v2277 = vpack.c.bf16 %v2255, %v2254
      %v2278 = vpack.c.bf16 %v2257, %v2256
      %v2279 = vpack.c.bf16 %v2259, %v2258
      %v2280 = vpack.c.bf16 %v2261, %v2260
      %v2281 = vpack.c.bf16 %v2263, %v2262
      %v2282 = vpack.c.bf16 %v2265, %v2264
      %v2283 = vpack.c.bf16 %v2267, %v2266
      %v2284 = vld [vmem:[%s366] sm:$0xf]
      %v2285 = vld [vmem:[%s366 + $0x4] sm:$0xf]
      %v2286 = vld [vmem:[%s366 + $0x8] sm:$0xf]
      %v2287 = vld [vmem:[%s366 + $0xc] sm:$0xf]
      %v2288 = vld [vmem:[%s369] sm:$0x1]
      %v2290 = vperm.slane %v2288, 0
      %v2296 = vunpack.c.l.b16 %v2284
      %v2297 = vunpack.c.l.b16 %v2285
      %v2298 = vunpack.c.l.b16 %v2286
      %v2299 = vunpack.c.l.b16 %v2287
      %v2300 = vpack.c.b16 %v2297, %v2296
      %v2301 = vpack.c.b16 %v2299, %v2298
      %vm2304 = vcmask 261120
      %v2306 = vsel %vm2304, %v2268, 0
      %v2309 = vsel %vm2304, %v2269, 0
      %v2312 = vsel %vm2304, %v2270, 0
      %v2315 = vsel %vm2304, %v2271, 0
      %v2318 = vsel %vm2304, %v2272, 0
      %v2321 = vsel %vm2304, %v2273, 0
      %v2324 = vsel %vm2304, %v2274, 0
      %v2327 = vsel %vm2304, %v2275, 0
      %v2330 = vsel %vm2304, %v2276, 0
      %v2333 = vsel %vm2304, %v2277, 0
      %v2336 = vsel %vm2304, %v2278, 0
      %v2339 = vsel %vm2304, %v2279, 0
      %v2342 = vsel %vm2304, %v2280, 0
      %v2345 = vsel %vm2304, %v2281, 0
      %v2348 = vsel %vm2304, %v2282, 0
      %v2351 = vsel %vm2304, %v2283, 0
      %2353 = vmatpush.bf16.msra.mxu0 0
      %2354 = vmatpush.bf16.msra.mxu0 0
      %2355 = vmatpush.bf16.msra.mxu0 0
      %2356 = vmatpush.bf16.msra.mxu0 0
      %2357 = vmatpush.bf16.msra.mxu0 0
      %2358 = vmatpush.bf16.msra.mxu0 0
      %2359 = vmatpush.bf16.msra.mxu0 %v2301
      %2360 = vmatpush.bf16.msra.mxu0 %v2300
      %2361 = vmatmul.bf16.gmra.mxu0 %v2306
      %v2362 = vpop.f32.mrf.mxu0
      %v2363 = vadd.f32 %v2290, %v2362
      %v2364 = vpop.f32.mrf.mxu0
      %v2365 = vadd.f32 %v2290, %v2364
      %2366 = vmatmul.bf16.gmra.mxu0 %v2309
      %v2367 = vpop.f32.mrf.mxu0
      %v2368 = vadd.f32 %v2290, %v2367
      %v2369 = vpop.f32.mrf.mxu0
      %v2370 = vadd.f32 %v2290, %v2369
      %2371 = vmatmul.bf16.gmra.mxu0 %v2312
      %v2372 = vpop.f32.mrf.mxu0
      %v2373 = vadd.f32 %v2290, %v2372
      %v2374 = vpop.f32.mrf.mxu0
      %v2375 = vadd.f32 %v2290, %v2374
      %2376 = vmatmul.bf16.gmra.mxu0 %v2315
      %v2377 = vpop.f32.mrf.mxu0
      %v2378 = vadd.f32 %v2290, %v2377
      %v2379 = vpop.f32.mrf.mxu0
      %v2380 = vadd.f32 %v2290, %v2379
      %2381 = vmatmul.bf16.gmra.mxu0 %v2318
      %v2382 = vpop.f32.mrf.mxu0
      %v2383 = vadd.f32 %v2290, %v2382
      %v2384 = vpop.f32.mrf.mxu0
      %v2385 = vadd.f32 %v2290, %v2384
      %2386 = vmatmul.bf16.gmra.mxu0 %v2321
      %v2387 = vpop.f32.mrf.mxu0
      %v2388 = vadd.f32 %v2290, %v2387
      %v2389 = vpop.f32.mrf.mxu0
      %v2390 = vadd.f32 %v2290, %v2389
      %2391 = vmatmul.bf16.gmra.mxu0 %v2324
      %v2392 = vpop.f32.mrf.mxu0
      %v2393 = vadd.f32 %v2290, %v2392
      %v2394 = vpop.f32.mrf.mxu0
      %v2395 = vadd.f32 %v2290, %v2394
      %2396 = vmatmul.bf16.gmra.mxu0 %v2327
      %v2397 = vpop.f32.mrf.mxu0
      %v2398 = vadd.f32 %v2290, %v2397
      %v2399 = vpop.f32.mrf.mxu0
      %v2400 = vadd.f32 %v2290, %v2399
      %2401 = vmatmul.bf16.gmra.mxu0 %v2330
      %v2402 = vpop.f32.mrf.mxu0
      %v2403 = vadd.f32 %v2290, %v2402
      %v2404 = vpop.f32.mrf.mxu0
      %v2405 = vadd.f32 %v2290, %v2404
      %2406 = vmatmul.bf16.gmra.mxu0 %v2333
      %v2407 = vpop.f32.mrf.mxu0
      %v2408 = vadd.f32 %v2290, %v2407
      %v2409 = vpop.f32.mrf.mxu0
      %v2410 = vadd.f32 %v2290, %v2409
      %2411 = vmatmul.bf16.gmra.mxu0 %v2336
      %v2412 = vpop.f32.mrf.mxu0
      %v2413 = vadd.f32 %v2290, %v2412
      %v2414 = vpop.f32.mrf.mxu0
      %v2415 = vadd.f32 %v2290, %v2414
      %2416 = vmatmul.bf16.gmra.mxu0 %v2339
      %v2417 = vpop.f32.mrf.mxu0
      %v2418 = vadd.f32 %v2290, %v2417
      %v2419 = vpop.f32.mrf.mxu0
      %v2420 = vadd.f32 %v2290, %v2419
      %2421 = vmatmul.bf16.gmra.mxu0 %v2342
      %v2422 = vpop.f32.mrf.mxu0
      %v2423 = vadd.f32 %v2290, %v2422
      %v2424 = vpop.f32.mrf.mxu0
      %v2425 = vadd.f32 %v2290, %v2424
      %2426 = vmatmul.bf16.gmra.mxu0 %v2345
      %v2427 = vpop.f32.mrf.mxu0
      %v2428 = vadd.f32 %v2290, %v2427
      %v2429 = vpop.f32.mrf.mxu0
      %v2430 = vadd.f32 %v2290, %v2429
      %2431 = vmatmul.bf16.gmra.mxu0 %v2348
      %v2432 = vpop.f32.mrf.mxu0
      %v2433 = vadd.f32 %v2290, %v2432
      %v2434 = vpop.f32.mrf.mxu0
      %v2435 = vadd.f32 %v2290, %v2434
      %2436 = vmatmul.bf16.gmra.mxu0 %v2351
      %v2437 = vpop.f32.mrf.mxu0
      %v2438 = vadd.f32 %v2290, %v2437
      %v2439 = vpop.f32.mrf.mxu0
      %v2440 = vadd.f32 %v2290, %v2439
      %2441 = vdwg.mxu0
      %v2442 = vmax.f32 %v2363, 0.0
      %v2443 = vmax.f32 %v2365, 0.0
      %v2444 = vmax.f32 %v2368, 0.0
      %v2445 = vmax.f32 %v2370, 0.0
      %v2446 = vmax.f32 %v2373, 0.0
      %v2447 = vmax.f32 %v2375, 0.0
      %v2448 = vmax.f32 %v2378, 0.0
      %v2449 = vmax.f32 %v2380, 0.0
      %v2450 = vmax.f32 %v2383, 0.0
      %v2451 = vmax.f32 %v2385, 0.0
      %v2452 = vmax.f32 %v2388, 0.0
      %v2453 = vmax.f32 %v2390, 0.0
      %v2454 = vmax.f32 %v2393, 0.0
      %v2455 = vmax.f32 %v2395, 0.0
      %v2456 = vmax.f32 %v2398, 0.0
      %v2457 = vmax.f32 %v2400, 0.0
      %v2458 = vmax.f32 %v2403, 0.0
      %v2459 = vmax.f32 %v2405, 0.0
      %v2460 = vmax.f32 %v2408, 0.0
      %v2461 = vmax.f32 %v2410, 0.0
      %v2462 = vmax.f32 %v2413, 0.0
      %v2463 = vmax.f32 %v2415, 0.0
      %v2464 = vmax.f32 %v2418, 0.0
      %v2465 = vmax.f32 %v2420, 0.0
      %v2466 = vmax.f32 %v2423, 0.0
      %v2467 = vmax.f32 %v2425, 0.0
      %v2468 = vmax.f32 %v2428, 0.0
      %v2469 = vmax.f32 %v2430, 0.0
      %v2470 = vmax.f32 %v2433, 0.0
      %v2471 = vmax.f32 %v2435, 0.0
      %v2472 = vmax.f32 %v2438, 0.0
      %v2473 = vmax.f32 %v2440, 0.0
      %v2474 = vpack.c.bf16 %v2443, %v2442
      %v2475 = vpack.c.bf16 %v2445, %v2444
      %v2476 = vpack.c.bf16 %v2447, %v2446
      %v2477 = vpack.c.bf16 %v2449, %v2448
      %v2478 = vpack.c.bf16 %v2451, %v2450
      %v2479 = vpack.c.bf16 %v2453, %v2452
      %v2480 = vpack.c.bf16 %v2455, %v2454
      %v2481 = vpack.c.bf16 %v2457, %v2456
      %v2482 = vpack.c.bf16 %v2459, %v2458
      %v2483 = vpack.c.bf16 %v2461, %v2460
      %v2484 = vpack.c.bf16 %v2463, %v2462
      %v2485 = vpack.c.bf16 %v2465, %v2464
      %v2486 = vpack.c.bf16 %v2467, %v2466
      %v2487 = vpack.c.bf16 %v2469, %v2468
      %v2488 = vpack.c.bf16 %v2471, %v2470
      %v2489 = vpack.c.bf16 %v2473, %v2472
      %v2490 = vld [vmem:[%s374] sm:$0xf]
      %v2491 = vld [vmem:[%s374 + $0x4] sm:$0xf]
      %v2492 = vld [vmem:[%s374 + $0x8] sm:$0xf]
      %v2493 = vld [vmem:[%s374 + $0xc] sm:$0xf]
      %v2494 = vld [vmem:[%s374 + $0x10] sm:$0xf]
      %v2495 = vld [vmem:[%s374 + $0x14] sm:$0xf]
      %v2496 = vld [vmem:[%s374 + $0x18] sm:$0xf]
      %v2497 = vld [vmem:[%s374 + $0x1c] sm:$0xf]
      %v2498 = vld [vmem:[%s377] sm:$0x1]
      %v2500 = vperm.slane %v2498, 0
      %v2510 = vunpack.c.l.b16 %v2490
      %v2511 = vunpack.c.l.b16 %v2491
      %v2512 = vunpack.c.l.b16 %v2492
      %v2513 = vunpack.c.l.b16 %v2493
      %v2514 = vunpack.c.l.b16 %v2494
      %v2515 = vunpack.c.l.b16 %v2495
      %v2516 = vunpack.c.l.b16 %v2496
      %v2517 = vunpack.c.l.b16 %v2497
      %v2518 = vpack.c.b16 %v2511, %v2510
      %v2519 = vpack.c.b16 %v2513, %v2512
      %v2520 = vpack.c.b16 %v2515, %v2514
      %v2521 = vpack.c.b16 %v2517, %v2516
      %vm2526 = vcmask 523264
      %v2528 = vsel %vm2526, %v2474, 0
      %v2531 = vsel %vm2526, %v2475, 0
      %v2534 = vsel %vm2526, %v2476, 0
      %v2537 = vsel %vm2526, %v2477, 0
      %v2540 = vsel %vm2526, %v2478, 0
      %v2543 = vsel %vm2526, %v2479, 0
      %v2546 = vsel %vm2526, %v2480, 0
      %v2549 = vsel %vm2526, %v2481, 0
      %v2552 = vsel %vm2526, %v2482, 0
      %v2555 = vsel %vm2526, %v2483, 0
      %v2558 = vsel %vm2526, %v2484, 0
      %v2561 = vsel %vm2526, %v2485, 0
      %v2564 = vsel %vm2526, %v2486, 0
      %v2567 = vsel %vm2526, %v2487, 0
      %v2570 = vsel %vm2526, %v2488, 0
      %v2573 = vsel %vm2526, %v2489, 0
      %2575 = vmatpush.bf16.msra.mxu0 0
      %2576 = vmatpush.bf16.msra.mxu0 0
      %2577 = vmatpush.bf16.msra.mxu0 0
      %2578 = vmatpush.bf16.msra.mxu0 0
      %2579 = vmatpush.bf16.msra.mxu0 %v2521
      %2580 = vmatpush.bf16.msra.mxu0 %v2520
      %2581 = vmatpush.bf16.msra.mxu0 %v2519
      %2582 = vmatpush.bf16.msra.mxu0 %v2518
      %2583 = vmatmul.bf16.gmra.mxu0 %v2528
      %v2584 = vpop.f32.mrf.mxu0
      %v2585 = vadd.f32 %v2500, %v2584
      %v2586 = vpop.f32.mrf.mxu0
      %v2587 = vadd.f32 %v2500, %v2586
      %2588 = vmatmul.bf16.gmra.mxu0 %v2531
      %v2589 = vpop.f32.mrf.mxu0
      %v2590 = vadd.f32 %v2500, %v2589
      %v2591 = vpop.f32.mrf.mxu0
      %v2592 = vadd.f32 %v2500, %v2591
      %2593 = vmatmul.bf16.gmra.mxu0 %v2534
      %v2594 = vpop.f32.mrf.mxu0
      %v2595 = vadd.f32 %v2500, %v2594
      %v2596 = vpop.f32.mrf.mxu0
      %v2597 = vadd.f32 %v2500, %v2596
      %2598 = vmatmul.bf16.gmra.mxu0 %v2537
      %v2599 = vpop.f32.mrf.mxu0
      %v2600 = vadd.f32 %v2500, %v2599
      %v2601 = vpop.f32.mrf.mxu0
      %v2602 = vadd.f32 %v2500, %v2601
      %2603 = vmatmul.bf16.gmra.mxu0 %v2540
      %v2604 = vpop.f32.mrf.mxu0
      %v2605 = vadd.f32 %v2500, %v2604
      %v2606 = vpop.f32.mrf.mxu0
      %v2607 = vadd.f32 %v2500, %v2606
      %2608 = vmatmul.bf16.gmra.mxu0 %v2543
      %v2609 = vpop.f32.mrf.mxu0
      %v2610 = vadd.f32 %v2500, %v2609
      %v2611 = vpop.f32.mrf.mxu0
      %v2612 = vadd.f32 %v2500, %v2611
      %2613 = vmatmul.bf16.gmra.mxu0 %v2546
      %v2614 = vpop.f32.mrf.mxu0
      %v2615 = vadd.f32 %v2500, %v2614
      %v2616 = vpop.f32.mrf.mxu0
      %v2617 = vadd.f32 %v2500, %v2616
      %2618 = vmatmul.bf16.gmra.mxu0 %v2549
      %v2619 = vpop.f32.mrf.mxu0
      %v2620 = vadd.f32 %v2500, %v2619
      %v2621 = vpop.f32.mrf.mxu0
      %v2622 = vadd.f32 %v2500, %v2621
      %2623 = vmatmul.bf16.gmra.mxu0 %v2552
      %v2624 = vpop.f32.mrf.mxu0
      %v2625 = vadd.f32 %v2500, %v2624
      %v2626 = vpop.f32.mrf.mxu0
      %v2627 = vadd.f32 %v2500, %v2626
      %2628 = vmatmul.bf16.gmra.mxu0 %v2555
      %v2629 = vpop.f32.mrf.mxu0
      %v2630 = vadd.f32 %v2500, %v2629
      %v2631 = vpop.f32.mrf.mxu0
      %v2632 = vadd.f32 %v2500, %v2631
      %2633 = vmatmul.bf16.gmra.mxu0 %v2558
      %v2634 = vpop.f32.mrf.mxu0
      %v2635 = vadd.f32 %v2500, %v2634
      %v2636 = vpop.f32.mrf.mxu0
      %v2637 = vadd.f32 %v2500, %v2636
      %2638 = vmatmul.bf16.gmra.mxu0 %v2561
      %v2639 = vpop.f32.mrf.mxu0
      %v2640 = vadd.f32 %v2500, %v2639
      %v2641 = vpop.f32.mrf.mxu0
      %v2642 = vadd.f32 %v2500, %v2641
      %2643 = vmatmul.bf16.gmra.mxu0 %v2564
      %v2644 = vpop.f32.mrf.mxu0
      %v2645 = vadd.f32 %v2500, %v2644
      %v2646 = vpop.f32.mrf.mxu0
      %v2647 = vadd.f32 %v2500, %v2646
      %2648 = vmatmul.bf16.gmra.mxu0 %v2567
      %v2649 = vpop.f32.mrf.mxu0
      %v2650 = vadd.f32 %v2500, %v2649
      %v2651 = vpop.f32.mrf.mxu0
      %v2652 = vadd.f32 %v2500, %v2651
      %2653 = vmatmul.bf16.gmra.mxu0 %v2570
      %v2654 = vpop.f32.mrf.mxu0
      %v2655 = vadd.f32 %v2500, %v2654
      %v2656 = vpop.f32.mrf.mxu0
      %v2657 = vadd.f32 %v2500, %v2656
      %2658 = vmatmul.bf16.gmra.mxu0 %v2573
      %v2659 = vpop.f32.mrf.mxu0
      %v2660 = vadd.f32 %v2500, %v2659
      %v2661 = vpop.f32.mrf.mxu0
      %v2662 = vadd.f32 %v2500, %v2661
      %2663 = vdwg.mxu0
      %v2664 = vlaneseq
      %v2665 = vand.u32 %v2664, 127
      %v2666 = vstv %s23
      %vm2667 = vcmp.eq.s32.totalorder %v2665, %v2666
      %v2668 = vld [vmem:[#allocation2] sm:$0xff]
      %v2669 = vld [vmem:[#allocation2 + $0x8] sm:$0xff]
      %v2670 = vld [vmem:[#allocation2 + $0x10] sm:$0xff]
      %v2671 = vld [vmem:[#allocation2 + $0x18] sm:$0xff]
      %v2672 = vld [vmem:[#allocation2 + $0x20] sm:$0xff]
      %v2673 = vld [vmem:[#allocation2 + $0x28] sm:$0xff]
      %v2674 = vld [vmem:[#allocation2 + $0x30] sm:$0xff]
      %v2675 = vld [vmem:[#allocation2 + $0x38] sm:$0xff]
      %v2676 = vld [vmem:[#allocation2 + $0x40] sm:$0xff]
      %v2677 = vld [vmem:[#allocation2 + $0x48] sm:$0xff]
      %v2678 = vld [vmem:[#allocation2 + $0x50] sm:$0xff]
      %v2679 = vld [vmem:[#allocation2 + $0x58] sm:$0xff]
      %v2680 = vld [vmem:[#allocation2 + $0x60] sm:$0xff]
      %v2681 = vld [vmem:[#allocation2 + $0x68] sm:$0xff]
      %v2682 = vld [vmem:[#allocation2 + $0x70] sm:$0xff]
      %v2683 = vld [vmem:[#allocation2 + $0x78] sm:$0xff]
      %v2684 = vld [vmem:[#allocation2 + $0x80] sm:$0xff]
      %v2685 = vld [vmem:[#allocation2 + $0x88] sm:$0xff]
      %v2686 = vld [vmem:[#allocation2 + $0x90] sm:$0xff]
      %v2687 = vld [vmem:[#allocation2 + $0x98] sm:$0xff]
      %v2688 = vld [vmem:[#allocation2 + $0xa0] sm:$0xff]
      %v2689 = vld [vmem:[#allocation2 + $0xa8] sm:$0xff]
      %v2690 = vld [vmem:[#allocation2 + $0xb0] sm:$0xff]
      %v2691 = vld [vmem:[#allocation2 + $0xb8] sm:$0xff]
      %v2692 = vld [vmem:[#allocation2 + $0xc0] sm:$0xff]
      %v2693 = vld [vmem:[#allocation2 + $0xc8] sm:$0xff]
      %v2694 = vld [vmem:[#allocation2 + $0xd0] sm:$0xff]
      %v2695 = vld [vmem:[#allocation2 + $0xd8] sm:$0xff]
      %v2696 = vld [vmem:[#allocation2 + $0xe0] sm:$0xff]
      %v2697 = vld [vmem:[#allocation2 + $0xe8] sm:$0xff]
      %v2698 = vld [vmem:[#allocation2 + $0xf0] sm:$0xff]
      %v2699 = vld [vmem:[#allocation2 + $0xf8] sm:$0xff]
      %v2700 = vsel %vm2667, %v2668, 0.0
      %v2701 = vsel %vm2667, %v2669, 0.0
      %v2702 = vsel %vm2667, %v2670, 0.0
      %v2703 = vsel %vm2667, %v2671, 0.0
      %v2704 = vsel %vm2667, %v2672, 0.0
      %v2705 = vsel %vm2667, %v2673, 0.0
      %v2706 = vsel %vm2667, %v2674, 0.0
      %v2707 = vsel %vm2667, %v2675, 0.0
      %v2708 = vsel %vm2667, %v2676, 0.0
      %v2709 = vsel %vm2667, %v2677, 0.0
      %v2710 = vsel %vm2667, %v2678, 0.0
      %v2711 = vsel %vm2667, %v2679, 0.0
      %v2712 = vsel %vm2667, %v2680, 0.0
      %v2713 = vsel %vm2667, %v2681, 0.0
      %v2714 = vsel %vm2667, %v2682, 0.0
      %v2715 = vsel %vm2667, %v2683, 0.0
      %v2716 = vsel %vm2667, %v2684, 0.0
      %v2717 = vsel %vm2667, %v2685, 0.0
      %v2718 = vsel %vm2667, %v2686, 0.0
      %v2719 = vsel %vm2667, %v2687, 0.0
      %v2720 = vsel %vm2667, %v2688, 0.0
      %v2721 = vsel %vm2667, %v2689, 0.0
      %v2722 = vsel %vm2667, %v2690, 0.0
      %v2723 = vsel %vm2667, %v2691, 0.0
      %v2724 = vsel %vm2667, %v2692, 0.0
      %v2725 = vsel %vm2667, %v2693, 0.0
      %v2726 = vsel %vm2667, %v2694, 0.0
      %v2727 = vsel %vm2667, %v2695, 0.0
      %v2728 = vsel %vm2667, %v2696, 0.0
      %v2729 = vsel %vm2667, %v2697, 0.0
      %v2730 = vsel %vm2667, %v2698, 0.0
      %v2731 = vsel %vm2667, %v2699, 0.0
      %vm2732 = vcmask 64512
      %v2733 = vsel %vm2732, %v2700, 0.0
      %2734 = vadd.xlane.f32.xlu0 %v2733
      %v2735 = vpop.xlane.xlu0 %2734
      %v2736 = vsel %vm2732, %v2701, 0.0
      %2737 = vadd.xlane.f32.xlu0 %v2736
      %v2738 = vpop.xlane.xlu0 %2737
      %v2739 = vsel %vm2732, %v2702, 0.0
      %2740 = vadd.xlane.f32.xlu0 %v2739
      %v2741 = vpop.xlane.xlu0 %2740
      %v2742 = vsel %vm2732, %v2703, 0.0
      %2743 = vadd.xlane.f32.xlu0 %v2742
      %v2744 = vpop.xlane.xlu0 %2743
      %v2745 = vsel %vm2732, %v2704, 0.0
      %2746 = vadd.xlane.f32.xlu0 %v2745
      %v2747 = vpop.xlane.xlu0 %2746
      %v2748 = vsel %vm2732, %v2705, 0.0
      %2749 = vadd.xlane.f32.xlu0 %v2748
      %v2750 = vpop.xlane.xlu0 %2749
      %v2751 = vsel %vm2732, %v2706, 0.0
      %2752 = vadd.xlane.f32.xlu0 %v2751
      %v2753 = vpop.xlane.xlu0 %2752
      %v2754 = vsel %vm2732, %v2707, 0.0
      %2755 = vadd.xlane.f32.xlu0 %v2754
      %v2756 = vpop.xlane.xlu0 %2755
      %v2757 = vsel %vm2732, %v2708, 0.0
      %2758 = vadd.xlane.f32.xlu0 %v2757
      %v2759 = vpop.xlane.xlu0 %2758
      %v2760 = vsel %vm2732, %v2709, 0.0
      %2761 = vadd.xlane.f32.xlu0 %v2760
      %v2762 = vpop.xlane.xlu0 %2761
      %v2763 = vsel %vm2732, %v2710, 0.0
      %2764 = vadd.xlane.f32.xlu0 %v2763
      %v2765 = vpop.xlane.xlu0 %2764
      %v2766 = vsel %vm2732, %v2711, 0.0
      %2767 = vadd.xlane.f32.xlu0 %v2766
      %v2768 = vpop.xlane.xlu0 %2767
      %v2769 = vsel %vm2732, %v2712, 0.0
      %2770 = vadd.xlane.f32.xlu0 %v2769
      %v2771 = vpop.xlane.xlu0 %2770
      %v2772 = vsel %vm2732, %v2713, 0.0
      %2773 = vadd.xlane.f32.xlu0 %v2772
      %v2774 = vpop.xlane.xlu0 %2773
      %v2775 = vsel %vm2732, %v2714, 0.0
      %2776 = vadd.xlane.f32.xlu0 %v2775
      %v2777 = vpop.xlane.xlu0 %2776
      %v2778 = vsel %vm2732, %v2715, 0.0
      %2779 = vadd.xlane.f32.xlu0 %v2778
      %v2780 = vpop.xlane.xlu0 %2779
      %v2781 = vsel %vm2732, %v2716, 0.0
      %2782 = vadd.xlane.f32.xlu0 %v2781
      %v2783 = vpop.xlane.xlu0 %2782
      %v2784 = vsel %vm2732, %v2717, 0.0
      %2785 = vadd.xlane.f32.xlu0 %v2784
      %v2786 = vpop.xlane.xlu0 %2785
      %v2787 = vsel %vm2732, %v2718, 0.0
      %2788 = vadd.xlane.f32.xlu0 %v2787
      %v2789 = vpop.xlane.xlu0 %2788
      %v2790 = vsel %vm2732, %v2719, 0.0
      %2791 = vadd.xlane.f32.xlu0 %v2790
      %v2792 = vpop.xlane.xlu0 %2791
      %v2793 = vsel %vm2732, %v2720, 0.0
      %2794 = vadd.xlane.f32.xlu0 %v2793
      %v2795 = vpop.xlane.xlu0 %2794
      %v2796 = vsel %vm2732, %v2721, 0.0
      %2797 = vadd.xlane.f32.xlu0 %v2796
      %v2798 = vpop.xlane.xlu0 %2797
      %v2799 = vsel %vm2732, %v2722, 0.0
      %2800 = vadd.xlane.f32.xlu0 %v2799
      %v2801 = vpop.xlane.xlu0 %2800
      %v2802 = vsel %vm2732, %v2723, 0.0
      %2803 = vadd.xlane.f32.xlu0 %v2802
      %v2804 = vpop.xlane.xlu0 %2803
      %v2805 = vsel %vm2732, %v2724, 0.0
      %2806 = vadd.xlane.f32.xlu0 %v2805
      %v2807 = vpop.xlane.xlu0 %2806
      %v2808 = vsel %vm2732, %v2725, 0.0
      %2809 = vadd.xlane.f32.xlu0 %v2808
      %v2810 = vpop.xlane.xlu0 %2809
      %v2811 = vsel %vm2732, %v2726, 0.0
      %2812 = vadd.xlane.f32.xlu0 %v2811
      %v2813 = vpop.xlane.xlu0 %2812
      %v2814 = vsel %vm2732, %v2727, 0.0
      %2815 = vadd.xlane.f32.xlu0 %v2814
      %v2816 = vpop.xlane.xlu0 %2815
      %v2817 = vsel %vm2732, %v2728, 0.0
      %2818 = vadd.xlane.f32.xlu0 %v2817
      %v2819 = vpop.xlane.xlu0 %2818
      %v2820 = vsel %vm2732, %v2729, 0.0
      %2821 = vadd.xlane.f32.xlu0 %v2820
      %v2822 = vpop.xlane.xlu0 %2821
      %v2823 = vsel %vm2732, %v2730, 0.0
      %2824 = vadd.xlane.f32.xlu0 %v2823
      %v2825 = vpop.xlane.xlu0 %2824
      %v2826 = vsel %vm2732, %v2731, 0.0
      %2827 = vadd.xlane.f32.xlu0 %v2826
      %v2828 = vpop.xlane.xlu0 %2827
      %v2829 = vld [vmem:[#allocation3] sm:$0xff]
      %v2830 = vld [vmem:[#allocation3 + $0x8] sm:$0xff]
      %v2831 = vld [vmem:[#allocation3 + $0x10] sm:$0xff]
      %v2832 = vld [vmem:[#allocation3 + $0x18] sm:$0xff]
      %v2833 = vld [vmem:[#allocation3 + $0x20] sm:$0xff]
      %v2834 = vld [vmem:[#allocation3 + $0x28] sm:$0xff]
      %v2835 = vld [vmem:[#allocation3 + $0x30] sm:$0xff]
      %v2836 = vld [vmem:[#allocation3 + $0x38] sm:$0xff]
      %v2837 = vld [vmem:[#allocation3 + $0x40] sm:$0xff]
      %v2838 = vld [vmem:[#allocation3 + $0x48] sm:$0xff]
      %v2839 = vld [vmem:[#allocation3 + $0x50] sm:$0xff]
      %v2840 = vld [vmem:[#allocation3 + $0x58] sm:$0xff]
      %v2841 = vld [vmem:[#allocation3 + $0x60] sm:$0xff]
      %v2842 = vld [vmem:[#allocation3 + $0x68] sm:$0xff]
      %v2843 = vld [vmem:[#allocation3 + $0x70] sm:$0xff]
      %v2844 = vld [vmem:[#allocation3 + $0x78] sm:$0xff]
      %v2845 = vld [vmem:[#allocation3 + $0x80] sm:$0xff]
      %v2846 = vld [vmem:[#allocation3 + $0x88] sm:$0xff]
      %v2847 = vld [vmem:[#allocation3 + $0x90] sm:$0xff]
      %v2848 = vld [vmem:[#allocation3 + $0x98] sm:$0xff]
      %v2849 = vld [vmem:[#allocation3 + $0xa0] sm:$0xff]
      %v2850 = vld [vmem:[#allocation3 + $0xa8] sm:$0xff]
      %v2851 = vld [vmem:[#allocation3 + $0xb0] sm:$0xff]
      %v2852 = vld [vmem:[#allocation3 + $0xb8] sm:$0xff]
      %v2853 = vld [vmem:[#allocation3 + $0xc0] sm:$0xff]
      %v2854 = vld [vmem:[#allocation3 + $0xc8] sm:$0xff]
      %v2855 = vld [vmem:[#allocation3 + $0xd0] sm:$0xff]
      %v2856 = vld [vmem:[#allocation3 + $0xd8] sm:$0xff]
      %v2857 = vld [vmem:[#allocation3 + $0xe0] sm:$0xff]
      %v2858 = vld [vmem:[#allocation3 + $0xe8] sm:$0xff]
      %v2859 = vld [vmem:[#allocation3 + $0xf0] sm:$0xff]
      %v2860 = vld [vmem:[#allocation3 + $0xf8] sm:$0xff]
      %v2861 = vmul.f32 %v2735, %v2585
      %v2862 = vmul.f32 %v2738, %v2587
      %v2863 = vmul.f32 %v2741, %v2590
      %v2864 = vmul.f32 %v2744, %v2592
      %v2865 = vmul.f32 %v2747, %v2595
      %v2866 = vmul.f32 %v2750, %v2597
      %v2867 = vmul.f32 %v2753, %v2600
      %v2868 = vmul.f32 %v2756, %v2602
      %v2869 = vmul.f32 %v2759, %v2605
      %v2870 = vmul.f32 %v2762, %v2607
      %v2871 = vmul.f32 %v2765, %v2610
      %v2872 = vmul.f32 %v2768, %v2612
      %v2873 = vmul.f32 %v2771, %v2615
      %v2874 = vmul.f32 %v2774, %v2617
      %v2875 = vmul.f32 %v2777, %v2620
      %v2876 = vmul.f32 %v2780, %v2622
      %v2877 = vmul.f32 %v2783, %v2625
      %v2878 = vmul.f32 %v2786, %v2627
      %v2879 = vmul.f32 %v2789, %v2630
      %v2880 = vmul.f32 %v2792, %v2632
      %v2881 = vmul.f32 %v2795, %v2635
      %v2882 = vmul.f32 %v2798, %v2637
      %v2883 = vmul.f32 %v2801, %v2640
      %v2884 = vmul.f32 %v2804, %v2642
      %v2885 = vmul.f32 %v2807, %v2645
      %v2886 = vmul.f32 %v2810, %v2647
      %v2887 = vmul.f32 %v2813, %v2650
      %v2888 = vmul.f32 %v2816, %v2652
      %v2889 = vmul.f32 %v2819, %v2655
      %v2890 = vmul.f32 %v2822, %v2657
      %v2891 = vmul.f32 %v2825, %v2660
      %v2892 = vmul.f32 %v2828, %v2662
      %v2893 = vadd.f32 %v2829, %v2861
      %v2894 = vadd.f32 %v2830, %v2862
      %v2895 = vadd.f32 %v2831, %v2863
      %v2896 = vadd.f32 %v2832, %v2864
      %v2897 = vadd.f32 %v2833, %v2865
      %v2898 = vadd.f32 %v2834, %v2866
      %v2899 = vadd.f32 %v2835, %v2867
      %v2900 = vadd.f32 %v2836, %v2868
      %v2901 = vadd.f32 %v2837, %v2869
      %v2902 = vadd.f32 %v2838, %v2870
      %v2903 = vadd.f32 %v2839, %v2871
      %v2904 = vadd.f32 %v2840, %v2872
      %v2905 = vadd.f32 %v2841, %v2873
      %v2906 = vadd.f32 %v2842, %v2874
      %v2907 = vadd.f32 %v2843, %v2875
      %v2908 = vadd.f32 %v2844, %v2876
      %v2909 = vadd.f32 %v2845, %v2877
      %v2910 = vadd.f32 %v2846, %v2878
      %v2911 = vadd.f32 %v2847, %v2879
      %v2912 = vadd.f32 %v2848, %v2880
      %v2913 = vadd.f32 %v2849, %v2881
      %v2914 = vadd.f32 %v2850, %v2882
      %v2915 = vadd.f32 %v2851, %v2883
      %v2916 = vadd.f32 %v2852, %v2884
      %v2917 = vadd.f32 %v2853, %v2885
      %v2918 = vadd.f32 %v2854, %v2886
      %v2919 = vadd.f32 %v2855, %v2887
      %v2920 = vadd.f32 %v2856, %v2888
      %v2921 = vadd.f32 %v2857, %v2889
      %v2922 = vadd.f32 %v2858, %v2890
      %v2923 = vadd.f32 %v2859, %v2891
      %v2924 = vadd.f32 %v2860, %v2892
      %2925 = vst.msk [vmem:[#allocation3] sm:$0xff] %vm2304, %v2893
      %2926 = vst.msk [vmem:[#allocation3 + $0x8] sm:$0xff] %vm2304, %v2894
      %2927 = vst.msk [vmem:[#allocation3 + $0x10] sm:$0xff] %vm2304, %v2895
      %2928 = vst.msk [vmem:[#allocation3 + $0x18] sm:$0xff] %vm2304, %v2896
      %2929 = vst.msk [vmem:[#allocation3 + $0x20] sm:$0xff] %vm2304, %v2897
      %2930 = vst.msk [vmem:[#allocation3 + $0x28] sm:$0xff] %vm2304, %v2898
      %2931 = vst.msk [vmem:[#allocation3 + $0x30] sm:$0xff] %vm2304, %v2899
      %2932 = vst.msk [vmem:[#allocation3 + $0x38] sm:$0xff] %vm2304, %v2900
      %2933 = vst.msk [vmem:[#allocation3 + $0x40] sm:$0xff] %vm2304, %v2901
      %2934 = vst.msk [vmem:[#allocation3 + $0x48] sm:$0xff] %vm2304, %v2902
      %2935 = vst.msk [vmem:[#allocation3 + $0x50] sm:$0xff] %vm2304, %v2903
      %2936 = vst.msk [vmem:[#allocation3 + $0x58] sm:$0xff] %vm2304, %v2904
      %2937 = vst.msk [vmem:[#allocation3 + $0x60] sm:$0xff] %vm2304, %v2905
      %2938 = vst.msk [vmem:[#allocation3 + $0x68] sm:$0xff] %vm2304, %v2906
      %2939 = vst.msk [vmem:[#allocation3 + $0x70] sm:$0xff] %vm2304, %v2907
      %2940 = vst.msk [vmem:[#allocation3 + $0x78] sm:$0xff] %vm2304, %v2908
      %2941 = vst.msk [vmem:[#allocation3 + $0x80] sm:$0xff] %vm2304, %v2909
      %2942 = vst.msk [vmem:[#allocation3 + $0x88] sm:$0xff] %vm2304, %v2910
      %2943 = vst.msk [vmem:[#allocation3 + $0x90] sm:$0xff] %vm2304, %v2911
      %2944 = vst.msk [vmem:[#allocation3 + $0x98] sm:$0xff] %vm2304, %v2912
      %2945 = vst.msk [vmem:[#allocation3 + $0xa0] sm:$0xff] %vm2304, %v2913
      %2946 = vst.msk [vmem:[#allocation3 + $0xa8] sm:$0xff] %vm2304, %v2914
      %2947 = vst.msk [vmem:[#allocation3 + $0xb0] sm:$0xff] %vm2304, %v2915
      %2948 = vst.msk [vmem:[#allocation3 + $0xb8] sm:$0xff] %vm2304, %v2916
      %2949 = vst.msk [vmem:[#allocation3 + $0xc0] sm:$0xff] %vm2304, %v2917
      %2950 = vst.msk [vmem:[#allocation3 + $0xc8] sm:$0xff] %vm2304, %v2918
      %2951 = vst.msk [vmem:[#allocation3 + $0xd0] sm:$0xff] %vm2304, %v2919
      %2952 = vst.msk [vmem:[#allocation3 + $0xd8] sm:$0xff] %vm2304, %v2920
      %2953 = vst.msk [vmem:[#allocation3 + $0xe0] sm:$0xff] %vm2304, %v2921
      %2954 = vst.msk [vmem:[#allocation3 + $0xe8] sm:$0xff] %vm2304, %v2922
      %2955 = vst.msk [vmem:[#allocation3 + $0xf0] sm:$0xff] %vm2304, %v2923
      %2956 = vst.msk [vmem:[#allocation3 + $0xf8] sm:$0xff] %vm2304, %v2924
      %p2957 = scmp.eq.s32.totalorder %s23, 7
      // Predicated region
      $region53: #{tpu_custom_call.1} parent=47 // pred_check
        %p2958 = pneg %p2957
      $region54: #{tpu_custom_call.1} parent=47 // pred_check_branch
        %2960 = sbr.rel (%p2958) target = $region56
      $region55: #{tpu_custom_call.1} parent=47 // pred_region
        %v2961 = vld [vmem:[#allocation3] sm:$0xff]
        %v2962 = vld [vmem:[#allocation3 + $0x8] sm:$0xff]
        %v2963 = vld [vmem:[#allocation3 + $0x10] sm:$0xff]
        %v2964 = vld [vmem:[#allocation3 + $0x18] sm:$0xff]
        %v2965 = vld [vmem:[#allocation3 + $0x20] sm:$0xff]
        %v2966 = vld [vmem:[#allocation3 + $0x28] sm:$0xff]
        %v2967 = vld [vmem:[#allocation3 + $0x30] sm:$0xff]
        %v2968 = vld [vmem:[#allocation3 + $0x38] sm:$0xff]
        %v2969 = vld [vmem:[#allocation3 + $0x40] sm:$0xff]
        %v2970 = vld [vmem:[#allocation3 + $0x48] sm:$0xff]
        %v2971 = vld [vmem:[#allocation3 + $0x50] sm:$0xff]
        %v2972 = vld [vmem:[#allocation3 + $0x58] sm:$0xff]
        %v2973 = vld [vmem:[#allocation3 + $0x60] sm:$0xff]
        %v2974 = vld [vmem:[#allocation3 + $0x68] sm:$0xff]
        %v2975 = vld [vmem:[#allocation3 + $0x70] sm:$0xff]
        %v2976 = vld [vmem:[#allocation3 + $0x78] sm:$0xff]
        %v2977 = vld [vmem:[#allocation3 + $0x80] sm:$0xff]
        %v2978 = vld [vmem:[#allocation3 + $0x88] sm:$0xff]
        %v2979 = vld [vmem:[#allocation3 + $0x90] sm:$0xff]
        %v2980 = vld [vmem:[#allocation3 + $0x98] sm:$0xff]
        %v2981 = vld [vmem:[#allocation3 + $0xa0] sm:$0xff]
        %v2982 = vld [vmem:[#allocation3 + $0xa8] sm:$0xff]
        %v2983 = vld [vmem:[#allocation3 + $0xb0] sm:$0xff]
        %v2984 = vld [vmem:[#allocation3 + $0xb8] sm:$0xff]
        %v2985 = vld [vmem:[#allocation3 + $0xc0] sm:$0xff]
        %v2986 = vld [vmem:[#allocation3 + $0xc8] sm:$0xff]
        %v2987 = vld [vmem:[#allocation3 + $0xd0] sm:$0xff]
        %v2988 = vld [vmem:[#allocation3 + $0xd8] sm:$0xff]
        %v2989 = vld [vmem:[#allocation3 + $0xe0] sm:$0xff]
        %v2990 = vld [vmem:[#allocation3 + $0xe8] sm:$0xff]
        %v2991 = vld [vmem:[#allocation3 + $0xf0] sm:$0xff]
        %v2992 = vld [vmem:[#allocation3 + $0xf8] sm:$0xff]
        %2993 = vst.msk [vmem:[%s382] sm:$0xff] %vm2304, %v2961
        %2994 = vst.msk [vmem:[%s382 + $0x8] sm:$0xff] %vm2304, %v2962
        %2995 = vst.msk [vmem:[%s382 + $0x10] sm:$0xff] %vm2304, %v2963
        %2996 = vst.msk [vmem:[%s382 + $0x18] sm:$0xff] %vm2304, %v2964
        %2997 = vst.msk [vmem:[%s382 + $0x20] sm:$0xff] %vm2304, %v2965
        %2998 = vst.msk [vmem:[%s382 + $0x28] sm:$0xff] %vm2304, %v2966
        %2999 = vst.msk [vmem:[%s382 + $0x30] sm:$0xff] %vm2304, %v2967
        %3000 = vst.msk [vmem:[%s382 + $0x38] sm:$0xff] %vm2304, %v2968
        %3001 = vst.msk [vmem:[%s382 + $0x40] sm:$0xff] %vm2304, %v2969
        %3002 = vst.msk [vmem:[%s382 + $0x48] sm:$0xff] %vm2304, %v2970
        %3003 = vst.msk [vmem:[%s382 + $0x50] sm:$0xff] %vm2304, %v2971
        %3004 = vst.msk [vmem:[%s382 + $0x58] sm:$0xff] %vm2304, %v2972
        %3005 = vst.msk [vmem:[%s382 + $0x60] sm:$0xff] %vm2304, %v2973
        %3006 = vst.msk [vmem:[%s382 + $0x68] sm:$0xff] %vm2304, %v2974
        %3007 = vst.msk [vmem:[%s382 + $0x70] sm:$0xff] %vm2304, %v2975
        %3008 = vst.msk [vmem:[%s382 + $0x78] sm:$0xff] %vm2304, %v2976
        %3009 = vst.msk [vmem:[%s382 + $0x80] sm:$0xff] %vm2304, %v2977
        %3010 = vst.msk [vmem:[%s382 + $0x88] sm:$0xff] %vm2304, %v2978
        %3011 = vst.msk [vmem:[%s382 + $0x90] sm:$0xff] %vm2304, %v2979
        %3012 = vst.msk [vmem:[%s382 + $0x98] sm:$0xff] %vm2304, %v2980
        %3013 = vst.msk [vmem:[%s382 + $0xa0] sm:$0xff] %vm2304, %v2981
        %3014 = vst.msk [vmem:[%s382 + $0xa8] sm:$0xff] %vm2304, %v2982
        %3015 = vst.msk [vmem:[%s382 + $0xb0] sm:$0xff] %vm2304, %v2983
        %3016 = vst.msk [vmem:[%s382 + $0xb8] sm:$0xff] %vm2304, %v2984
        %3017 = vst.msk [vmem:[%s382 + $0xc0] sm:$0xff] %vm2304, %v2985
        %3018 = vst.msk [vmem:[%s382 + $0xc8] sm:$0xff] %vm2304, %v2986
        %3019 = vst.msk [vmem:[%s382 + $0xd0] sm:$0xff] %vm2304, %v2987
        %3020 = vst.msk [vmem:[%s382 + $0xd8] sm:$0xff] %vm2304, %v2988
        %3021 = vst.msk [vmem:[%s382 + $0xe0] sm:$0xff] %vm2304, %v2989
        %3022 = vst.msk [vmem:[%s382 + $0xe8] sm:$0xff] %vm2304, %v2990
        %3023 = vst.msk [vmem:[%s382 + $0xf0] sm:$0xff] %vm2304, %v2991
        %3024 = vst.msk [vmem:[%s382 + $0xf8] sm:$0xff] %vm2304, %v2992
      $region56: #{tpu_custom_call.1} parent=47 // pred_fallthru
        _
      %s3025 = smul.u32 32, %s22
      %p3026 = scmp.lt.s32.totalorder %s3025, 31
      %s3027 = scalar_select %p3026, %s3025, 31
      %s3028 = smul.addr %s3027, 8
      %s3029 = scalar_lea.vmem %s7, %s3028
      // Predicated region
      $region57: #{tpu_custom_call.1} parent=47 // pred_check
        %p3030 = pneg %p225
      $region58: #{tpu_custom_call.1} parent=47 // pred_check_branch
        %3032 = sbr.rel (%p3030) target = $region60
      $region59: #{tpu_custom_call.1} parent=47 // pred_region
        %s3033 = smul.u32 32, %s22
      $region60: #{tpu_custom_call.1} parent=47 // pred_fallthru
        _
      // Predicated region
      $region61: #{tpu_custom_call.1} parent=47 // pred_check
        %p3034 = pneg %p225
      $region62: #{tpu_custom_call.1} parent=47 // pred_check_branch
        %3036 = sbr.rel (%p3034) target = $region64
      $region63: #{tpu_custom_call.1} parent=47 // pred_region
        %s3037 = smul.u32 32, %s22
        %p3038 = scmp.lt.s32.totalorder %s3037, 31
        %s3039 = scalar_select %p3038, %s3037, 31
        %s3040 = smul.addr %s3039, 8
        %s3041 = scalar_lea.vmem %s7, %s3040
      $region64: #{tpu_custom_call.1} parent=47 // pred_fallthru
        _
    $region48: #{tpu_custom_call.1} parent=5 // pred_fallthru
      _
    %p3042 = scmp.le.s32.totalorder 2, %s13
    // Predicated region
    $region65: #{tpu_custom_call.1} parent=5 // pred_check
      %p3043 = pneg %p3042
    $region66: #{tpu_custom_call.1} parent=5 // pred_check_branch
      %3045 = sbr.rel (%p3043) target = $region68
    $region67: #{tpu_custom_call.1} parent=5 // pred_region
      %s3046 = ssub.s32 %s13, 2
    $region68: #{tpu_custom_call.1} parent=5 // pred_fallthru
      _
  $region6: #{tpu_custom_call.1} parent=0 // loop_footer
    %s17 = sadd.s32 1, %s13
  $region7: #{tpu_custom_call.1} parent=0 // loop_footer_branch
    %12 = sbr.rel target = $region3
  $region8: #{tpu_custom_call.1} parent=0 // loop_exit
    _

</llo_original>
